<compile_context>
chip_gen: v6e
topology: v6e:2x2x1
jax: 0.10.0
libtpu: 0.0.40
codegen_flags: <defaults>
</compile_context>

<pallas_src>
import math

import jax
import jax.numpy as jnp
from jax.experimental import pallas as pl
from jax.experimental.pallas import tpu as pltpu


# ----------------------------------------------------------------------------
# Kernel factory: whole encoder (all layers, both directions) in ONE call.
# ----------------------------------------------------------------------------
def _make_encoder_kernel(S, B, E0, H, num_dir, n_layers):
    D = num_dir
    PH = D * H          # packed hidden width   (fwd | bwd side by side)
    G = 4 * PH          # packed gate width     (i | f | g | o, dir-minor)

    def kernel(*refs):
        (x_ref, h0_ref, c0_ref), rest = refs[:3], refs[3:]
        w_refs = rest[:3 * n_layers]                       # per layer: wih, whh, b
        out_ref, hN_ref, cN_ref = rest[3 * n_layers:3 * n_layers + 3]
        x_tm, gx_sc, gxc_sc, act_sc = rest[3 * n_layers + 3:]

        # ---- fold batch-first -> time-major permute into the kernel:
        #      tiny one-time row-copy loop, off the serial critical path.
        for b in range(B):
            for t in range(S):
                src = b * S + t
                dst = t * B + b
                x_tm[dst:dst + 1, :] = x_ref[src:src + 1, :]

        # Lane mask selecting the forward direction's gate columns
        # (gate-major / direction-minor layout).  Hoisted: built once.
        if D == 2:
            lane = jax.lax.broadcasted_iota(jnp.int32, (B, G), dimension=1)
            fwd_lane = (lane % PH) < H

        for layer in range(n_layers):
            wih_ref = w_refs[3 * layer + 0]   # (E_in, G)  packed W_ih^T (both dirs)
            whh_ref = w_refs[3 * layer + 1]   # (PH, G)    block-diagonal W_hh^T
            b_ref = w_refs[3 * layer + 2]     # (1, G)     b_ih + b_hh, packed

            # ---- hoisted input projection: ONE MXU matmul for the whole
            #      sequence and BOTH directions, with fused bias.
            xin = x_tm[...] if layer == 0 else act_sc[...]
            gx_sc[...] = (jnp.dot(xin, wih_ref[...],
                                  preferred_element_type=jnp.float32)
                          + b_ref[...])

            # ---- stage per-step gate inputs with a LEADING time axis:
            #      forward lanes come from time t, backward lanes from time
            #      S-1-t, so the recurrence below is one packed serial chain
            #      with pure-address per-step indexing.
            for t in range(S):
                row_f = gx_sc[t * B:(t + 1) * B, :]
                if D == 2:
                    row_b = gx_sc[(S - 1 - t) * B:(S - t) * B, :]
                    gxc_sc[t] = jnp.where(fwd_lane, row_f, row_b)
                else:
                    gxc_sc[t] = row_f

            whh = whh_ref[...]
            h = jnp.concatenate([h0_ref[layer * D + d] for d in range(D)],
                                axis=-1)                       # (B, PH)
            c = jnp.concatenate([c0_ref[layer * D + d] for d in range(D)],
                                axis=-1)                       # (B, PH)

            # ---- packed recurrence: S steps cover BOTH directions.
            for t in range(S):
                gates = gxc_sc[t] + jnp.dot(
                    h, whh, preferred_element_type=jnp.float32)   # (B, G)
                sig = jax.nn.sigmoid(gates)          # one EUP pass, all gates
                i = sig[:, 0 * PH:1 * PH]
                f = sig[:, 1 * PH:2 * PH]
                o = sig[:, 3 * PH:4 * PH]
                g = jnp.tanh(gates[:, 2 * PH:3 * PH])
                c = f * c + i * g
                h = o * jnp.tanh(c)

                # Time-correct, time-major layer output (stores are off the
                # dependent h/c chain, so they pipeline under the recurrence).
                if D == 2:
                    act_sc[t * B:(t + 1) * B, 0:H] = h[:, 0:H]
                    act_sc[(S - 1 - t) * B:(S - t) * B, H:2 * H] = h[:, H:2 * H]
                else:
                    act_sc[t * B:(t + 1) * B, :] = h

            # Final states: the packed h/c already hold h_fwd(S-1) | h_bwd(0).
            for d in range(D):
                hN_ref[layer * D + d] = h[:, d * H:(d + 1) * H]
                cN_ref[layer * D + d] = c[:, d * H:(d + 1) * H]

        # ---- fold time-major -> batch-first output permute into the kernel
        #      (final layer's activations only), again a tiny row-copy loop.
        for b in range(B):
            for t in range(S):
                out_ref[b * S + t:b * S + t + 1, :] = \
                    act_sc[t * B + b:t * B + b + 1, :]

    return kernel


# ----------------------------------------------------------------------------
# pallas_call wrapper: single launch for the whole encoder.
# ----------------------------------------------------------------------------
def _encoder_pallas(x_bf_flat, h0, c0, flat_weights, *, S, B, E0, H,
                    num_dir, n_layers):
    D = num_dir
    PH = D * H
    G = 4 * PH
    LD = n_layers * D

    kernel = _make_encoder_kernel(S, B, E0, H, D, n_layers)

    in_specs = [
        pl.BlockSpec((B * S, E0), lambda i: (0, 0)),      # x (batch-first flat)
        pl.BlockSpec((LD, B, H), lambda i: (0, 0, 0)),    # h0
        pl.BlockSpec((LD, B, H), lambda i: (0, 0, 0)),    # c0
    ]
    for w in flat_weights:                                # all weights are 2-D
        in_specs.append(pl.BlockSpec(w.shape, lambda i: (0, 0)))

    grid_spec = pltpu.PrefetchScalarGridSpec(
        num_scalar_prefetch=0,
        grid=(1,),
        in_specs=in_specs,
        out_specs=[
            pl.BlockSpec((B * S, PH), lambda i: (0, 0)),  # final layer output
            pl.BlockSpec((LD, B, H), lambda i: (0, 0, 0)),  # h_n
            pl.BlockSpec((LD, B, H), lambda i: (0, 0, 0)),  # c_n
        ],
        scratch_shapes=[
            pltpu.VMEM((S * B, E0), jnp.float32),   # x_tm  : time-major input
            pltpu.VMEM((S * B, G), jnp.float32),    # gx_sc : hoisted projection
            pltpu.VMEM((S, B, G), jnp.float32),     # gxc_sc: per-step gate input
            pltpu.VMEM((S * B, PH), jnp.float32),   # act_sc: layer activations
        ],
    )

    out, hN, cN = pl.pallas_call(
        kernel,
        out_shape=(
            jax.ShapeDtypeStruct((B * S, PH), jnp.float32),
            jax.ShapeDtypeStruct((LD, B, H), jnp.float32),
            jax.ShapeDtypeStruct((LD, B, H), jnp.float32),
        ),
        grid_spec=grid_spec,
        compiler_params=pltpu.CompilerParams(
            dimension_semantics=("arbitrary",)),
    )(x_bf_flat, h0, c0, *flat_weights)
    return out, hN, cN


# ----------------------------------------------------------------------------
# Encoder forward (mirrors Encoder.forward): batch-first in, batch-first out.
# ----------------------------------------------------------------------------
def make_encoder_forward(embedding_dim, hidden_dim, n_layers, bidir):
    D = 2 if bidir else 1
    H = hidden_dim // 2 if bidir else hidden_dim

    @jax.jit
    def forward(packed_params, embedded_inputs, hidden):
        h0, c0 = hidden
        B, S, E0 = embedded_inputs.shape
        # The batch-first <-> time-major permutes live INSIDE the kernel; the
        # wrapper only performs free (layout-preserving) reshapes.
        x = embedded_inputs.astype(jnp.float32).reshape(B * S, E0)
        flat_w = [a for trip in packed_params for a in trip]
        out_flat, hN, cN = _encoder_pallas(
            x, h0.astype(jnp.float32), c0.astype(jnp.float32), flat_w,
            S=S, B=B, E0=E0, H=H, num_dir=D, n_layers=n_layers)
        outputs = out_flat.reshape(B, S, D * H)
        return outputs, (hN, cN)

    return forward


# ----------------------------------------------------------------------------
# One-time weight repacking (hoisted out of the per-call forward path).
# ----------------------------------------------------------------------------
def pack_encoder_params(params, embedding_dim, hidden_per_dir, n_layers, bidir):
    """Per layer, produce:
      wih_p: (E_in, 4*D*H)  both directions' W_ih^T, gate-major/dir-minor cols
      whh_p: (D*H, 4*D*H)   block-diagonal packed W_hh^T
      b_p:   (1, 4*D*H)     b_ih + b_hh in the same column order
    """
    D = 2 if bidir else 1
    H = hidden_per_dir
    PH = D * H
    packed = []
    for layer in range(n_layers):
        in_size = embedding_dim if layer == 0 else PH
        wih_p = jnp.zeros((in_size, 4 * PH), jnp.float32)
        whh_p = jnp.zeros((PH, 4 * PH), jnp.float32)
        b_p = jnp.zeros((1, 4 * PH), jnp.float32)
        for d in range(D):
            w_ih, w_hh, b_ih, b_hh = params[layer * D + d]
            wihT = jnp.asarray(w_ih, jnp.float32).T        # (E_in, 4H) [i|f|g|o]
            whhT = jnp.asarray(w_hh, jnp.float32).T        # (H, 4H)
            bsum = jnp.asarray(b_ih + b_hh, jnp.float32)   # (4H,)
            for gate in range(4):
                col0 = gate * PH + d * H
                wih_p = wih_p.at[:, col0:col0 + H].set(
                    wihT[:, gate * H:(gate + 1) * H])
                whh_p = whh_p.at[d * H:(d + 1) * H, col0:col0 + H].set(
                    whhT[:, gate * H:(gate + 1) * H])
                b_p = b_p.at[0, col0:col0 + H].set(
                    bsum[gate * H:(gate + 1) * H])
        packed.append((wih_p, whh_p, b_p))
    return packed


# ----------------------------------------------------------------------------
# Pure-JAX reference (lax.scan) for correctness checking.
# ----------------------------------------------------------------------------
def _ref_lstm_dir(x_tm, h0, c0, w_ih, w_hh, b_ih, b_hh):
    def step(carry, x_t):
        h, c = carry
        gates = x_t @ w_ih.T + h @ w_hh.T + b_ih + b_hh
        i, f, g, o = jnp.split(gates, 4, axis=-1)
        i = jax.nn.sigmoid(i)
        f = jax.nn.sigmoid(f)
        g = jnp.tanh(g)
        o = jax.nn.sigmoid(o)
        c = f * c + i * g
        h = o * jnp.tanh(c)
        return (h, c), h
    (hN, cN), out = jax.lax.scan(step, (h0, c0), x_tm)
    return out, hN, cN


def encoder_forward_ref(params, embedded_inputs, hidden, n_layers, bidir):
    h0_all, c0_all = hidden
    num_dir = 2 if bidir else 1
    layer_in = jnp.transpose(embedded_inputs, (1, 0, 2))
    hs, cs = [], []
    for layer in range(n_layers):
        dir_outs = []
        for d in range(num_dir):
            idx = layer * num_dir + d
            w_ih, w_hh, b_ih, b_hh = params[idx]
            xin = layer_in if d == 0 else layer_in[::-1]
            out, hN, cN = _ref_lstm_dir(xin, h0_all[idx], c0_all[idx],
                                        w_ih, w_hh, b_ih, b_hh)
            if d == 1:
                out = out[::-1]
            dir_outs.append(out)
            hs.append(hN)
            cs.append(cN)
        layer_in = (jnp.concatenate(dir_outs, axis=-1)
                    if num_dir == 2 else dir_outs[0])
    outputs = jnp.transpose(layer_in, (1, 0, 2))
    return outputs, (jnp.stack(hs, 0), jnp.stack(cs, 0))


# ----------------------------------------------------------------------------
# Deterministic parameter construction (PyTorch nn.LSTM default layout).
# ----------------------------------------------------------------------------
def init_lstm_params(key, embedding_dim, hidden_per_dir, n_layers, bidir):
    num_dir = 2 if bidir else 1
    k = 1.0 / math.sqrt(hidden_per_dir)
    params = []
    for layer in range(n_layers):
        in_size = embedding_dim if layer == 0 else hidden_per_dir * num_dir
        for _ in range(num_dir):
            key, k1, k2, k3, k4 = jax.random.split(key, 5)
            w_ih = jax.random.uniform(k1, (4 * hidden_per_dir, in_size),
                                      jnp.float32, -k, k)
            w_hh = jax.random.uniform(k2, (4 * hidden_per_dir, hidden_per_dir),
                                      jnp.float32, -k, k)
            b_ih = jax.random.uniform(k3, (4 * hidden_per_dir,),
                                      jnp.float32, -k, k)
            b_hh = jax.random.uniform(k4, (4 * hidden_per_dir,),
                                      jnp.float32, -k, k)
            params.append((w_ih, w_hh, b_ih, b_hh))
    return params


if __name__ == "__main__":
    # Encoder(embedding_dim=32, hidden_dim=32, n_layers=2, dropout=0.0, bidir=True)
    embedding_dim = 32
    hidden_dim = 32
    n_layers = 2
    bidir = True
    num_dir = 2 if bidir else 1
    hidden_per_dir = hidden_dim // 2 if bidir else hidden_dim   # == 16
    total_layers = n_layers * num_dir                           # == 4 (init_hidden)

    batch, seq = 2, 8

    key = jax.random.PRNGKey(0)
    key, kx = jax.random.split(key)
    embedded_inputs = jax.random.normal(kx, (batch, seq, embedding_dim),
                                        jnp.float32)

    # init_hidden(): zeros of shape (n_layers*num_dir, batch, hidden_per_dir)
    h0 = jnp.zeros((total_layers, batch, hidden_per_dir), jnp.float32)
    c0 = jnp.zeros((total_layers, batch, hidden_per_dir), jnp.float32)

    params = init_lstm_params(key, embedding_dim, hidden_per_dir,
                              n_layers, bidir)
    packed_params = pack_encoder_params(params, embedding_dim, hidden_per_dir,
                                        n_layers, bidir)

    encoder_forward = make_encoder_forward(embedding_dim, hidden_dim,
                                           n_layers, bidir)
    outputs, (h_n, c_n) = encoder_forward(packed_params, embedded_inputs,
                                          (h0, c0))
    jax.block_until_ready((outputs, h_n, c_n))

    # Sanity-check against a pure-JAX lax.scan reference.
    outputs_ref, (h_ref, c_ref) = encoder_forward_ref(
        params, embedded_inputs, (h0, c0), n_layers, bidir)
    assert outputs.shape == (batch, seq, hidden_dim)
    assert h_n.shape == (total_layers, batch, hidden_per_dir)
    assert c_n.shape == (total_layers, batch, hidden_per_dir)
    assert jnp.allclose(outputs, outputs_ref, atol=1e-4, rtol=1e-4)
    assert jnp.allclose(h_n, h_ref, atol=1e-4, rtol=1e-4)
    assert jnp.allclose(c_n, c_ref, atol=1e-4, rtol=1e-4)

    print("KERNEL_OK")
</pallas_src>

<mosaic_0001>
module attributes {stable_mosaic.version = 11 : i64} {
  func.func @kernel(%arg0: i32, %arg1: memref<16x32xf32, #tpu.memory_space<vmem>>, %arg2: memref<4x2x16xf32, #tpu.memory_space<vmem>>, %arg3: memref<4x2x16xf32, #tpu.memory_space<vmem>>, %arg4: memref<32x128xf32, #tpu.memory_space<vmem>>, %arg5: memref<32x128xf32, #tpu.memory_space<vmem>>, %arg6: memref<1x128xf32, #tpu.memory_space<vmem>>, %arg7: memref<32x128xf32, #tpu.memory_space<vmem>>, %arg8: memref<32x128xf32, #tpu.memory_space<vmem>>, %arg9: memref<1x128xf32, #tpu.memory_space<vmem>>, %arg10: memref<16x32xf32, #tpu.memory_space<vmem>>, %arg11: memref<4x2x16xf32, #tpu.memory_space<vmem>>, %arg12: memref<4x2x16xf32, #tpu.memory_space<vmem>>, %arg13: memref<16x32xf32, #tpu.memory_space<vmem>>, %arg14: memref<16x128xf32, #tpu.memory_space<vmem>>, %arg15: memref<8x2x128xf32, #tpu.memory_space<vmem>>, %arg16: memref<16x32xf32, #tpu.memory_space<vmem>>) attributes {dimension_semantics = [#tpu.dimension_semantics<arbitrary>], iteration_bounds = array<i64: 1>, scalar_prefetch = 0 : i64, scratch_operands = 4 : i64, tpu.core_type = #tpu.core_type<tc>, window_params = [{pipeline_mode = #tpu.pipeline_mode<synchronous>, transform_indices = @transform_0, window_bounds = array<i64: 16, 32>}, {pipeline_mode = #tpu.pipeline_mode<synchronous>, transform_indices = @transform_1, window_bounds = array<i64: 4, 2, 16>}, {pipeline_mode = #tpu.pipeline_mode<synchronous>, transform_indices = @transform_2, window_bounds = array<i64: 4, 2, 16>}, {pipeline_mode = #tpu.pipeline_mode<synchronous>, transform_indices = @transform_3, window_bounds = array<i64: 32, 128>}, {pipeline_mode = #tpu.pipeline_mode<synchronous>, transform_indices = @transform_4, window_bounds = array<i64: 32, 128>}, {pipeline_mode = #tpu.pipeline_mode<synchronous>, transform_indices = @transform_5, window_bounds = array<i64: 1, 128>}, {pipeline_mode = #tpu.pipeline_mode<synchronous>, transform_indices = @transform_6, window_bounds = array<i64: 32, 128>}, {pipeline_mode = #tpu.pipeline_mode<synchronous>, transform_indices = @transform_7, window_bounds = array<i64: 32, 128>}, {pipeline_mode = #tpu.pipeline_mode<synchronous>, transform_indices = @transform_8, window_bounds = array<i64: 1, 128>}, {pipeline_mode = #tpu.pipeline_mode<synchronous>, transform_indices = @transform_9, window_bounds = array<i64: 16, 32>}, {pipeline_mode = #tpu.pipeline_mode<synchronous>, transform_indices = @transform_10, window_bounds = array<i64: 4, 2, 16>}, {pipeline_mode = #tpu.pipeline_mode<synchronous>, transform_indices = @transform_11, window_bounds = array<i64: 4, 2, 16>}]} {
    %c0 = arith.constant 0 : index
    %c0_0 = arith.constant 0 : index
    %0 = vector.load %arg1[%c0, %c0_0] : memref<16x32xf32, #tpu.memory_space<vmem>>, vector<1x32xf32>
    %c0_1 = arith.constant 0 : index
    %c0_2 = arith.constant 0 : index
    %1 = vector.load %arg13[%c0_1, %c0_2] : memref<16x32xf32, #tpu.memory_space<vmem>>, vector<1x32xf32>
    tpu.vector_store %arg13[%c0_1, %c0_2], %0 {strides = array<i32>} : memref<16x32xf32, #tpu.memory_space<vmem>>, vector<1x32xf32>,
    %c1 = arith.constant 1 : index
    %c0_3 = arith.constant 0 : index
    %2 = vector.load %arg1[%c1, %c0_3] : memref<16x32xf32, #tpu.memory_space<vmem>>, vector<1x32xf32>
    %c2 = arith.constant 2 : index
    %c0_4 = arith.constant 0 : index
    %3 = vector.load %arg13[%c2, %c0_4] : memref<16x32xf32, #tpu.memory_space<vmem>>, vector<1x32xf32>
    tpu.vector_store %arg13[%c2, %c0_4], %2 {strides = array<i32>} : memref<16x32xf32, #tpu.memory_space<vmem>>, vector<1x32xf32>,
    %c2_5 = arith.constant 2 : index
    %c0_6 = arith.constant 0 : index
    %4 = vector.load %arg1[%c2_5, %c0_6] : memref<16x32xf32, #tpu.memory_space<vmem>>, vector<1x32xf32>
    %c4 = arith.constant 4 : index
    %c0_7 = arith.constant 0 : index
    %5 = vector.load %arg13[%c4, %c0_7] : memref<16x32xf32, #tpu.memory_space<vmem>>, vector<1x32xf32>
    tpu.vector_store %arg13[%c4, %c0_7], %4 {strides = array<i32>} : memref<16x32xf32, #tpu.memory_space<vmem>>, vector<1x32xf32>,
    %c3 = arith.constant 3 : index
    %c0_8 = arith.constant 0 : index
    %6 = vector.load %arg1[%c3, %c0_8] : memref<16x32xf32, #tpu.memory_space<vmem>>, vector<1x32xf32>
    %c6 = arith.constant 6 : index
    %c0_9 = arith.constant 0 : index
    %7 = vector.load %arg13[%c6, %c0_9] : memref<16x32xf32, #tpu.memory_space<vmem>>, vector<1x32xf32>
    tpu.vector_store %arg13[%c6, %c0_9], %6 {strides = array<i32>} : memref<16x32xf32, #tpu.memory_space<vmem>>, vector<1x32xf32>,
    %c4_10 = arith.constant 4 : index
    %c0_11 = arith.constant 0 : index
    %8 = vector.load %arg1[%c4_10, %c0_11] : memref<16x32xf32, #tpu.memory_space<vmem>>, vector<1x32xf32>
    %c8 = arith.constant 8 : index
    %c0_12 = arith.constant 0 : index
    %9 = vector.load %arg13[%c8, %c0_12] : memref<16x32xf32, #tpu.memory_space<vmem>>, vector<1x32xf32>
    tpu.vector_store %arg13[%c8, %c0_12], %8 {strides = array<i32>} : memref<16x32xf32, #tpu.memory_space<vmem>>, vector<1x32xf32>,
    %c5 = arith.constant 5 : index
    %c0_13 = arith.constant 0 : index
    %10 = vector.load %arg1[%c5, %c0_13] : memref<16x32xf32, #tpu.memory_space<vmem>>, vector<1x32xf32>
    %c10 = arith.constant 10 : index
    %c0_14 = arith.constant 0 : index
    %11 = vector.load %arg13[%c10, %c0_14] : memref<16x32xf32, #tpu.memory_space<vmem>>, vector<1x32xf32>
    tpu.vector_store %arg13[%c10, %c0_14], %10 {strides = array<i32>} : memref<16x32xf32, #tpu.memory_space<vmem>>, vector<1x32xf32>,
    %c6_15 = arith.constant 6 : index
    %c0_16 = arith.constant 0 : index
    %12 = vector.load %arg1[%c6_15, %c0_16] : memref<16x32xf32, #tpu.memory_space<vmem>>, vector<1x32xf32>
    %c12 = arith.constant 12 : index
    %c0_17 = arith.constant 0 : index
    %13 = vector.load %arg13[%c12, %c0_17] : memref<16x32xf32, #tpu.memory_space<vmem>>, vector<1x32xf32>
    tpu.vector_store %arg13[%c12, %c0_17], %12 {strides = array<i32>} : memref<16x32xf32, #tpu.memory_space<vmem>>, vector<1x32xf32>,
    %c7 = arith.constant 7 : index
    %c0_18 = arith.constant 0 : index
    %14 = vector.load %arg1[%c7, %c0_18] : memref<16x32xf32, #tpu.memory_space<vmem>>, vector<1x32xf32>
    %c14 = arith.constant 14 : index
    %c0_19 = arith.constant 0 : index
    %15 = vector.load %arg13[%c14, %c0_19] : memref<16x32xf32, #tpu.memory_space<vmem>>, vector<1x32xf32>
    tpu.vector_store %arg13[%c14, %c0_19], %14 {strides = array<i32>} : memref<16x32xf32, #tpu.memory_space<vmem>>, vector<1x32xf32>,
    %c8_20 = arith.constant 8 : index
    %c0_21 = arith.constant 0 : index
    %16 = vector.load %arg1[%c8_20, %c0_21] : memref<16x32xf32, #tpu.memory_space<vmem>>, vector<1x32xf32>
    %c1_22 = arith.constant 1 : index
    %c0_23 = arith.constant 0 : index
    %17 = vector.load %arg13[%c1_22, %c0_23] : memref<16x32xf32, #tpu.memory_space<vmem>>, vector<1x32xf32>
    tpu.vector_store %arg13[%c1_22, %c0_23], %16 {strides = array<i32>} : memref<16x32xf32, #tpu.memory_space<vmem>>, vector<1x32xf32>,
    %c9 = arith.constant 9 : index
    %c0_24 = arith.constant 0 : index
    %18 = vector.load %arg1[%c9, %c0_24] : memref<16x32xf32, #tpu.memory_space<vmem>>, vector<1x32xf32>
    %c3_25 = arith.constant 3 : index
    %c0_26 = arith.constant 0 : index
    %19 = vector.load %arg13[%c3_25, %c0_26] : memref<16x32xf32, #tpu.memory_space<vmem>>, vector<1x32xf32>
    tpu.vector_store %arg13[%c3_25, %c0_26], %18 {strides = array<i32>} : memref<16x32xf32, #tpu.memory_space<vmem>>, vector<1x32xf32>,
    %c10_27 = arith.constant 10 : index
    %c0_28 = arith.constant 0 : index
    %20 = vector.load %arg1[%c10_27, %c0_28] : memref<16x32xf32, #tpu.memory_space<vmem>>, vector<1x32xf32>
    %c5_29 = arith.constant 5 : index
    %c0_30 = arith.constant 0 : index
    %21 = vector.load %arg13[%c5_29, %c0_30] : memref<16x32xf32, #tpu.memory_space<vmem>>, vector<1x32xf32>
    tpu.vector_store %arg13[%c5_29, %c0_30], %20 {strides = array<i32>} : memref<16x32xf32, #tpu.memory_space<vmem>>, vector<1x32xf32>,
    %c11 = arith.constant 11 : index
    %c0_31 = arith.constant 0 : index
    %22 = vector.load %arg1[%c11, %c0_31] : memref<16x32xf32, #tpu.memory_space<vmem>>, vector<1x32xf32>
    %c7_32 = arith.constant 7 : index
    %c0_33 = arith.constant 0 : index
    %23 = vector.load %arg13[%c7_32, %c0_33] : memref<16x32xf32, #tpu.memory_space<vmem>>, vector<1x32xf32>
    tpu.vector_store %arg13[%c7_32, %c0_33], %22 {strides = array<i32>} : memref<16x32xf32, #tpu.memory_space<vmem>>, vector<1x32xf32>,
    %c12_34 = arith.constant 12 : index
    %c0_35 = arith.constant 0 : index
    %24 = vector.load %arg1[%c12_34, %c0_35] : memref<16x32xf32, #tpu.memory_space<vmem>>, vector<1x32xf32>
    %c9_36 = arith.constant 9 : index
    %c0_37 = arith.constant 0 : index
    %25 = vector.load %arg13[%c9_36, %c0_37] : memref<16x32xf32, #tpu.memory_space<vmem>>, vector<1x32xf32>
    tpu.vector_store %arg13[%c9_36, %c0_37], %24 {strides = array<i32>} : memref<16x32xf32, #tpu.memory_space<vmem>>, vector<1x32xf32>,
    %c13 = arith.constant 13 : index
    %c0_38 = arith.constant 0 : index
    %26 = vector.load %arg1[%c13, %c0_38] : memref<16x32xf32, #tpu.memory_space<vmem>>, vector<1x32xf32>
    %c11_39 = arith.constant 11 : index
    %c0_40 = arith.constant 0 : index
    %27 = vector.load %arg13[%c11_39, %c0_40] : memref<16x32xf32, #tpu.memory_space<vmem>>, vector<1x32xf32>
    tpu.vector_store %arg13[%c11_39, %c0_40], %26 {strides = array<i32>} : memref<16x32xf32, #tpu.memory_space<vmem>>, vector<1x32xf32>,
    %c14_41 = arith.constant 14 : index
    %c0_42 = arith.constant 0 : index
    %28 = vector.load %arg1[%c14_41, %c0_42] : memref<16x32xf32, #tpu.memory_space<vmem>>, vector<1x32xf32>
    %c13_43 = arith.constant 13 : index
    %c0_44 = arith.constant 0 : index
    %29 = vector.load %arg13[%c13_43, %c0_44] : memref<16x32xf32, #tpu.memory_space<vmem>>, vector<1x32xf32>
    tpu.vector_store %arg13[%c13_43, %c0_44], %28 {strides = array<i32>} : memref<16x32xf32, #tpu.memory_space<vmem>>, vector<1x32xf32>,
    %c15 = arith.constant 15 : index
    %c0_45 = arith.constant 0 : index
    %30 = vector.load %arg1[%c15, %c0_45] : memref<16x32xf32, #tpu.memory_space<vmem>>, vector<1x32xf32>
    %c15_46 = arith.constant 15 : index
    %c0_47 = arith.constant 0 : index
    %31 = vector.load %arg13[%c15_46, %c0_47] : memref<16x32xf32, #tpu.memory_space<vmem>>, vector<1x32xf32>
    tpu.vector_store %arg13[%c15_46, %c0_47], %30 {strides = array<i32>} : memref<16x32xf32, #tpu.memory_space<vmem>>, vector<1x32xf32>,
    %32 = tpu.iota {dimensions = array<i32: 1>} : vector<2x128xi32>
    %c32_i32 = arith.constant 32 : i32
    %c0_i32 = arith.constant 0 : i32
    %33 = arith.cmpi eq, %c32_i32, %c0_i32 : i32
    %c1_i32 = arith.constant 1 : i32
    %34 = arith.select %33, %c1_i32, %c32_i32 : i32
    %35 = vector.broadcast %34 : i32 to vector<2x128xi32>
    %36 = arith.remsi %32, %35 : vector<2x128xi32>
    %c0_i32_48 = arith.constant 0 : i32
    %37 = vector.broadcast %c0_i32_48 : i32 to vector<2x128xi32>
    %38 = arith.cmpi ne, %36, %37 : vector<2x128xi32>
    %c0_i32_49 = arith.constant 0 : i32
    %39 = vector.broadcast %c0_i32_49 : i32 to vector<2x128xi32>
    %40 = arith.cmpi slt, %36, %39 : vector<2x128xi32>
    %c0_i32_50 = arith.constant 0 : i32
    %41 = arith.cmpi slt, %34, %c0_i32_50 : i32
    %42 = vector.broadcast %41 : i1 to vector<2x128xi1>
    %43 = vector.broadcast %42 : vector<2x128xi1> to vector<2x128xi1>
    %44 = arith.xori %40, %43 : vector<2x128xi1>
    %45 = arith.andi %44, %38 : vector<2x128xi1>
    %46 = vector.broadcast %34 : i32 to vector<2x128xi32>
    %47 = arith.addi %36, %46 : vector<2x128xi32>
    %48 = arith.select %45, %47, %36 : vector<2x128xi1>, vector<2x128xi32>
    %c16_i32 = arith.constant 16 : i32
    %49 = vector.broadcast %c16_i32 : i32 to vector<2x128xi32>
    %50 = arith.cmpi slt, %48, %49 : vector<2x128xi32>
    %c0_51 = arith.constant 0 : index
    %c0_52 = arith.constant 0 : index
    %51 = vector.load %arg13[%c0_51, %c0_52] : memref<16x32xf32, #tpu.memory_space<vmem>>, vector<16x32xf32>
    %c0_53 = arith.constant 0 : index
    %c0_54 = arith.constant 0 : index
    %52 = vector.load %arg4[%c0_53, %c0_54] : memref<32x128xf32, #tpu.memory_space<vmem>>, vector<32x128xf32>
    %cst = arith.constant dense<0.000000e+00> : vector<16x128xf32>
    %53 = tpu.matmul %51, %52, %cst {dimension_numbers = #tpu.dot_dimension_numbers<[1], [0], [0], [1], [0, 0, 1, 1], [], []>} : vector<16x32xf32>, vector<32x128xf32>, vector<16x128xf32> -> vector<16x128xf32>
    %c0_55 = arith.constant 0 : index
    %c0_56 = arith.constant 0 : index
    %54 = vector.load %arg6[%c0_55, %c0_56] : memref<1x128xf32, #tpu.memory_space<vmem>>, vector<1x128xf32>
    %55 = vector.broadcast %54 : vector<1x128xf32> to vector<16x128xf32>
    %56 = arith.addf %53, %55 : vector<16x128xf32>
    %c0_57 = arith.constant 0 : index
    %c0_58 = arith.constant 0 : index
    %57 = vector.load %arg14[%c0_57, %c0_58] : memref<16x128xf32, #tpu.memory_space<vmem>>, vector<16x128xf32>
    tpu.vector_store %arg14[%c0_57, %c0_58], %56 {strides = array<i32>} : memref<16x128xf32, #tpu.memory_space<vmem>>, vector<16x128xf32>,
    %c0_59 = arith.constant 0 : index
    %c0_60 = arith.constant 0 : index
    %58 = vector.load %arg14[%c0_59, %c0_60] : memref<16x128xf32, #tpu.memory_space<vmem>>, vector<2x128xf32>
    %c14_61 = arith.constant 14 : index
    %c0_62 = arith.constant 0 : index
    %59 = vector.load %arg14[%c14_61, %c0_62] : memref<16x128xf32, #tpu.memory_space<vmem>>, vector<2x128xf32>
    %60 = arith.select %50, %58, %59 : vector<2x128xi1>, vector<2x128xf32>
    %c0_63 = arith.constant 0 : index
    %c0_64 = arith.constant 0 : index
    %c0_65 = arith.constant 0 : index
    %61 = vector.load %arg15[%c0_63, %c0_64, %c0_65] : memref<8x2x128xf32, #tpu.memory_space<vmem>>, vector<1x2x128xf32>
    %62 = vector.shape_cast %61 : vector<1x2x128xf32> to vector<2x128xf32>
    %63 = vector.shape_cast %60 : vector<2x128xf32> to vector<1x2x128xf32>
    tpu.vector_store %arg15[%c0_63, %c0_64, %c0_65], %63 {strides = array<i32>} : memref<8x2x128xf32, #tpu.memory_space<vmem>>, vector<1x2x128xf32>,
    %c2_66 = arith.constant 2 : index
    %c0_67 = arith.constant 0 : index
    %64 = vector.load %arg14[%c2_66, %c0_67] : memref<16x128xf32, #tpu.memory_space<vmem>>, vector<2x128xf32>
    %c12_68 = arith.constant 12 : index
    %c0_69 = arith.constant 0 : index
    %65 = vector.load %arg14[%c12_68, %c0_69] : memref<16x128xf32, #tpu.memory_space<vmem>>, vector<2x128xf32>
    %66 = arith.select %50, %64, %65 : vector<2x128xi1>, vector<2x128xf32>
    %c1_70 = arith.constant 1 : index
    %c0_71 = arith.constant 0 : index
    %c0_72 = arith.constant 0 : index
    %67 = vector.load %arg15[%c1_70, %c0_71, %c0_72] : memref<8x2x128xf32, #tpu.memory_space<vmem>>, vector<1x2x128xf32>
    %68 = vector.shape_cast %67 : vector<1x2x128xf32> to vector<2x128xf32>
    %69 = vector.shape_cast %66 : vector<2x128xf32> to vector<1x2x128xf32>
    tpu.vector_store %arg15[%c1_70, %c0_71, %c0_72], %69 {strides = array<i32>} : memref<8x2x128xf32, #tpu.memory_space<vmem>>, vector<1x2x128xf32>,
    %c4_73 = arith.constant 4 : index
    %c0_74 = arith.constant 0 : index
    %70 = vector.load %arg14[%c4_73, %c0_74] : memref<16x128xf32, #tpu.memory_space<vmem>>, vector<2x128xf32>
    %c10_75 = arith.constant 10 : index
    %c0_76 = arith.constant 0 : index
    %71 = vector.load %arg14[%c10_75, %c0_76] : memref<16x128xf32, #tpu.memory_space<vmem>>, vector<2x128xf32>
    %72 = arith.select %50, %70, %71 : vector<2x128xi1>, vector<2x128xf32>
    %c2_77 = arith.constant 2 : index
    %c0_78 = arith.constant 0 : index
    %c0_79 = arith.constant 0 : index
    %73 = vector.load %arg15[%c2_77, %c0_78, %c0_79] : memref<8x2x128xf32, #tpu.memory_space<vmem>>, vector<1x2x128xf32>
    %74 = vector.shape_cast %73 : vector<1x2x128xf32> to vector<2x128xf32>
    %75 = vector.shape_cast %72 : vector<2x128xf32> to vector<1x2x128xf32>
    tpu.vector_store %arg15[%c2_77, %c0_78, %c0_79], %75 {strides = array<i32>} : memref<8x2x128xf32, #tpu.memory_space<vmem>>, vector<1x2x128xf32>,
    %c6_80 = arith.constant 6 : index
    %c0_81 = arith.constant 0 : index
    %76 = vector.load %arg14[%c6_80, %c0_81] : memref<16x128xf32, #tpu.memory_space<vmem>>, vector<2x128xf32>
    %c8_82 = arith.constant 8 : index
    %c0_83 = arith.constant 0 : index
    %77 = vector.load %arg14[%c8_82, %c0_83] : memref<16x128xf32, #tpu.memory_space<vmem>>, vector<2x128xf32>
    %78 = arith.select %50, %76, %77 : vector<2x128xi1>, vector<2x128xf32>
    %c3_84 = arith.constant 3 : index
    %c0_85 = arith.constant 0 : index
    %c0_86 = arith.constant 0 : index
    %79 = vector.load %arg15[%c3_84, %c0_85, %c0_86] : memref<8x2x128xf32, #tpu.memory_space<vmem>>, vector<1x2x128xf32>
    %80 = vector.shape_cast %79 : vector<1x2x128xf32> to vector<2x128xf32>
    %81 = vector.shape_cast %78 : vector<2x128xf32> to vector<1x2x128xf32>
    tpu.vector_store %arg15[%c3_84, %c0_85, %c0_86], %81 {strides = array<i32>} : memref<8x2x128xf32, #tpu.memory_space<vmem>>, vector<1x2x128xf32>,
    %c8_87 = arith.constant 8 : index
    %c0_88 = arith.constant 0 : index
    %82 = vector.load %arg14[%c8_87, %c0_88] : memref<16x128xf32, #tpu.memory_space<vmem>>, vector<2x128xf32>
    %c6_89 = arith.constant 6 : index
    %c0_90 = arith.constant 0 : index
    %83 = vector.load %arg14[%c6_89, %c0_90] : memref<16x128xf32, #tpu.memory_space<vmem>>, vector<2x128xf32>
    %84 = arith.select %50, %82, %83 : vector<2x128xi1>, vector<2x128xf32>
    %c4_91 = arith.constant 4 : index
    %c0_92 = arith.constant 0 : index
    %c0_93 = arith.constant 0 : index
    %85 = vector.load %arg15[%c4_91, %c0_92, %c0_93] : memref<8x2x128xf32, #tpu.memory_space<vmem>>, vector<1x2x128xf32>
    %86 = vector.shape_cast %85 : vector<1x2x128xf32> to vector<2x128xf32>
    %87 = vector.shape_cast %84 : vector<2x128xf32> to vector<1x2x128xf32>
    tpu.vector_store %arg15[%c4_91, %c0_92, %c0_93], %87 {strides = array<i32>} : memref<8x2x128xf32, #tpu.memory_space<vmem>>, vector<1x2x128xf32>,
    %c10_94 = arith.constant 10 : index
    %c0_95 = arith.constant 0 : index
    %88 = vector.load %arg14[%c10_94, %c0_95] : memref<16x128xf32, #tpu.memory_space<vmem>>, vector<2x128xf32>
    %c4_96 = arith.constant 4 : index
    %c0_97 = arith.constant 0 : index
    %89 = vector.load %arg14[%c4_96, %c0_97] : memref<16x128xf32, #tpu.memory_space<vmem>>, vector<2x128xf32>
    %90 = arith.select %50, %88, %89 : vector<2x128xi1>, vector<2x128xf32>
    %c5_98 = arith.constant 5 : index
    %c0_99 = arith.constant 0 : index
    %c0_100 = arith.constant 0 : index
    %91 = vector.load %arg15[%c5_98, %c0_99, %c0_100] : memref<8x2x128xf32, #tpu.memory_space<vmem>>, vector<1x2x128xf32>
    %92 = vector.shape_cast %91 : vector<1x2x128xf32> to vector<2x128xf32>
    %93 = vector.shape_cast %90 : vector<2x128xf32> to vector<1x2x128xf32>
    tpu.vector_store %arg15[%c5_98, %c0_99, %c0_100], %93 {strides = array<i32>} : memref<8x2x128xf32, #tpu.memory_space<vmem>>, vector<1x2x128xf32>,
    %c12_101 = arith.constant 12 : index
    %c0_102 = arith.constant 0 : index
    %94 = vector.load %arg14[%c12_101, %c0_102] : memref<16x128xf32, #tpu.memory_space<vmem>>, vector<2x128xf32>
    %c2_103 = arith.constant 2 : index
    %c0_104 = arith.constant 0 : index
    %95 = vector.load %arg14[%c2_103, %c0_104] : memref<16x128xf32, #tpu.memory_space<vmem>>, vector<2x128xf32>
    %96 = arith.select %50, %94, %95 : vector<2x128xi1>, vector<2x128xf32>
    %c6_105 = arith.constant 6 : index
    %c0_106 = arith.constant 0 : index
    %c0_107 = arith.constant 0 : index
    %97 = vector.load %arg15[%c6_105, %c0_106, %c0_107] : memref<8x2x128xf32, #tpu.memory_space<vmem>>, vector<1x2x128xf32>
    %98 = vector.shape_cast %97 : vector<1x2x128xf32> to vector<2x128xf32>
    %99 = vector.shape_cast %96 : vector<2x128xf32> to vector<1x2x128xf32>
    tpu.vector_store %arg15[%c6_105, %c0_106, %c0_107], %99 {strides = array<i32>} : memref<8x2x128xf32, #tpu.memory_space<vmem>>, vector<1x2x128xf32>,
    %c14_108 = arith.constant 14 : index
    %c0_109 = arith.constant 0 : index
    %100 = vector.load %arg14[%c14_108, %c0_109] : memref<16x128xf32, #tpu.memory_space<vmem>>, vector<2x128xf32>
    %c0_110 = arith.constant 0 : index
    %c0_111 = arith.constant 0 : index
    %101 = vector.load %arg14[%c0_110, %c0_111] : memref<16x128xf32, #tpu.memory_space<vmem>>, vector<2x128xf32>
    %102 = arith.select %50, %100, %101 : vector<2x128xi1>, vector<2x128xf32>
    %c7_112 = arith.constant 7 : index
    %c0_113 = arith.constant 0 : index
    %c0_114 = arith.constant 0 : index
    %103 = vector.load %arg15[%c7_112, %c0_113, %c0_114] : memref<8x2x128xf32, #tpu.memory_space<vmem>>, vector<1x2x128xf32>
    %104 = vector.shape_cast %103 : vector<1x2x128xf32> to vector<2x128xf32>
    %105 = vector.shape_cast %102 : vector<2x128xf32> to vector<1x2x128xf32>
    tpu.vector_store %arg15[%c7_112, %c0_113, %c0_114], %105 {strides = array<i32>} : memref<8x2x128xf32, #tpu.memory_space<vmem>>, vector<1x2x128xf32>,
    %c0_115 = arith.constant 0 : index
    %c0_116 = arith.constant 0 : index
    %106 = vector.load %arg5[%c0_115, %c0_116] : memref<32x128xf32, #tpu.memory_space<vmem>>, vector<32x128xf32>
    %c0_117 = arith.constant 0 : index
    %c0_118 = arith.constant 0 : index
    %c0_119 = arith.constant 0 : index
    %107 = vector.load %arg2[%c0_117, %c0_118, %c0_119] : memref<4x2x16xf32, #tpu.memory_space<vmem>>, vector<1x2x16xf32>
    %108 = vector.shape_cast %107 : vector<1x2x16xf32> to vector<2x16xf32>
    %c1_120 = arith.constant 1 : index
    %c0_121 = arith.constant 0 : index
    %c0_122 = arith.constant 0 : index
    %109 = vector.load %arg2[%c1_120, %c0_121, %c0_122] : memref<4x2x16xf32, #tpu.memory_space<vmem>>, vector<1x2x16xf32>
    %110 = vector.shape_cast %109 : vector<1x2x16xf32> to vector<2x16xf32>
    %111 = tpu.concatenate %108, %110 in 1 : vector<2x16xf32>, vector<2x16xf32> -> vector<2x32xf32>
    %c0_123 = arith.constant 0 : index
    %c0_124 = arith.constant 0 : index
    %c0_125 = arith.constant 0 : index
    %112 = vector.load %arg3[%c0_123, %c0_124, %c0_125] : memref<4x2x16xf32, #tpu.memory_space<vmem>>, vector<1x2x16xf32>
    %113 = vector.shape_cast %112 : vector<1x2x16xf32> to vector<2x16xf32>
    %c1_126 = arith.constant 1 : index
    %c0_127 = arith.constant 0 : index
    %c0_128 = arith.constant 0 : index
    %114 = vector.load %arg3[%c1_126, %c0_127, %c0_128] : memref<4x2x16xf32, #tpu.memory_space<vmem>>, vector<1x2x16xf32>
    %115 = vector.shape_cast %114 : vector<1x2x16xf32> to vector<2x16xf32>
    %116 = tpu.concatenate %113, %115 in 1 : vector<2x16xf32>, vector<2x16xf32> -> vector<2x32xf32>
    %c0_129 = arith.constant 0 : index
    %c0_130 = arith.constant 0 : index
    %c0_131 = arith.constant 0 : index
    %117 = vector.load %arg15[%c0_129, %c0_130, %c0_131] : memref<8x2x128xf32, #tpu.memory_space<vmem>>, vector<1x2x128xf32>
    %118 = vector.shape_cast %117 : vector<1x2x128xf32> to vector<2x128xf32>
    %cst_132 = arith.constant dense<0.000000e+00> : vector<2x128xf32>
    %119 = tpu.matmul %111, %106, %cst_132 {dimension_numbers = #tpu.dot_dimension_numbers<[1], [0], [0], [1], [0, 0, 1, 1], [], []>} : vector<2x32xf32>, vector<32x128xf32>, vector<2x128xf32> -> vector<2x128xf32>
    %120 = arith.addf %118, %119 : vector<2x128xf32>
    %121 = arith.negf %120 : vector<2x128xf32>
    %122 = math.exp %121 : vector<2x128xf32>
    %cst_133 = arith.constant 1.000000e+00 : f32
    %123 = vector.broadcast %cst_133 : f32 to vector<2x128xf32>
    %124 = arith.addf %123, %122 : vector<2x128xf32>
    %125 = arith.divf %123, %124 : vector<2x128xf32>
    %126 = vector.extract_strided_slice %125 {offsets = [0, 0], sizes = [2, 32], strides = [1, 1]} : vector<2x128xf32> to vector<2x32xf32>
    %127 = vector.extract_strided_slice %125 {offsets = [0, 32], sizes = [2, 32], strides = [1, 1]} : vector<2x128xf32> to vector<2x32xf32>
    %128 = vector.extract_strided_slice %125 {offsets = [0, 96], sizes = [2, 32], strides = [1, 1]} : vector<2x128xf32> to vector<2x32xf32>
    %129 = vector.extract_strided_slice %120 {offsets = [0, 64], sizes = [2, 32], strides = [1, 1]} : vector<2x128xf32> to vector<2x32xf32>
    %130 = math.tanh %129 : vector<2x32xf32>
    %131 = arith.mulf %127, %116 : vector<2x32xf32>
    %132 = arith.mulf %126, %130 : vector<2x32xf32>
    %133 = arith.addf %131, %132 : vector<2x32xf32>
    %134 = math.tanh %133 : vector<2x32xf32>
    %135 = arith.mulf %128, %134 : vector<2x32xf32>
    %136 = vector.extract_strided_slice %135 {offsets = [0, 0], sizes = [2, 16], strides = [1, 1]} : vector<2x32xf32> to vector<2x16xf32>
    %c0_134 = arith.constant 0 : index
    %c0_135 = arith.constant 0 : index
    %137 = vector.load %arg16[%c0_134, %c0_135] : memref<16x32xf32, #tpu.memory_space<vmem>>, vector<2x16xf32>
    tpu.vector_store %arg16[%c0_134, %c0_135], %136 {strides = array<i32>} : memref<16x32xf32, #tpu.memory_space<vmem>>, vector<2x16xf32>,
    %138 = vector.extract_strided_slice %135 {offsets = [0, 16], sizes = [2, 16], strides = [1, 1]} : vector<2x32xf32> to vector<2x16xf32>
    %c14_136 = arith.constant 14 : index
    %c16 = arith.constant 16 : index
    %139 = vector.load %arg16[%c14_136, %c16] : memref<16x32xf32, #tpu.memory_space<vmem>>, vector<2x16xf32>
    tpu.vector_store %arg16[%c14_136, %c16], %138 {strides = array<i32>} : memref<16x32xf32, #tpu.memory_space<vmem>>, vector<2x16xf32>,
    %c1_137 = arith.constant 1 : index
    %c0_138 = arith.constant 0 : index
    %c0_139 = arith.constant 0 : index
    %140 = vector.load %arg15[%c1_137, %c0_138, %c0_139] : memref<8x2x128xf32, #tpu.memory_space<vmem>>, vector<1x2x128xf32>
    %141 = vector.shape_cast %140 : vector<1x2x128xf32> to vector<2x128xf32>
    %cst_140 = arith.constant dense<0.000000e+00> : vector<2x128xf32>
    %142 = tpu.matmul %135, %106, %cst_140 {dimension_numbers = #tpu.dot_dimension_numbers<[1], [0], [0], [1], [0, 0, 1, 1], [], []>} : vector<2x32xf32>, vector<32x128xf32>, vector<2x128xf32> -> vector<2x128xf32>
    %143 = arith.addf %141, %142 : vector<2x128xf32>
    %144 = arith.negf %143 : vector<2x128xf32>
    %145 = math.exp %144 : vector<2x128xf32>
    %cst_141 = arith.constant 1.000000e+00 : f32
    %146 = vector.broadcast %cst_141 : f32 to vector<2x128xf32>
    %147 = arith.addf %146, %145 : vector<2x128xf32>
    %148 = arith.divf %146, %147 : vector<2x128xf32>
    %149 = vector.extract_strided_slice %148 {offsets = [0, 0], sizes = [2, 32], strides = [1, 1]} : vector<2x128xf32> to vector<2x32xf32>
    %150 = vector.extract_strided_slice %148 {offsets = [0, 32], sizes = [2, 32], strides = [1, 1]} : vector<2x128xf32> to vector<2x32xf32>
    %151 = vector.extract_strided_slice %148 {offsets = [0, 96], sizes = [2, 32], strides = [1, 1]} : vector<2x128xf32> to vector<2x32xf32>
    %152 = vector.extract_strided_slice %143 {offsets = [0, 64], sizes = [2, 32], strides = [1, 1]} : vector<2x128xf32> to vector<2x32xf32>
    %153 = math.tanh %152 : vector<2x32xf32>
    %154 = arith.mulf %150, %133 : vector<2x32xf32>
    %155 = arith.mulf %149, %153 : vector<2x32xf32>
    %156 = arith.addf %154, %155 : vector<2x32xf32>
    %157 = math.tanh %156 : vector<2x32xf32>
    %158 = arith.mulf %151, %157 : vector<2x32xf32>
    %159 = vector.extract_strided_slice %158 {offsets = [0, 0], sizes = [2, 16], strides = [1, 1]} : vector<2x32xf32> to vector<2x16xf32>
    %c2_142 = arith.constant 2 : index
    %c0_143 = arith.constant 0 : index
    %160 = vector.load %arg16[%c2_142, %c0_143] : memref<16x32xf32, #tpu.memory_space<vmem>>, vector<2x16xf32>
    tpu.vector_store %arg16[%c2_142, %c0_143], %159 {strides = array<i32>} : memref<16x32xf32, #tpu.memory_space<vmem>>, vector<2x16xf32>,
    %161 = vector.extract_strided_slice %158 {offsets = [0, 16], sizes = [2, 16], strides = [1, 1]} : vector<2x32xf32> to vector<2x16xf32>
    %c12_144 = arith.constant 12 : index
    %c16_145 = arith.constant 16 : index
    %162 = vector.load %arg16[%c12_144, %c16_145] : memref<16x32xf32, #tpu.memory_space<vmem>>, vector<2x16xf32>
    tpu.vector_store %arg16[%c12_144, %c16_145], %161 {strides = array<i32>} : memref<16x32xf32, #tpu.memory_space<vmem>>, vector<2x16xf32>,
    %c2_146 = arith.constant 2 : index
    %c0_147 = arith.constant 0 : index
    %c0_148 = arith.constant 0 : index
    %163 = vector.load %arg15[%c2_146, %c0_147, %c0_148] : memref<8x2x128xf32, #tpu.memory_space<vmem>>, vector<1x2x128xf32>
    %164 = vector.shape_cast %163 : vector<1x2x128xf32> to vector<2x128xf32>
    %cst_149 = arith.constant dense<0.000000e+00> : vector<2x128xf32>
    %165 = tpu.matmul %158, %106, %cst_149 {dimension_numbers = #tpu.dot_dimension_numbers<[1], [0], [0], [1], [0, 0, 1, 1], [], []>} : vector<2x32xf32>, vector<32x128xf32>, vector<2x128xf32> -> vector<2x128xf32>
    %166 = arith.addf %164, %165 : vector<2x128xf32>
    %167 = arith.negf %166 : vector<2x128xf32>
    %168 = math.exp %167 : vector<2x128xf32>
    %cst_150 = arith.constant 1.000000e+00 : f32
    %169 = vector.broadcast %cst_150 : f32 to vector<2x128xf32>
    %170 = arith.addf %169, %168 : vector<2x128xf32>
    %171 = arith.divf %169, %170 : vector<2x128xf32>
    %172 = vector.extract_strided_slice %171 {offsets = [0, 0], sizes = [2, 32], strides = [1, 1]} : vector<2x128xf32> to vector<2x32xf32>
    %173 = vector.extract_strided_slice %171 {offsets = [0, 32], sizes = [2, 32], strides = [1, 1]} : vector<2x128xf32> to vector<2x32xf32>
    %174 = vector.extract_strided_slice %171 {offsets = [0, 96], sizes = [2, 32], strides = [1, 1]} : vector<2x128xf32> to vector<2x32xf32>
    %175 = vector.extract_strided_slice %166 {offsets = [0, 64], sizes = [2, 32], strides = [1, 1]} : vector<2x128xf32> to vector<2x32xf32>
    %176 = math.tanh %175 : vector<2x32xf32>
    %177 = arith.mulf %173, %156 : vector<2x32xf32>
    %178 = arith.mulf %172, %176 : vector<2x32xf32>
    %179 = arith.addf %177, %178 : vector<2x32xf32>
    %180 = math.tanh %179 : vector<2x32xf32>
    %181 = arith.mulf %174, %180 : vector<2x32xf32>
    %182 = vector.extract_strided_slice %181 {offsets = [0, 0], sizes = [2, 16], strides = [1, 1]} : vector<2x32xf32> to vector<2x16xf32>
    %c4_151 = arith.constant 4 : index
    %c0_152 = arith.constant 0 : index
    %183 = vector.load %arg16[%c4_151, %c0_152] : memref<16x32xf32, #tpu.memory_space<vmem>>, vector<2x16xf32>
    tpu.vector_store %arg16[%c4_151, %c0_152], %182 {strides = array<i32>} : memref<16x32xf32, #tpu.memory_space<vmem>>, vector<2x16xf32>,
    %184 = vector.extract_strided_slice %181 {offsets = [0, 16], sizes = [2, 16], strides = [1, 1]} : vector<2x32xf32> to vector<2x16xf32>
    %c10_153 = arith.constant 10 : index
    %c16_154 = arith.constant 16 : index
    %185 = vector.load %arg16[%c10_153, %c16_154] : memref<16x32xf32, #tpu.memory_space<vmem>>, vector<2x16xf32>
    tpu.vector_store %arg16[%c10_153, %c16_154], %184 {strides = array<i32>} : memref<16x32xf32, #tpu.memory_space<vmem>>, vector<2x16xf32>,
    %c3_155 = arith.constant 3 : index
    %c0_156 = arith.constant 0 : index
    %c0_157 = arith.constant 0 : index
    %186 = vector.load %arg15[%c3_155, %c0_156, %c0_157] : memref<8x2x128xf32, #tpu.memory_space<vmem>>, vector<1x2x128xf32>
    %187 = vector.shape_cast %186 : vector<1x2x128xf32> to vector<2x128xf32>
    %cst_158 = arith.constant dense<0.000000e+00> : vector<2x128xf32>
    %188 = tpu.matmul %181, %106, %cst_158 {dimension_numbers = #tpu.dot_dimension_numbers<[1], [0], [0], [1], [0, 0, 1, 1], [], []>} : vector<2x32xf32>, vector<32x128xf32>, vector<2x128xf32> -> vector<2x128xf32>
    %189 = arith.addf %187, %188 : vector<2x128xf32>
    %190 = arith.negf %189 : vector<2x128xf32>
    %191 = math.exp %190 : vector<2x128xf32>
    %cst_159 = arith.constant 1.000000e+00 : f32
    %192 = vector.broadcast %cst_159 : f32 to vector<2x128xf32>
    %193 = arith.addf %192, %191 : vector<2x128xf32>
    %194 = arith.divf %192, %193 : vector<2x128xf32>
    %195 = vector.extract_strided_slice %194 {offsets = [0, 0], sizes = [2, 32], strides = [1, 1]} : vector<2x128xf32> to vector<2x32xf32>
    %196 = vector.extract_strided_slice %194 {offsets = [0, 32], sizes = [2, 32], strides = [1, 1]} : vector<2x128xf32> to vector<2x32xf32>
    %197 = vector.extract_strided_slice %194 {offsets = [0, 96], sizes = [2, 32], strides = [1, 1]} : vector<2x128xf32> to vector<2x32xf32>
    %198 = vector.extract_strided_slice %189 {offsets = [0, 64], sizes = [2, 32], strides = [1, 1]} : vector<2x128xf32> to vector<2x32xf32>
    %199 = math.tanh %198 : vector<2x32xf32>
    %200 = arith.mulf %196, %179 : vector<2x32xf32>
    %201 = arith.mulf %195, %199 : vector<2x32xf32>
    %202 = arith.addf %200, %201 : vector<2x32xf32>
    %203 = math.tanh %202 : vector<2x32xf32>
    %204 = arith.mulf %197, %203 : vector<2x32xf32>
    %205 = vector.extract_strided_slice %204 {offsets = [0, 0], sizes = [2, 16], strides = [1, 1]} : vector<2x32xf32> to vector<2x16xf32>
    %c6_160 = arith.constant 6 : index
    %c0_161 = arith.constant 0 : index
    %206 = vector.load %arg16[%c6_160, %c0_161] : memref<16x32xf32, #tpu.memory_space<vmem>>, vector<2x16xf32>
    tpu.vector_store %arg16[%c6_160, %c0_161], %205 {strides = array<i32>} : memref<16x32xf32, #tpu.memory_space<vmem>>, vector<2x16xf32>,
    %207 = vector.extract_strided_slice %204 {offsets = [0, 16], sizes = [2, 16], strides = [1, 1]} : vector<2x32xf32> to vector<2x16xf32>
    %c8_162 = arith.constant 8 : index
    %c16_163 = arith.constant 16 : index
    %208 = vector.load %arg16[%c8_162, %c16_163] : memref<16x32xf32, #tpu.memory_space<vmem>>, vector<2x16xf32>
    tpu.vector_store %arg16[%c8_162, %c16_163], %207 {strides = array<i32>} : memref<16x32xf32, #tpu.memory_space<vmem>>, vector<2x16xf32>,
    %c4_164 = arith.constant 4 : index
    %c0_165 = arith.constant 0 : index
    %c0_166 = arith.constant 0 : index
    %209 = vector.load %arg15[%c4_164, %c0_165, %c0_166] : memref<8x2x128xf32, #tpu.memory_space<vmem>>, vector<1x2x128xf32>
    %210 = vector.shape_cast %209 : vector<1x2x128xf32> to vector<2x128xf32>
    %cst_167 = arith.constant dense<0.000000e+00> : vector<2x128xf32>
    %211 = tpu.matmul %204, %106, %cst_167 {dimension_numbers = #tpu.dot_dimension_numbers<[1], [0], [0], [1], [0, 0, 1, 1], [], []>} : vector<2x32xf32>, vector<32x128xf32>, vector<2x128xf32> -> vector<2x128xf32>
    %212 = arith.addf %210, %211 : vector<2x128xf32>
    %213 = arith.negf %212 : vector<2x128xf32>
    %214 = math.exp %213 : vector<2x128xf32>
    %cst_168 = arith.constant 1.000000e+00 : f32
    %215 = vector.broadcast %cst_168 : f32 to vector<2x128xf32>
    %216 = arith.addf %215, %214 : vector<2x128xf32>
    %217 = arith.divf %215, %216 : vector<2x128xf32>
    %218 = vector.extract_strided_slice %217 {offsets = [0, 0], sizes = [2, 32], strides = [1, 1]} : vector<2x128xf32> to vector<2x32xf32>
    %219 = vector.extract_strided_slice %217 {offsets = [0, 32], sizes = [2, 32], strides = [1, 1]} : vector<2x128xf32> to vector<2x32xf32>
    %220 = vector.extract_strided_slice %217 {offsets = [0, 96], sizes = [2, 32], strides = [1, 1]} : vector<2x128xf32> to vector<2x32xf32>
    %221 = vector.extract_strided_slice %212 {offsets = [0, 64], sizes = [2, 32], strides = [1, 1]} : vector<2x128xf32> to vector<2x32xf32>
    %222 = math.tanh %221 : vector<2x32xf32>
    %223 = arith.mulf %219, %202 : vector<2x32xf32>
    %224 = arith.mulf %218, %222 : vector<2x32xf32>
    %225 = arith.addf %223, %224 : vector<2x32xf32>
    %226 = math.tanh %225 : vector<2x32xf32>
    %227 = arith.mulf %220, %226 : vector<2x32xf32>
    %228 = vector.extract_strided_slice %227 {offsets = [0, 0], sizes = [2, 16], strides = [1, 1]} : vector<2x32xf32> to vector<2x16xf32>
    %c8_169 = arith.constant 8 : index
    %c0_170 = arith.constant 0 : index
    %229 = vector.load %arg16[%c8_169, %c0_170] : memref<16x32xf32, #tpu.memory_space<vmem>>, vector<2x16xf32>
    tpu.vector_store %arg16[%c8_169, %c0_170], %228 {strides = array<i32>} : memref<16x32xf32, #tpu.memory_space<vmem>>, vector<2x16xf32>,
    %230 = vector.extract_strided_slice %227 {offsets = [0, 16], sizes = [2, 16], strides = [1, 1]} : vector<2x32xf32> to vector<2x16xf32>
    %c6_171 = arith.constant 6 : index
    %c16_172 = arith.constant 16 : index
    %231 = vector.load %arg16[%c6_171, %c16_172] : memref<16x32xf32, #tpu.memory_space<vmem>>, vector<2x16xf32>
    tpu.vector_store %arg16[%c6_171, %c16_172], %230 {strides = array<i32>} : memref<16x32xf32, #tpu.memory_space<vmem>>, vector<2x16xf32>,
    %c5_173 = arith.constant 5 : index
    %c0_174 = arith.constant 0 : index
    %c0_175 = arith.constant 0 : index
    %232 = vector.load %arg15[%c5_173, %c0_174, %c0_175] : memref<8x2x128xf32, #tpu.memory_space<vmem>>, vector<1x2x128xf32>
    %233 = vector.shape_cast %232 : vector<1x2x128xf32> to vector<2x128xf32>
    %cst_176 = arith.constant dense<0.000000e+00> : vector<2x128xf32>
    %234 = tpu.matmul %227, %106, %cst_176 {dimension_numbers = #tpu.dot_dimension_numbers<[1], [0], [0], [1], [0, 0, 1, 1], [], []>} : vector<2x32xf32>, vector<32x128xf32>, vector<2x128xf32> -> vector<2x128xf32>
    %235 = arith.addf %233, %234 : vector<2x128xf32>
    %236 = arith.negf %235 : vector<2x128xf32>
    %237 = math.exp %236 : vector<2x128xf32>
    %cst_177 = arith.constant 1.000000e+00 : f32
    %238 = vector.broadcast %cst_177 : f32 to vector<2x128xf32>
    %239 = arith.addf %238, %237 : vector<2x128xf32>
    %240 = arith.divf %238, %239 : vector<2x128xf32>
    %241 = vector.extract_strided_slice %240 {offsets = [0, 0], sizes = [2, 32], strides = [1, 1]} : vector<2x128xf32> to vector<2x32xf32>
    %242 = vector.extract_strided_slice %240 {offsets = [0, 32], sizes = [2, 32], strides = [1, 1]} : vector<2x128xf32> to vector<2x32xf32>
    %243 = vector.extract_strided_slice %240 {offsets = [0, 96], sizes = [2, 32], strides = [1, 1]} : vector<2x128xf32> to vector<2x32xf32>
    %244 = vector.extract_strided_slice %235 {offsets = [0, 64], sizes = [2, 32], strides = [1, 1]} : vector<2x128xf32> to vector<2x32xf32>
    %245 = math.tanh %244 : vector<2x32xf32>
    %246 = arith.mulf %242, %225 : vector<2x32xf32>
    %247 = arith.mulf %241, %245 : vector<2x32xf32>
    %248 = arith.addf %246, %247 : vector<2x32xf32>
    %249 = math.tanh %248 : vector<2x32xf32>
    %250 = arith.mulf %243, %249 : vector<2x32xf32>
    %251 = vector.extract_strided_slice %250 {offsets = [0, 0], sizes = [2, 16], strides = [1, 1]} : vector<2x32xf32> to vector<2x16xf32>
    %c10_178 = arith.constant 10 : index
    %c0_179 = arith.constant 0 : index
    %252 = vector.load %arg16[%c10_178, %c0_179] : memref<16x32xf32, #tpu.memory_space<vmem>>, vector<2x16xf32>
    tpu.vector_store %arg16[%c10_178, %c0_179], %251 {strides = array<i32>} : memref<16x32xf32, #tpu.memory_space<vmem>>, vector<2x16xf32>,
    %253 = vector.extract_strided_slice %250 {offsets = [0, 16], sizes = [2, 16], strides = [1, 1]} : vector<2x32xf32> to vector<2x16xf32>
    %c4_180 = arith.constant 4 : index
    %c16_181 = arith.constant 16 : index
    %254 = vector.load %arg16[%c4_180, %c16_181] : memref<16x32xf32, #tpu.memory_space<vmem>>, vector<2x16xf32>
    tpu.vector_store %arg16[%c4_180, %c16_181], %253 {strides = array<i32>} : memref<16x32xf32, #tpu.memory_space<vmem>>, vector<2x16xf32>,
    %c6_182 = arith.constant 6 : index
    %c0_183 = arith.constant 0 : index
    %c0_184 = arith.constant 0 : index
    %255 = vector.load %arg15[%c6_182, %c0_183, %c0_184] : memref<8x2x128xf32, #tpu.memory_space<vmem>>, vector<1x2x128xf32>
    %256 = vector.shape_cast %255 : vector<1x2x128xf32> to vector<2x128xf32>
    %cst_185 = arith.constant dense<0.000000e+00> : vector<2x128xf32>
    %257 = tpu.matmul %250, %106, %cst_185 {dimension_numbers = #tpu.dot_dimension_numbers<[1], [0], [0], [1], [0, 0, 1, 1], [], []>} : vector<2x32xf32>, vector<32x128xf32>, vector<2x128xf32> -> vector<2x128xf32>
    %258 = arith.addf %256, %257 : vector<2x128xf32>
    %259 = arith.negf %258 : vector<2x128xf32>
    %260 = math.exp %259 : vector<2x128xf32>
    %cst_186 = arith.constant 1.000000e+00 : f32
    %261 = vector.broadcast %cst_186 : f32 to vector<2x128xf32>
    %262 = arith.addf %261, %260 : vector<2x128xf32>
    %263 = arith.divf %261, %262 : vector<2x128xf32>
    %264 = vector.extract_strided_slice %263 {offsets = [0, 0], sizes = [2, 32], strides = [1, 1]} : vector<2x128xf32> to vector<2x32xf32>
    %265 = vector.extract_strided_slice %263 {offsets = [0, 32], sizes = [2, 32], strides = [1, 1]} : vector<2x128xf32> to vector<2x32xf32>
    %266 = vector.extract_strided_slice %263 {offsets = [0, 96], sizes = [2, 32], strides = [1, 1]} : vector<2x128xf32> to vector<2x32xf32>
    %267 = vector.extract_strided_slice %258 {offsets = [0, 64], sizes = [2, 32], strides = [1, 1]} : vector<2x128xf32> to vector<2x32xf32>
    %268 = math.tanh %267 : vector<2x32xf32>
    %269 = arith.mulf %265, %248 : vector<2x32xf32>
    %270 = arith.mulf %264, %268 : vector<2x32xf32>
    %271 = arith.addf %269, %270 : vector<2x32xf32>
    %272 = math.tanh %271 : vector<2x32xf32>
    %273 = arith.mulf %266, %272 : vector<2x32xf32>
    %274 = vector.extract_strided_slice %273 {offsets = [0, 0], sizes = [2, 16], strides = [1, 1]} : vector<2x32xf32> to vector<2x16xf32>
    %c12_187 = arith.constant 12 : index
    %c0_188 = arith.constant 0 : index
    %275 = vector.load %arg16[%c12_187, %c0_188] : memref<16x32xf32, #tpu.memory_space<vmem>>, vector<2x16xf32>
    tpu.vector_store %arg16[%c12_187, %c0_188], %274 {strides = array<i32>} : memref<16x32xf32, #tpu.memory_space<vmem>>, vector<2x16xf32>,
    %276 = vector.extract_strided_slice %273 {offsets = [0, 16], sizes = [2, 16], strides = [1, 1]} : vector<2x32xf32> to vector<2x16xf32>
    %c2_189 = arith.constant 2 : index
    %c16_190 = arith.constant 16 : index
    %277 = vector.load %arg16[%c2_189, %c16_190] : memref<16x32xf32, #tpu.memory_space<vmem>>, vector<2x16xf32>
    tpu.vector_store %arg16[%c2_189, %c16_190], %276 {strides = array<i32>} : memref<16x32xf32, #tpu.memory_space<vmem>>, vector<2x16xf32>,
    %c7_191 = arith.constant 7 : index
    %c0_192 = arith.constant 0 : index
    %c0_193 = arith.constant 0 : index
    %278 = vector.load %arg15[%c7_191, %c0_192, %c0_193] : memref<8x2x128xf32, #tpu.memory_space<vmem>>, vector<1x2x128xf32>
    %279 = vector.shape_cast %278 : vector<1x2x128xf32> to vector<2x128xf32>
    %cst_194 = arith.constant dense<0.000000e+00> : vector<2x128xf32>
    %280 = tpu.matmul %273, %106, %cst_194 {dimension_numbers = #tpu.dot_dimension_numbers<[1], [0], [0], [1], [0, 0, 1, 1], [], []>} : vector<2x32xf32>, vector<32x128xf32>, vector<2x128xf32> -> vector<2x128xf32>
    %281 = arith.addf %279, %280 : vector<2x128xf32>
    %282 = arith.negf %281 : vector<2x128xf32>
    %283 = math.exp %282 : vector<2x128xf32>
    %cst_195 = arith.constant 1.000000e+00 : f32
    %284 = vector.broadcast %cst_195 : f32 to vector<2x128xf32>
    %285 = arith.addf %284, %283 : vector<2x128xf32>
    %286 = arith.divf %284, %285 : vector<2x128xf32>
    %287 = vector.extract_strided_slice %286 {offsets = [0, 0], sizes = [2, 32], strides = [1, 1]} : vector<2x128xf32> to vector<2x32xf32>
    %288 = vector.extract_strided_slice %286 {offsets = [0, 32], sizes = [2, 32], strides = [1, 1]} : vector<2x128xf32> to vector<2x32xf32>
    %289 = vector.extract_strided_slice %286 {offsets = [0, 96], sizes = [2, 32], strides = [1, 1]} : vector<2x128xf32> to vector<2x32xf32>
    %290 = vector.extract_strided_slice %281 {offsets = [0, 64], sizes = [2, 32], strides = [1, 1]} : vector<2x128xf32> to vector<2x32xf32>
    %291 = math.tanh %290 : vector<2x32xf32>
    %292 = arith.mulf %288, %271 : vector<2x32xf32>
    %293 = arith.mulf %287, %291 : vector<2x32xf32>
    %294 = arith.addf %292, %293 : vector<2x32xf32>
    %295 = math.tanh %294 : vector<2x32xf32>
    %296 = arith.mulf %289, %295 : vector<2x32xf32>
    %297 = vector.extract_strided_slice %296 {offsets = [0, 0], sizes = [2, 16], strides = [1, 1]} : vector<2x32xf32> to vector<2x16xf32>
    %c14_196 = arith.constant 14 : index
    %c0_197 = arith.constant 0 : index
    %298 = vector.load %arg16[%c14_196, %c0_197] : memref<16x32xf32, #tpu.memory_space<vmem>>, vector<2x16xf32>
    tpu.vector_store %arg16[%c14_196, %c0_197], %297 {strides = array<i32>} : memref<16x32xf32, #tpu.memory_space<vmem>>, vector<2x16xf32>,
    %299 = vector.extract_strided_slice %296 {offsets = [0, 16], sizes = [2, 16], strides = [1, 1]} : vector<2x32xf32> to vector<2x16xf32>
    %c0_198 = arith.constant 0 : index
    %c16_199 = arith.constant 16 : index
    %300 = vector.load %arg16[%c0_198, %c16_199] : memref<16x32xf32, #tpu.memory_space<vmem>>, vector<2x16xf32>
    tpu.vector_store %arg16[%c0_198, %c16_199], %299 {strides = array<i32>} : memref<16x32xf32, #tpu.memory_space<vmem>>, vector<2x16xf32>,
    %301 = vector.extract_strided_slice %296 {offsets = [0, 0], sizes = [2, 16], strides = [1, 1]} : vector<2x32xf32> to vector<2x16xf32>
    %c0_200 = arith.constant 0 : index
    %c0_201 = arith.constant 0 : index
    %c0_202 = arith.constant 0 : index
    %302 = vector.load %arg11[%c0_200, %c0_201, %c0_202] : memref<4x2x16xf32, #tpu.memory_space<vmem>>, vector<1x2x16xf32>
    %303 = vector.shape_cast %302 : vector<1x2x16xf32> to vector<2x16xf32>
    %304 = vector.shape_cast %301 : vector<2x16xf32> to vector<1x2x16xf32>
    tpu.vector_store %arg11[%c0_200, %c0_201, %c0_202], %304 {strides = array<i32>} : memref<4x2x16xf32, #tpu.memory_space<vmem>>, vector<1x2x16xf32>,
    %305 = vector.extract_strided_slice %294 {offsets = [0, 0], sizes = [2, 16], strides = [1, 1]} : vector<2x32xf32> to vector<2x16xf32>
    %c0_203 = arith.constant 0 : index
    %c0_204 = arith.constant 0 : index
    %c0_205 = arith.constant 0 : index
    %306 = vector.load %arg12[%c0_203, %c0_204, %c0_205] : memref<4x2x16xf32, #tpu.memory_space<vmem>>, vector<1x2x16xf32>
    %307 = vector.shape_cast %306 : vector<1x2x16xf32> to vector<2x16xf32>
    %308 = vector.shape_cast %305 : vector<2x16xf32> to vector<1x2x16xf32>
    tpu.vector_store %arg12[%c0_203, %c0_204, %c0_205], %308 {strides = array<i32>} : memref<4x2x16xf32, #tpu.memory_space<vmem>>, vector<1x2x16xf32>,
    %309 = vector.extract_strided_slice %296 {offsets = [0, 16], sizes = [2, 16], strides = [1, 1]} : vector<2x32xf32> to vector<2x16xf32>
    %c1_206 = arith.constant 1 : index
    %c0_207 = arith.constant 0 : index
    %c0_208 = arith.constant 0 : index
    %310 = vector.load %arg11[%c1_206, %c0_207, %c0_208] : memref<4x2x16xf32, #tpu.memory_space<vmem>>, vector<1x2x16xf32>
    %311 = vector.shape_cast %310 : vector<1x2x16xf32> to vector<2x16xf32>
    %312 = vector.shape_cast %309 : vector<2x16xf32> to vector<1x2x16xf32>
    tpu.vector_store %arg11[%c1_206, %c0_207, %c0_208], %312 {strides = array<i32>} : memref<4x2x16xf32, #tpu.memory_space<vmem>>, vector<1x2x16xf32>,
    %313 = vector.extract_strided_slice %294 {offsets = [0, 16], sizes = [2, 16], strides = [1, 1]} : vector<2x32xf32> to vector<2x16xf32>
    %c1_209 = arith.constant 1 : index
    %c0_210 = arith.constant 0 : index
    %c0_211 = arith.constant 0 : index
    %314 = vector.load %arg12[%c1_209, %c0_210, %c0_211] : memref<4x2x16xf32, #tpu.memory_space<vmem>>, vector<1x2x16xf32>
    %315 = vector.shape_cast %314 : vector<1x2x16xf32> to vector<2x16xf32>
    %316 = vector.shape_cast %313 : vector<2x16xf32> to vector<1x2x16xf32>
    tpu.vector_store %arg12[%c1_209, %c0_210, %c0_211], %316 {strides = array<i32>} : memref<4x2x16xf32, #tpu.memory_space<vmem>>, vector<1x2x16xf32>,
    %c0_212 = arith.constant 0 : index
    %c0_213 = arith.constant 0 : index
    %317 = vector.load %arg16[%c0_212, %c0_213] : memref<16x32xf32, #tpu.memory_space<vmem>>, vector<16x32xf32>
    %c0_214 = arith.constant 0 : index
    %c0_215 = arith.constant 0 : index
    %318 = vector.load %arg7[%c0_214, %c0_215] : memref<32x128xf32, #tpu.memory_space<vmem>>, vector<32x128xf32>
    %cst_216 = arith.constant dense<0.000000e+00> : vector<16x128xf32>
    %319 = tpu.matmul %317, %318, %cst_216 {dimension_numbers = #tpu.dot_dimension_numbers<[1], [0], [0], [1], [0, 0, 1, 1], [], []>} : vector<16x32xf32>, vector<32x128xf32>, vector<16x128xf32> -> vector<16x128xf32>
    %c0_217 = arith.constant 0 : index
    %c0_218 = arith.constant 0 : index
    %320 = vector.load %arg9[%c0_217, %c0_218] : memref<1x128xf32, #tpu.memory_space<vmem>>, vector<1x128xf32>
    %321 = vector.broadcast %320 : vector<1x128xf32> to vector<16x128xf32>
    %322 = arith.addf %319, %321 : vector<16x128xf32>
    %c0_219 = arith.constant 0 : index
    %c0_220 = arith.constant 0 : index
    %323 = vector.load %arg14[%c0_219, %c0_220] : memref<16x128xf32, #tpu.memory_space<vmem>>, vector<16x128xf32>
    tpu.vector_store %arg14[%c0_219, %c0_220], %322 {strides = array<i32>} : memref<16x128xf32, #tpu.memory_space<vmem>>, vector<16x128xf32>,
    %c0_221 = arith.constant 0 : index
    %c0_222 = arith.constant 0 : index
    %324 = vector.load %arg14[%c0_221, %c0_222] : memref<16x128xf32, #tpu.memory_space<vmem>>, vector<2x128xf32>
    %c14_223 = arith.constant 14 : index
    %c0_224 = arith.constant 0 : index
    %325 = vector.load %arg14[%c14_223, %c0_224] : memref<16x128xf32, #tpu.memory_space<vmem>>, vector<2x128xf32>
    %326 = arith.select %50, %324, %325 : vector<2x128xi1>, vector<2x128xf32>
    %c0_225 = arith.constant 0 : index
    %c0_226 = arith.constant 0 : index
    %c0_227 = arith.constant 0 : index
    %327 = vector.load %arg15[%c0_225, %c0_226, %c0_227] : memref<8x2x128xf32, #tpu.memory_space<vmem>>, vector<1x2x128xf32>
    %328 = vector.shape_cast %327 : vector<1x2x128xf32> to vector<2x128xf32>
    %329 = vector.shape_cast %326 : vector<2x128xf32> to vector<1x2x128xf32>
    tpu.vector_store %arg15[%c0_225, %c0_226, %c0_227], %329 {strides = array<i32>} : memref<8x2x128xf32, #tpu.memory_space<vmem>>, vector<1x2x128xf32>,
    %c2_228 = arith.constant 2 : index
    %c0_229 = arith.constant 0 : index
    %330 = vector.load %arg14[%c2_228, %c0_229] : memref<16x128xf32, #tpu.memory_space<vmem>>, vector<2x128xf32>
    %c12_230 = arith.constant 12 : index
    %c0_231 = arith.constant 0 : index
    %331 = vector.load %arg14[%c12_230, %c0_231] : memref<16x128xf32, #tpu.memory_space<vmem>>, vector<2x128xf32>
    %332 = arith.select %50, %330, %331 : vector<2x128xi1>, vector<2x128xf32>
    %c1_232 = arith.constant 1 : index
    %c0_233 = arith.constant 0 : index
    %c0_234 = arith.constant 0 : index
    %333 = vector.load %arg15[%c1_232, %c0_233, %c0_234] : memref<8x2x128xf32, #tpu.memory_space<vmem>>, vector<1x2x128xf32>
    %334 = vector.shape_cast %333 : vector<1x2x128xf32> to vector<2x128xf32>
    %335 = vector.shape_cast %332 : vector<2x128xf32> to vector<1x2x128xf32>
    tpu.vector_store %arg15[%c1_232, %c0_233, %c0_234], %335 {strides = array<i32>} : memref<8x2x128xf32, #tpu.memory_space<vmem>>, vector<1x2x128xf32>,
    %c4_235 = arith.constant 4 : index
    %c0_236 = arith.constant 0 : index
    %336 = vector.load %arg14[%c4_235, %c0_236] : memref<16x128xf32, #tpu.memory_space<vmem>>, vector<2x128xf32>
    %c10_237 = arith.constant 10 : index
    %c0_238 = arith.constant 0 : index
    %337 = vector.load %arg14[%c10_237, %c0_238] : memref<16x128xf32, #tpu.memory_space<vmem>>, vector<2x128xf32>
    %338 = arith.select %50, %336, %337 : vector<2x128xi1>, vector<2x128xf32>
    %c2_239 = arith.constant 2 : index
    %c0_240 = arith.constant 0 : index
    %c0_241 = arith.constant 0 : index
    %339 = vector.load %arg15[%c2_239, %c0_240, %c0_241] : memref<8x2x128xf32, #tpu.memory_space<vmem>>, vector<1x2x128xf32>
    %340 = vector.shape_cast %339 : vector<1x2x128xf32> to vector<2x128xf32>
    %341 = vector.shape_cast %338 : vector<2x128xf32> to vector<1x2x128xf32>
    tpu.vector_store %arg15[%c2_239, %c0_240, %c0_241], %341 {strides = array<i32>} : memref<8x2x128xf32, #tpu.memory_space<vmem>>, vector<1x2x128xf32>,
    %c6_242 = arith.constant 6 : index
    %c0_243 = arith.constant 0 : index
    %342 = vector.load %arg14[%c6_242, %c0_243] : memref<16x128xf32, #tpu.memory_space<vmem>>, vector<2x128xf32>
    %c8_244 = arith.constant 8 : index
    %c0_245 = arith.constant 0 : index
    %343 = vector.load %arg14[%c8_244, %c0_245] : memref<16x128xf32, #tpu.memory_space<vmem>>, vector<2x128xf32>
    %344 = arith.select %50, %342, %343 : vector<2x128xi1>, vector<2x128xf32>
    %c3_246 = arith.constant 3 : index
    %c0_247 = arith.constant 0 : index
    %c0_248 = arith.constant 0 : index
    %345 = vector.load %arg15[%c3_246, %c0_247, %c0_248] : memref<8x2x128xf32, #tpu.memory_space<vmem>>, vector<1x2x128xf32>
    %346 = vector.shape_cast %345 : vector<1x2x128xf32> to vector<2x128xf32>
    %347 = vector.shape_cast %344 : vector<2x128xf32> to vector<1x2x128xf32>
    tpu.vector_store %arg15[%c3_246, %c0_247, %c0_248], %347 {strides = array<i32>} : memref<8x2x128xf32, #tpu.memory_space<vmem>>, vector<1x2x128xf32>,
    %c8_249 = arith.constant 8 : index
    %c0_250 = arith.constant 0 : index
    %348 = vector.load %arg14[%c8_249, %c0_250] : memref<16x128xf32, #tpu.memory_space<vmem>>, vector<2x128xf32>
    %c6_251 = arith.constant 6 : index
    %c0_252 = arith.constant 0 : index
    %349 = vector.load %arg14[%c6_251, %c0_252] : memref<16x128xf32, #tpu.memory_space<vmem>>, vector<2x128xf32>
    %350 = arith.select %50, %348, %349 : vector<2x128xi1>, vector<2x128xf32>
    %c4_253 = arith.constant 4 : index
    %c0_254 = arith.constant 0 : index
    %c0_255 = arith.constant 0 : index
    %351 = vector.load %arg15[%c4_253, %c0_254, %c0_255] : memref<8x2x128xf32, #tpu.memory_space<vmem>>, vector<1x2x128xf32>
    %352 = vector.shape_cast %351 : vector<1x2x128xf32> to vector<2x128xf32>
    %353 = vector.shape_cast %350 : vector<2x128xf32> to vector<1x2x128xf32>
    tpu.vector_store %arg15[%c4_253, %c0_254, %c0_255], %353 {strides = array<i32>} : memref<8x2x128xf32, #tpu.memory_space<vmem>>, vector<1x2x128xf32>,
    %c10_256 = arith.constant 10 : index
    %c0_257 = arith.constant 0 : index
    %354 = vector.load %arg14[%c10_256, %c0_257] : memref<16x128xf32, #tpu.memory_space<vmem>>, vector<2x128xf32>
    %c4_258 = arith.constant 4 : index
    %c0_259 = arith.constant 0 : index
    %355 = vector.load %arg14[%c4_258, %c0_259] : memref<16x128xf32, #tpu.memory_space<vmem>>, vector<2x128xf32>
    %356 = arith.select %50, %354, %355 : vector<2x128xi1>, vector<2x128xf32>
    %c5_260 = arith.constant 5 : index
    %c0_261 = arith.constant 0 : index
    %c0_262 = arith.constant 0 : index
    %357 = vector.load %arg15[%c5_260, %c0_261, %c0_262] : memref<8x2x128xf32, #tpu.memory_space<vmem>>, vector<1x2x128xf32>
    %358 = vector.shape_cast %357 : vector<1x2x128xf32> to vector<2x128xf32>
    %359 = vector.shape_cast %356 : vector<2x128xf32> to vector<1x2x128xf32>
    tpu.vector_store %arg15[%c5_260, %c0_261, %c0_262], %359 {strides = array<i32>} : memref<8x2x128xf32, #tpu.memory_space<vmem>>, vector<1x2x128xf32>,
    %c12_263 = arith.constant 12 : index
    %c0_264 = arith.constant 0 : index
    %360 = vector.load %arg14[%c12_263, %c0_264] : memref<16x128xf32, #tpu.memory_space<vmem>>, vector<2x128xf32>
    %c2_265 = arith.constant 2 : index
    %c0_266 = arith.constant 0 : index
    %361 = vector.load %arg14[%c2_265, %c0_266] : memref<16x128xf32, #tpu.memory_space<vmem>>, vector<2x128xf32>
    %362 = arith.select %50, %360, %361 : vector<2x128xi1>, vector<2x128xf32>
    %c6_267 = arith.constant 6 : index
    %c0_268 = arith.constant 0 : index
    %c0_269 = arith.constant 0 : index
    %363 = vector.load %arg15[%c6_267, %c0_268, %c0_269] : memref<8x2x128xf32, #tpu.memory_space<vmem>>, vector<1x2x128xf32>
    %364 = vector.shape_cast %363 : vector<1x2x128xf32> to vector<2x128xf32>
    %365 = vector.shape_cast %362 : vector<2x128xf32> to vector<1x2x128xf32>
    tpu.vector_store %arg15[%c6_267, %c0_268, %c0_269], %365 {strides = array<i32>} : memref<8x2x128xf32, #tpu.memory_space<vmem>>, vector<1x2x128xf32>,
    %c14_270 = arith.constant 14 : index
    %c0_271 = arith.constant 0 : index
    %366 = vector.load %arg14[%c14_270, %c0_271] : memref<16x128xf32, #tpu.memory_space<vmem>>, vector<2x128xf32>
    %c0_272 = arith.constant 0 : index
    %c0_273 = arith.constant 0 : index
    %367 = vector.load %arg14[%c0_272, %c0_273] : memref<16x128xf32, #tpu.memory_space<vmem>>, vector<2x128xf32>
    %368 = arith.select %50, %366, %367 : vector<2x128xi1>, vector<2x128xf32>
    %c7_274 = arith.constant 7 : index
    %c0_275 = arith.constant 0 : index
    %c0_276 = arith.constant 0 : index
    %369 = vector.load %arg15[%c7_274, %c0_275, %c0_276] : memref<8x2x128xf32, #tpu.memory_space<vmem>>, vector<1x2x128xf32>
    %370 = vector.shape_cast %369 : vector<1x2x128xf32> to vector<2x128xf32>
    %371 = vector.shape_cast %368 : vector<2x128xf32> to vector<1x2x128xf32>
    tpu.vector_store %arg15[%c7_274, %c0_275, %c0_276], %371 {strides = array<i32>} : memref<8x2x128xf32, #tpu.memory_space<vmem>>, vector<1x2x128xf32>,
    %c0_277 = arith.constant 0 : index
    %c0_278 = arith.constant 0 : index
    %372 = vector.load %arg8[%c0_277, %c0_278] : memref<32x128xf32, #tpu.memory_space<vmem>>, vector<32x128xf32>
    %c2_279 = arith.constant 2 : index
    %c0_280 = arith.constant 0 : index
    %c0_281 = arith.constant 0 : index
    %373 = vector.load %arg2[%c2_279, %c0_280, %c0_281] : memref<4x2x16xf32, #tpu.memory_space<vmem>>, vector<1x2x16xf32>
    %374 = vector.shape_cast %373 : vector<1x2x16xf32> to vector<2x16xf32>
    %c3_282 = arith.constant 3 : index
    %c0_283 = arith.constant 0 : index
    %c0_284 = arith.constant 0 : index
    %375 = vector.load %arg2[%c3_282, %c0_283, %c0_284] : memref<4x2x16xf32, #tpu.memory_space<vmem>>, vector<1x2x16xf32>
    %376 = vector.shape_cast %375 : vector<1x2x16xf32> to vector<2x16xf32>
    %377 = tpu.concatenate %374, %376 in 1 : vector<2x16xf32>, vector<2x16xf32> -> vector<2x32xf32>
    %c2_285 = arith.constant 2 : index
    %c0_286 = arith.constant 0 : index
    %c0_287 = arith.constant 0 : index
    %378 = vector.load %arg3[%c2_285, %c0_286, %c0_287] : memref<4x2x16xf32, #tpu.memory_space<vmem>>, vector<1x2x16xf32>
    %379 = vector.shape_cast %378 : vector<1x2x16xf32> to vector<2x16xf32>
    %c3_288 = arith.constant 3 : index
    %c0_289 = arith.constant 0 : index
    %c0_290 = arith.constant 0 : index
    %380 = vector.load %arg3[%c3_288, %c0_289, %c0_290] : memref<4x2x16xf32, #tpu.memory_space<vmem>>, vector<1x2x16xf32>
    %381 = vector.shape_cast %380 : vector<1x2x16xf32> to vector<2x16xf32>
    %382 = tpu.concatenate %379, %381 in 1 : vector<2x16xf32>, vector<2x16xf32> -> vector<2x32xf32>
    %c0_291 = arith.constant 0 : index
    %c0_292 = arith.constant 0 : index
    %c0_293 = arith.constant 0 : index
    %383 = vector.load %arg15[%c0_291, %c0_292, %c0_293] : memref<8x2x128xf32, #tpu.memory_space<vmem>>, vector<1x2x128xf32>
    %384 = vector.shape_cast %383 : vector<1x2x128xf32> to vector<2x128xf32>
    %cst_294 = arith.constant dense<0.000000e+00> : vector<2x128xf32>
    %385 = tpu.matmul %377, %372, %cst_294 {dimension_numbers = #tpu.dot_dimension_numbers<[1], [0], [0], [1], [0, 0, 1, 1], [], []>} : vector<2x32xf32>, vector<32x128xf32>, vector<2x128xf32> -> vector<2x128xf32>
    %386 = arith.addf %384, %385 : vector<2x128xf32>
    %387 = arith.negf %386 : vector<2x128xf32>
    %388 = math.exp %387 : vector<2x128xf32>
    %cst_295 = arith.constant 1.000000e+00 : f32
    %389 = vector.broadcast %cst_295 : f32 to vector<2x128xf32>
    %390 = arith.addf %389, %388 : vector<2x128xf32>
    %391 = arith.divf %389, %390 : vector<2x128xf32>
    %392 = vector.extract_strided_slice %391 {offsets = [0, 0], sizes = [2, 32], strides = [1, 1]} : vector<2x128xf32> to vector<2x32xf32>
    %393 = vector.extract_strided_slice %391 {offsets = [0, 32], sizes = [2, 32], strides = [1, 1]} : vector<2x128xf32> to vector<2x32xf32>
    %394 = vector.extract_strided_slice %391 {offsets = [0, 96], sizes = [2, 32], strides = [1, 1]} : vector<2x128xf32> to vector<2x32xf32>
    %395 = vector.extract_strided_slice %386 {offsets = [0, 64], sizes = [2, 32], strides = [1, 1]} : vector<2x128xf32> to vector<2x32xf32>
    %396 = math.tanh %395 : vector<2x32xf32>
    %397 = arith.mulf %393, %382 : vector<2x32xf32>
    %398 = arith.mulf %392, %396 : vector<2x32xf32>
    %399 = arith.addf %397, %398 : vector<2x32xf32>
    %400 = math.tanh %399 : vector<2x32xf32>
    %401 = arith.mulf %394, %400 : vector<2x32xf32>
    %402 = vector.extract_strided_slice %401 {offsets = [0, 0], sizes = [2, 16], strides = [1, 1]} : vector<2x32xf32> to vector<2x16xf32>
    %c0_296 = arith.constant 0 : index
    %c0_297 = arith.constant 0 : index
    %403 = vector.load %arg16[%c0_296, %c0_297] : memref<16x32xf32, #tpu.memory_space<vmem>>, vector<2x16xf32>
    tpu.vector_store %arg16[%c0_296, %c0_297], %402 {strides = array<i32>} : memref<16x32xf32, #tpu.memory_space<vmem>>, vector<2x16xf32>,
    %404 = vector.extract_strided_slice %401 {offsets = [0, 16], sizes = [2, 16], strides = [1, 1]} : vector<2x32xf32> to vector<2x16xf32>
    %c14_298 = arith.constant 14 : index
    %c16_299 = arith.constant 16 : index
    %405 = vector.load %arg16[%c14_298, %c16_299] : memref<16x32xf32, #tpu.memory_space<vmem>>, vector<2x16xf32>
    tpu.vector_store %arg16[%c14_298, %c16_299], %404 {strides = array<i32>} : memref<16x32xf32, #tpu.memory_space<vmem>>, vector<2x16xf32>,
    %c1_300 = arith.constant 1 : index
    %c0_301 = arith.constant 0 : index
    %c0_302 = arith.constant 0 : index
    %406 = vector.load %arg15[%c1_300, %c0_301, %c0_302] : memref<8x2x128xf32, #tpu.memory_space<vmem>>, vector<1x2x128xf32>
    %407 = vector.shape_cast %406 : vector<1x2x128xf32> to vector<2x128xf32>
    %cst_303 = arith.constant dense<0.000000e+00> : vector<2x128xf32>
    %408 = tpu.matmul %401, %372, %cst_303 {dimension_numbers = #tpu.dot_dimension_numbers<[1], [0], [0], [1], [0, 0, 1, 1], [], []>} : vector<2x32xf32>, vector<32x128xf32>, vector<2x128xf32> -> vector<2x128xf32>
    %409 = arith.addf %407, %408 : vector<2x128xf32>
    %410 = arith.negf %409 : vector<2x128xf32>
    %411 = math.exp %410 : vector<2x128xf32>
    %cst_304 = arith.constant 1.000000e+00 : f32
    %412 = vector.broadcast %cst_304 : f32 to vector<2x128xf32>
    %413 = arith.addf %412, %411 : vector<2x128xf32>
    %414 = arith.divf %412, %413 : vector<2x128xf32>
    %415 = vector.extract_strided_slice %414 {offsets = [0, 0], sizes = [2, 32], strides = [1, 1]} : vector<2x128xf32> to vector<2x32xf32>
    %416 = vector.extract_strided_slice %414 {offsets = [0, 32], sizes = [2, 32], strides = [1, 1]} : vector<2x128xf32> to vector<2x32xf32>
    %417 = vector.extract_strided_slice %414 {offsets = [0, 96], sizes = [2, 32], strides = [1, 1]} : vector<2x128xf32> to vector<2x32xf32>
    %418 = vector.extract_strided_slice %409 {offsets = [0, 64], sizes = [2, 32], strides = [1, 1]} : vector<2x128xf32> to vector<2x32xf32>
    %419 = math.tanh %418 : vector<2x32xf32>
    %420 = arith.mulf %416, %399 : vector<2x32xf32>
    %421 = arith.mulf %415, %419 : vector<2x32xf32>
    %422 = arith.addf %420, %421 : vector<2x32xf32>
    %423 = math.tanh %422 : vector<2x32xf32>
    %424 = arith.mulf %417, %423 : vector<2x32xf32>
    %425 = vector.extract_strided_slice %424 {offsets = [0, 0], sizes = [2, 16], strides = [1, 1]} : vector<2x32xf32> to vector<2x16xf32>
    %c2_305 = arith.constant 2 : index
    %c0_306 = arith.constant 0 : index
    %426 = vector.load %arg16[%c2_305, %c0_306] : memref<16x32xf32, #tpu.memory_space<vmem>>, vector<2x16xf32>
    tpu.vector_store %arg16[%c2_305, %c0_306], %425 {strides = array<i32>} : memref<16x32xf32, #tpu.memory_space<vmem>>, vector<2x16xf32>,
    %427 = vector.extract_strided_slice %424 {offsets = [0, 16], sizes = [2, 16], strides = [1, 1]} : vector<2x32xf32> to vector<2x16xf32>
    %c12_307 = arith.constant 12 : index
    %c16_308 = arith.constant 16 : index
    %428 = vector.load %arg16[%c12_307, %c16_308] : memref<16x32xf32, #tpu.memory_space<vmem>>, vector<2x16xf32>
    tpu.vector_store %arg16[%c12_307, %c16_308], %427 {strides = array<i32>} : memref<16x32xf32, #tpu.memory_space<vmem>>, vector<2x16xf32>,
    %c2_309 = arith.constant 2 : index
    %c0_310 = arith.constant 0 : index
    %c0_311 = arith.constant 0 : index
    %429 = vector.load %arg15[%c2_309, %c0_310, %c0_311] : memref<8x2x128xf32, #tpu.memory_space<vmem>>, vector<1x2x128xf32>
    %430 = vector.shape_cast %429 : vector<1x2x128xf32> to vector<2x128xf32>
    %cst_312 = arith.constant dense<0.000000e+00> : vector<2x128xf32>
    %431 = tpu.matmul %424, %372, %cst_312 {dimension_numbers = #tpu.dot_dimension_numbers<[1], [0], [0], [1], [0, 0, 1, 1], [], []>} : vector<2x32xf32>, vector<32x128xf32>, vector<2x128xf32> -> vector<2x128xf32>
    %432 = arith.addf %430, %431 : vector<2x128xf32>
    %433 = arith.negf %432 : vector<2x128xf32>
    %434 = math.exp %433 : vector<2x128xf32>
    %cst_313 = arith.constant 1.000000e+00 : f32
    %435 = vector.broadcast %cst_313 : f32 to vector<2x128xf32>
    %436 = arith.addf %435, %434 : vector<2x128xf32>
    %437 = arith.divf %435, %436 : vector<2x128xf32>
    %438 = vector.extract_strided_slice %437 {offsets = [0, 0], sizes = [2, 32], strides = [1, 1]} : vector<2x128xf32> to vector<2x32xf32>
    %439 = vector.extract_strided_slice %437 {offsets = [0, 32], sizes = [2, 32], strides = [1, 1]} : vector<2x128xf32> to vector<2x32xf32>
    %440 = vector.extract_strided_slice %437 {offsets = [0, 96], sizes = [2, 32], strides = [1, 1]} : vector<2x128xf32> to vector<2x32xf32>
    %441 = vector.extract_strided_slice %432 {offsets = [0, 64], sizes = [2, 32], strides = [1, 1]} : vector<2x128xf32> to vector<2x32xf32>
    %442 = math.tanh %441 : vector<2x32xf32>
    %443 = arith.mulf %439, %422 : vector<2x32xf32>
    %444 = arith.mulf %438, %442 : vector<2x32xf32>
    %445 = arith.addf %443, %444 : vector<2x32xf32>
    %446 = math.tanh %445 : vector<2x32xf32>
    %447 = arith.mulf %440, %446 : vector<2x32xf32>
    %448 = vector.extract_strided_slice %447 {offsets = [0, 0], sizes = [2, 16], strides = [1, 1]} : vector<2x32xf32> to vector<2x16xf32>
    %c4_314 = arith.constant 4 : index
    %c0_315 = arith.constant 0 : index
    %449 = vector.load %arg16[%c4_314, %c0_315] : memref<16x32xf32, #tpu.memory_space<vmem>>, vector<2x16xf32>
    tpu.vector_store %arg16[%c4_314, %c0_315], %448 {strides = array<i32>} : memref<16x32xf32, #tpu.memory_space<vmem>>, vector<2x16xf32>,
    %450 = vector.extract_strided_slice %447 {offsets = [0, 16], sizes = [2, 16], strides = [1, 1]} : vector<2x32xf32> to vector<2x16xf32>
    %c10_316 = arith.constant 10 : index
    %c16_317 = arith.constant 16 : index
    %451 = vector.load %arg16[%c10_316, %c16_317] : memref<16x32xf32, #tpu.memory_space<vmem>>, vector<2x16xf32>
    tpu.vector_store %arg16[%c10_316, %c16_317], %450 {strides = array<i32>} : memref<16x32xf32, #tpu.memory_space<vmem>>, vector<2x16xf32>,
    %c3_318 = arith.constant 3 : index
    %c0_319 = arith.constant 0 : index
    %c0_320 = arith.constant 0 : index
    %452 = vector.load %arg15[%c3_318, %c0_319, %c0_320] : memref<8x2x128xf32, #tpu.memory_space<vmem>>, vector<1x2x128xf32>
    %453 = vector.shape_cast %452 : vector<1x2x128xf32> to vector<2x128xf32>
    %cst_321 = arith.constant dense<0.000000e+00> : vector<2x128xf32>
    %454 = tpu.matmul %447, %372, %cst_321 {dimension_numbers = #tpu.dot_dimension_numbers<[1], [0], [0], [1], [0, 0, 1, 1], [], []>} : vector<2x32xf32>, vector<32x128xf32>, vector<2x128xf32> -> vector<2x128xf32>
    %455 = arith.addf %453, %454 : vector<2x128xf32>
    %456 = arith.negf %455 : vector<2x128xf32>
    %457 = math.exp %456 : vector<2x128xf32>
    %cst_322 = arith.constant 1.000000e+00 : f32
    %458 = vector.broadcast %cst_322 : f32 to vector<2x128xf32>
    %459 = arith.addf %458, %457 : vector<2x128xf32>
    %460 = arith.divf %458, %459 : vector<2x128xf32>
    %461 = vector.extract_strided_slice %460 {offsets = [0, 0], sizes = [2, 32], strides = [1, 1]} : vector<2x128xf32> to vector<2x32xf32>
    %462 = vector.extract_strided_slice %460 {offsets = [0, 32], sizes = [2, 32], strides = [1, 1]} : vector<2x128xf32> to vector<2x32xf32>
    %463 = vector.extract_strided_slice %460 {offsets = [0, 96], sizes = [2, 32], strides = [1, 1]} : vector<2x128xf32> to vector<2x32xf32>
    %464 = vector.extract_strided_slice %455 {offsets = [0, 64], sizes = [2, 32], strides = [1, 1]} : vector<2x128xf32> to vector<2x32xf32>
    %465 = math.tanh %464 : vector<2x32xf32>
    %466 = arith.mulf %462, %445 : vector<2x32xf32>
    %467 = arith.mulf %461, %465 : vector<2x32xf32>
    %468 = arith.addf %466, %467 : vector<2x32xf32>
    %469 = math.tanh %468 : vector<2x32xf32>
    %470 = arith.mulf %463, %469 : vector<2x32xf32>
    %471 = vector.extract_strided_slice %470 {offsets = [0, 0], sizes = [2, 16], strides = [1, 1]} : vector<2x32xf32> to vector<2x16xf32>
    %c6_323 = arith.constant 6 : index
    %c0_324 = arith.constant 0 : index
    %472 = vector.load %arg16[%c6_323, %c0_324] : memref<16x32xf32, #tpu.memory_space<vmem>>, vector<2x16xf32>
    tpu.vector_store %arg16[%c6_323, %c0_324], %471 {strides = array<i32>} : memref<16x32xf32, #tpu.memory_space<vmem>>, vector<2x16xf32>,
    %473 = vector.extract_strided_slice %470 {offsets = [0, 16], sizes = [2, 16], strides = [1, 1]} : vector<2x32xf32> to vector<2x16xf32>
    %c8_325 = arith.constant 8 : index
    %c16_326 = arith.constant 16 : index
    %474 = vector.load %arg16[%c8_325, %c16_326] : memref<16x32xf32, #tpu.memory_space<vmem>>, vector<2x16xf32>
    tpu.vector_store %arg16[%c8_325, %c16_326], %473 {strides = array<i32>} : memref<16x32xf32, #tpu.memory_space<vmem>>, vector<2x16xf32>,
    %c4_327 = arith.constant 4 : index
    %c0_328 = arith.constant 0 : index
    %c0_329 = arith.constant 0 : index
    %475 = vector.load %arg15[%c4_327, %c0_328, %c0_329] : memref<8x2x128xf32, #tpu.memory_space<vmem>>, vector<1x2x128xf32>
    %476 = vector.shape_cast %475 : vector<1x2x128xf32> to vector<2x128xf32>
    %cst_330 = arith.constant dense<0.000000e+00> : vector<2x128xf32>
    %477 = tpu.matmul %470, %372, %cst_330 {dimension_numbers = #tpu.dot_dimension_numbers<[1], [0], [0], [1], [0, 0, 1, 1], [], []>} : vector<2x32xf32>, vector<32x128xf32>, vector<2x128xf32> -> vector<2x128xf32>
    %478 = arith.addf %476, %477 : vector<2x128xf32>
    %479 = arith.negf %478 : vector<2x128xf32>
    %480 = math.exp %479 : vector<2x128xf32>
    %cst_331 = arith.constant 1.000000e+00 : f32
    %481 = vector.broadcast %cst_331 : f32 to vector<2x128xf32>
    %482 = arith.addf %481, %480 : vector<2x128xf32>
    %483 = arith.divf %481, %482 : vector<2x128xf32>
    %484 = vector.extract_strided_slice %483 {offsets = [0, 0], sizes = [2, 32], strides = [1, 1]} : vector<2x128xf32> to vector<2x32xf32>
    %485 = vector.extract_strided_slice %483 {offsets = [0, 32], sizes = [2, 32], strides = [1, 1]} : vector<2x128xf32> to vector<2x32xf32>
    %486 = vector.extract_strided_slice %483 {offsets = [0, 96], sizes = [2, 32], strides = [1, 1]} : vector<2x128xf32> to vector<2x32xf32>
    %487 = vector.extract_strided_slice %478 {offsets = [0, 64], sizes = [2, 32], strides = [1, 1]} : vector<2x128xf32> to vector<2x32xf32>
    %488 = math.tanh %487 : vector<2x32xf32>
    %489 = arith.mulf %485, %468 : vector<2x32xf32>
    %490 = arith.mulf %484, %488 : vector<2x32xf32>
    %491 = arith.addf %489, %490 : vector<2x32xf32>
    %492 = math.tanh %491 : vector<2x32xf32>
    %493 = arith.mulf %486, %492 : vector<2x32xf32>
    %494 = vector.extract_strided_slice %493 {offsets = [0, 0], sizes = [2, 16], strides = [1, 1]} : vector<2x32xf32> to vector<2x16xf32>
    %c8_332 = arith.constant 8 : index
    %c0_333 = arith.constant 0 : index
    %495 = vector.load %arg16[%c8_332, %c0_333] : memref<16x32xf32, #tpu.memory_space<vmem>>, vector<2x16xf32>
    tpu.vector_store %arg16[%c8_332, %c0_333], %494 {strides = array<i32>} : memref<16x32xf32, #tpu.memory_space<vmem>>, vector<2x16xf32>,
    %496 = vector.extract_strided_slice %493 {offsets = [0, 16], sizes = [2, 16], strides = [1, 1]} : vector<2x32xf32> to vector<2x16xf32>
    %c6_334 = arith.constant 6 : index
    %c16_335 = arith.constant 16 : index
    %497 = vector.load %arg16[%c6_334, %c16_335] : memref<16x32xf32, #tpu.memory_space<vmem>>, vector<2x16xf32>
    tpu.vector_store %arg16[%c6_334, %c16_335], %496 {strides = array<i32>} : memref<16x32xf32, #tpu.memory_space<vmem>>, vector<2x16xf32>,
    %c5_336 = arith.constant 5 : index
    %c0_337 = arith.constant 0 : index
    %c0_338 = arith.constant 0 : index
    %498 = vector.load %arg15[%c5_336, %c0_337, %c0_338] : memref<8x2x128xf32, #tpu.memory_space<vmem>>, vector<1x2x128xf32>
    %499 = vector.shape_cast %498 : vector<1x2x128xf32> to vector<2x128xf32>
    %cst_339 = arith.constant dense<0.000000e+00> : vector<2x128xf32>
    %500 = tpu.matmul %493, %372, %cst_339 {dimension_numbers = #tpu.dot_dimension_numbers<[1], [0], [0], [1], [0, 0, 1, 1], [], []>} : vector<2x32xf32>, vector<32x128xf32>, vector<2x128xf32> -> vector<2x128xf32>
    %501 = arith.addf %499, %500 : vector<2x128xf32>
    %502 = arith.negf %501 : vector<2x128xf32>
    %503 = math.exp %502 : vector<2x128xf32>
    %cst_340 = arith.constant 1.000000e+00 : f32
    %504 = vector.broadcast %cst_340 : f32 to vector<2x128xf32>
    %505 = arith.addf %504, %503 : vector<2x128xf32>
    %506 = arith.divf %504, %505 : vector<2x128xf32>
    %507 = vector.extract_strided_slice %506 {offsets = [0, 0], sizes = [2, 32], strides = [1, 1]} : vector<2x128xf32> to vector<2x32xf32>
    %508 = vector.extract_strided_slice %506 {offsets = [0, 32], sizes = [2, 32], strides = [1, 1]} : vector<2x128xf32> to vector<2x32xf32>
    %509 = vector.extract_strided_slice %506 {offsets = [0, 96], sizes = [2, 32], strides = [1, 1]} : vector<2x128xf32> to vector<2x32xf32>
    %510 = vector.extract_strided_slice %501 {offsets = [0, 64], sizes = [2, 32], strides = [1, 1]} : vector<2x128xf32> to vector<2x32xf32>
    %511 = math.tanh %510 : vector<2x32xf32>
    %512 = arith.mulf %508, %491 : vector<2x32xf32>
    %513 = arith.mulf %507, %511 : vector<2x32xf32>
    %514 = arith.addf %512, %513 : vector<2x32xf32>
    %515 = math.tanh %514 : vector<2x32xf32>
    %516 = arith.mulf %509, %515 : vector<2x32xf32>
    %517 = vector.extract_strided_slice %516 {offsets = [0, 0], sizes = [2, 16], strides = [1, 1]} : vector<2x32xf32> to vector<2x16xf32>
    %c10_341 = arith.constant 10 : index
    %c0_342 = arith.constant 0 : index
    %518 = vector.load %arg16[%c10_341, %c0_342] : memref<16x32xf32, #tpu.memory_space<vmem>>, vector<2x16xf32>
    tpu.vector_store %arg16[%c10_341, %c0_342], %517 {strides = array<i32>} : memref<16x32xf32, #tpu.memory_space<vmem>>, vector<2x16xf32>,
    %519 = vector.extract_strided_slice %516 {offsets = [0, 16], sizes = [2, 16], strides = [1, 1]} : vector<2x32xf32> to vector<2x16xf32>
    %c4_343 = arith.constant 4 : index
    %c16_344 = arith.constant 16 : index
    %520 = vector.load %arg16[%c4_343, %c16_344] : memref<16x32xf32, #tpu.memory_space<vmem>>, vector<2x16xf32>
    tpu.vector_store %arg16[%c4_343, %c16_344], %519 {strides = array<i32>} : memref<16x32xf32, #tpu.memory_space<vmem>>, vector<2x16xf32>,
    %c6_345 = arith.constant 6 : index
    %c0_346 = arith.constant 0 : index
    %c0_347 = arith.constant 0 : index
    %521 = vector.load %arg15[%c6_345, %c0_346, %c0_347] : memref<8x2x128xf32, #tpu.memory_space<vmem>>, vector<1x2x128xf32>
    %522 = vector.shape_cast %521 : vector<1x2x128xf32> to vector<2x128xf32>
    %cst_348 = arith.constant dense<0.000000e+00> : vector<2x128xf32>
    %523 = tpu.matmul %516, %372, %cst_348 {dimension_numbers = #tpu.dot_dimension_numbers<[1], [0], [0], [1], [0, 0, 1, 1], [], []>} : vector<2x32xf32>, vector<32x128xf32>, vector<2x128xf32> -> vector<2x128xf32>
    %524 = arith.addf %522, %523 : vector<2x128xf32>
    %525 = arith.negf %524 : vector<2x128xf32>
    %526 = math.exp %525 : vector<2x128xf32>
    %cst_349 = arith.constant 1.000000e+00 : f32
    %527 = vector.broadcast %cst_349 : f32 to vector<2x128xf32>
    %528 = arith.addf %527, %526 : vector<2x128xf32>
    %529 = arith.divf %527, %528 : vector<2x128xf32>
    %530 = vector.extract_strided_slice %529 {offsets = [0, 0], sizes = [2, 32], strides = [1, 1]} : vector<2x128xf32> to vector<2x32xf32>
    %531 = vector.extract_strided_slice %529 {offsets = [0, 32], sizes = [2, 32], strides = [1, 1]} : vector<2x128xf32> to vector<2x32xf32>
    %532 = vector.extract_strided_slice %529 {offsets = [0, 96], sizes = [2, 32], strides = [1, 1]} : vector<2x128xf32> to vector<2x32xf32>
    %533 = vector.extract_strided_slice %524 {offsets = [0, 64], sizes = [2, 32], strides = [1, 1]} : vector<2x128xf32> to vector<2x32xf32>
    %534 = math.tanh %533 : vector<2x32xf32>
    %535 = arith.mulf %531, %514 : vector<2x32xf32>
    %536 = arith.mulf %530, %534 : vector<2x32xf32>
    %537 = arith.addf %535, %536 : vector<2x32xf32>
    %538 = math.tanh %537 : vector<2x32xf32>
    %539 = arith.mulf %532, %538 : vector<2x32xf32>
    %540 = vector.extract_strided_slice %539 {offsets = [0, 0], sizes = [2, 16], strides = [1, 1]} : vector<2x32xf32> to vector<2x16xf32>
    %c12_350 = arith.constant 12 : index
    %c0_351 = arith.constant 0 : index
    %541 = vector.load %arg16[%c12_350, %c0_351] : memref<16x32xf32, #tpu.memory_space<vmem>>, vector<2x16xf32>
    tpu.vector_store %arg16[%c12_350, %c0_351], %540 {strides = array<i32>} : memref<16x32xf32, #tpu.memory_space<vmem>>, vector<2x16xf32>,
    %542 = vector.extract_strided_slice %539 {offsets = [0, 16], sizes = [2, 16], strides = [1, 1]} : vector<2x32xf32> to vector<2x16xf32>
    %c2_352 = arith.constant 2 : index
    %c16_353 = arith.constant 16 : index
    %543 = vector.load %arg16[%c2_352, %c16_353] : memref<16x32xf32, #tpu.memory_space<vmem>>, vector<2x16xf32>
    tpu.vector_store %arg16[%c2_352, %c16_353], %542 {strides = array<i32>} : memref<16x32xf32, #tpu.memory_space<vmem>>, vector<2x16xf32>,
    %c7_354 = arith.constant 7 : index
    %c0_355 = arith.constant 0 : index
    %c0_356 = arith.constant 0 : index
    %544 = vector.load %arg15[%c7_354, %c0_355, %c0_356] : memref<8x2x128xf32, #tpu.memory_space<vmem>>, vector<1x2x128xf32>
    %545 = vector.shape_cast %544 : vector<1x2x128xf32> to vector<2x128xf32>
    %cst_357 = arith.constant dense<0.000000e+00> : vector<2x128xf32>
    %546 = tpu.matmul %539, %372, %cst_357 {dimension_numbers = #tpu.dot_dimension_numbers<[1], [0], [0], [1], [0, 0, 1, 1], [], []>} : vector<2x32xf32>, vector<32x128xf32>, vector<2x128xf32> -> vector<2x128xf32>
    %547 = arith.addf %545, %546 : vector<2x128xf32>
    %548 = arith.negf %547 : vector<2x128xf32>
    %549 = math.exp %548 : vector<2x128xf32>
    %cst_358 = arith.constant 1.000000e+00 : f32
    %550 = vector.broadcast %cst_358 : f32 to vector<2x128xf32>
    %551 = arith.addf %550, %549 : vector<2x128xf32>
    %552 = arith.divf %550, %551 : vector<2x128xf32>
    %553 = vector.extract_strided_slice %552 {offsets = [0, 0], sizes = [2, 32], strides = [1, 1]} : vector<2x128xf32> to vector<2x32xf32>
    %554 = vector.extract_strided_slice %552 {offsets = [0, 32], sizes = [2, 32], strides = [1, 1]} : vector<2x128xf32> to vector<2x32xf32>
    %555 = vector.extract_strided_slice %552 {offsets = [0, 96], sizes = [2, 32], strides = [1, 1]} : vector<2x128xf32> to vector<2x32xf32>
    %556 = vector.extract_strided_slice %547 {offsets = [0, 64], sizes = [2, 32], strides = [1, 1]} : vector<2x128xf32> to vector<2x32xf32>
    %557 = math.tanh %556 : vector<2x32xf32>
    %558 = arith.mulf %554, %537 : vector<2x32xf32>
    %559 = arith.mulf %553, %557 : vector<2x32xf32>
    %560 = arith.addf %558, %559 : vector<2x32xf32>
    %561 = math.tanh %560 : vector<2x32xf32>
    %562 = arith.mulf %555, %561 : vector<2x32xf32>
    %563 = vector.extract_strided_slice %562 {offsets = [0, 0], sizes = [2, 16], strides = [1, 1]} : vector<2x32xf32> to vector<2x16xf32>
    %c14_359 = arith.constant 14 : index
    %c0_360 = arith.constant 0 : index
    %564 = vector.load %arg16[%c14_359, %c0_360] : memref<16x32xf32, #tpu.memory_space<vmem>>, vector<2x16xf32>
    tpu.vector_store %arg16[%c14_359, %c0_360], %563 {strides = array<i32>} : memref<16x32xf32, #tpu.memory_space<vmem>>, vector<2x16xf32>,
    %565 = vector.extract_strided_slice %562 {offsets = [0, 16], sizes = [2, 16], strides = [1, 1]} : vector<2x32xf32> to vector<2x16xf32>
    %c0_361 = arith.constant 0 : index
    %c16_362 = arith.constant 16 : index
    %566 = vector.load %arg16[%c0_361, %c16_362] : memref<16x32xf32, #tpu.memory_space<vmem>>, vector<2x16xf32>
    tpu.vector_store %arg16[%c0_361, %c16_362], %565 {strides = array<i32>} : memref<16x32xf32, #tpu.memory_space<vmem>>, vector<2x16xf32>,
    %567 = vector.extract_strided_slice %562 {offsets = [0, 0], sizes = [2, 16], strides = [1, 1]} : vector<2x32xf32> to vector<2x16xf32>
    %c2_363 = arith.constant 2 : index
    %c0_364 = arith.constant 0 : index
    %c0_365 = arith.constant 0 : index
    %568 = vector.load %arg11[%c2_363, %c0_364, %c0_365] : memref<4x2x16xf32, #tpu.memory_space<vmem>>, vector<1x2x16xf32>
    %569 = vector.shape_cast %568 : vector<1x2x16xf32> to vector<2x16xf32>
    %570 = vector.shape_cast %567 : vector<2x16xf32> to vector<1x2x16xf32>
    tpu.vector_store %arg11[%c2_363, %c0_364, %c0_365], %570 {strides = array<i32>} : memref<4x2x16xf32, #tpu.memory_space<vmem>>, vector<1x2x16xf32>,
    %571 = vector.extract_strided_slice %560 {offsets = [0, 0], sizes = [2, 16], strides = [1, 1]} : vector<2x32xf32> to vector<2x16xf32>
    %c2_366 = arith.constant 2 : index
    %c0_367 = arith.constant 0 : index
    %c0_368 = arith.constant 0 : index
    %572 = vector.load %arg12[%c2_366, %c0_367, %c0_368] : memref<4x2x16xf32, #tpu.memory_space<vmem>>, vector<1x2x16xf32>
    %573 = vector.shape_cast %572 : vector<1x2x16xf32> to vector<2x16xf32>
    %574 = vector.shape_cast %571 : vector<2x16xf32> to vector<1x2x16xf32>
    tpu.vector_store %arg12[%c2_366, %c0_367, %c0_368], %574 {strides = array<i32>} : memref<4x2x16xf32, #tpu.memory_space<vmem>>, vector<1x2x16xf32>,
    %575 = vector.extract_strided_slice %562 {offsets = [0, 16], sizes = [2, 16], strides = [1, 1]} : vector<2x32xf32> to vector<2x16xf32>
    %c3_369 = arith.constant 3 : index
    %c0_370 = arith.constant 0 : index
    %c0_371 = arith.constant 0 : index
    %576 = vector.load %arg11[%c3_369, %c0_370, %c0_371] : memref<4x2x16xf32, #tpu.memory_space<vmem>>, vector<1x2x16xf32>
    %577 = vector.shape_cast %576 : vector<1x2x16xf32> to vector<2x16xf32>
    %578 = vector.shape_cast %575 : vector<2x16xf32> to vector<1x2x16xf32>
    tpu.vector_store %arg11[%c3_369, %c0_370, %c0_371], %578 {strides = array<i32>} : memref<4x2x16xf32, #tpu.memory_space<vmem>>, vector<1x2x16xf32>,
    %579 = vector.extract_strided_slice %560 {offsets = [0, 16], sizes = [2, 16], strides = [1, 1]} : vector<2x32xf32> to vector<2x16xf32>
    %c3_372 = arith.constant 3 : index
    %c0_373 = arith.constant 0 : index
    %c0_374 = arith.constant 0 : index
    %580 = vector.load %arg12[%c3_372, %c0_373, %c0_374] : memref<4x2x16xf32, #tpu.memory_space<vmem>>, vector<1x2x16xf32>
    %581 = vector.shape_cast %580 : vector<1x2x16xf32> to vector<2x16xf32>
    %582 = vector.shape_cast %579 : vector<2x16xf32> to vector<1x2x16xf32>
    tpu.vector_store %arg12[%c3_372, %c0_373, %c0_374], %582 {strides = array<i32>} : memref<4x2x16xf32, #tpu.memory_space<vmem>>, vector<1x2x16xf32>,
    %c0_375 = arith.constant 0 : index
    %c0_376 = arith.constant 0 : index
    %583 = vector.load %arg16[%c0_375, %c0_376] : memref<16x32xf32, #tpu.memory_space<vmem>>, vector<1x32xf32>
    %c0_377 = arith.constant 0 : index
    %c0_378 = arith.constant 0 : index
    %584 = vector.load %arg10[%c0_377, %c0_378] : memref<16x32xf32, #tpu.memory_space<vmem>>, vector<1x32xf32>
    tpu.vector_store %arg10[%c0_377, %c0_378], %583 {strides = array<i32>} : memref<16x32xf32, #tpu.memory_space<vmem>>, vector<1x32xf32>,
    %c2_379 = arith.constant 2 : index
    %c0_380 = arith.constant 0 : index
    %585 = vector.load %arg16[%c2_379, %c0_380] : memref<16x32xf32, #tpu.memory_space<vmem>>, vector<1x32xf32>
    %c1_381 = arith.constant 1 : index
    %c0_382 = arith.constant 0 : index
    %586 = vector.load %arg10[%c1_381, %c0_382] : memref<16x32xf32, #tpu.memory_space<vmem>>, vector<1x32xf32>
    tpu.vector_store %arg10[%c1_381, %c0_382], %585 {strides = array<i32>} : memref<16x32xf32, #tpu.memory_space<vmem>>, vector<1x32xf32>,
    %c4_383 = arith.constant 4 : index
    %c0_384 = arith.constant 0 : index
    %587 = vector.load %arg16[%c4_383, %c0_384] : memref<16x32xf32, #tpu.memory_space<vmem>>, vector<1x32xf32>
    %c2_385 = arith.constant 2 : index
    %c0_386 = arith.constant 0 : index
    %588 = vector.load %arg10[%c2_385, %c0_386] : memref<16x32xf32, #tpu.memory_space<vmem>>, vector<1x32xf32>
    tpu.vector_store %arg10[%c2_385, %c0_386], %587 {strides = array<i32>} : memref<16x32xf32, #tpu.memory_space<vmem>>, vector<1x32xf32>,
    %c6_387 = arith.constant 6 : index
    %c0_388 = arith.constant 0 : index
    %589 = vector.load %arg16[%c6_387, %c0_388] : memref<16x32xf32, #tpu.memory_space<vmem>>, vector<1x32xf32>
    %c3_389 = arith.constant 3 : index
    %c0_390 = arith.constant 0 : index
    %590 = vector.load %arg10[%c3_389, %c0_390] : memref<16x32xf32, #tpu.memory_space<vmem>>, vector<1x32xf32>
    tpu.vector_store %arg10[%c3_389, %c0_390], %589 {strides = array<i32>} : memref<16x32xf32, #tpu.memory_space<vmem>>, vector<1x32xf32>,
    %c8_391 = arith.constant 8 : index
    %c0_392 = arith.constant 0 : index
    %591 = vector.load %arg16[%c8_391, %c0_392] : memref<16x32xf32, #tpu.memory_space<vmem>>, vector<1x32xf32>
    %c4_393 = arith.constant 4 : index
    %c0_394 = arith.constant 0 : index
    %592 = vector.load %arg10[%c4_393, %c0_394] : memref<16x32xf32, #tpu.memory_space<vmem>>, vector<1x32xf32>
    tpu.vector_store %arg10[%c4_393, %c0_394], %591 {strides = array<i32>} : memref<16x32xf32, #tpu.memory_space<vmem>>, vector<1x32xf32>,
    %c10_395 = arith.constant 10 : index
    %c0_396 = arith.constant 0 : index
    %593 = vector.load %arg16[%c10_395, %c0_396] : memref<16x32xf32, #tpu.memory_space<vmem>>, vector<1x32xf32>
    %c5_397 = arith.constant 5 : index
    %c0_398 = arith.constant 0 : index
    %594 = vector.load %arg10[%c5_397, %c0_398] : memref<16x32xf32, #tpu.memory_space<vmem>>, vector<1x32xf32>
    tpu.vector_store %arg10[%c5_397, %c0_398], %593 {strides = array<i32>} : memref<16x32xf32, #tpu.memory_space<vmem>>, vector<1x32xf32>,
    %c12_399 = arith.constant 12 : index
    %c0_400 = arith.constant 0 : index
    %595 = vector.load %arg16[%c12_399, %c0_400] : memref<16x32xf32, #tpu.memory_space<vmem>>, vector<1x32xf32>
    %c6_401 = arith.constant 6 : index
    %c0_402 = arith.constant 0 : index
    %596 = vector.load %arg10[%c6_401, %c0_402] : memref<16x32xf32, #tpu.memory_space<vmem>>, vector<1x32xf32>
    tpu.vector_store %arg10[%c6_401, %c0_402], %595 {strides = array<i32>} : memref<16x32xf32, #tpu.memory_space<vmem>>, vector<1x32xf32>,
    %c14_403 = arith.constant 14 : index
    %c0_404 = arith.constant 0 : index
    %597 = vector.load %arg16[%c14_403, %c0_404] : memref<16x32xf32, #tpu.memory_space<vmem>>, vector<1x32xf32>
    %c7_405 = arith.constant 7 : index
    %c0_406 = arith.constant 0 : index
    %598 = vector.load %arg10[%c7_405, %c0_406] : memref<16x32xf32, #tpu.memory_space<vmem>>, vector<1x32xf32>
    tpu.vector_store %arg10[%c7_405, %c0_406], %597 {strides = array<i32>} : memref<16x32xf32, #tpu.memory_space<vmem>>, vector<1x32xf32>,
    %c1_407 = arith.constant 1 : index
    %c0_408 = arith.constant 0 : index
    %599 = vector.load %arg16[%c1_407, %c0_408] : memref<16x32xf32, #tpu.memory_space<vmem>>, vector<1x32xf32>
    %c8_409 = arith.constant 8 : index
    %c0_410 = arith.constant 0 : index
    %600 = vector.load %arg10[%c8_409, %c0_410] : memref<16x32xf32, #tpu.memory_space<vmem>>, vector<1x32xf32>
    tpu.vector_store %arg10[%c8_409, %c0_410], %599 {strides = array<i32>} : memref<16x32xf32, #tpu.memory_space<vmem>>, vector<1x32xf32>,
    %c3_411 = arith.constant 3 : index
    %c0_412 = arith.constant 0 : index
    %601 = vector.load %arg16[%c3_411, %c0_412] : memref<16x32xf32, #tpu.memory_space<vmem>>, vector<1x32xf32>
    %c9_413 = arith.constant 9 : index
    %c0_414 = arith.constant 0 : index
    %602 = vector.load %arg10[%c9_413, %c0_414] : memref<16x32xf32, #tpu.memory_space<vmem>>, vector<1x32xf32>
    tpu.vector_store %arg10[%c9_413, %c0_414], %601 {strides = array<i32>} : memref<16x32xf32, #tpu.memory_space<vmem>>, vector<1x32xf32>,
    %c5_415 = arith.constant 5 : index
    %c0_416 = arith.constant 0 : index
    %603 = vector.load %arg16[%c5_415, %c0_416] : memref<16x32xf32, #tpu.memory_space<vmem>>, vector<1x32xf32>
    %c10_417 = arith.constant 10 : index
    %c0_418 = arith.constant 0 : index
    %604 = vector.load %arg10[%c10_417, %c0_418] : memref<16x32xf32, #tpu.memory_space<vmem>>, vector<1x32xf32>
    tpu.vector_store %arg10[%c10_417, %c0_418], %603 {strides = array<i32>} : memref<16x32xf32, #tpu.memory_space<vmem>>, vector<1x32xf32>,
    %c7_419 = arith.constant 7 : index
    %c0_420 = arith.constant 0 : index
    %605 = vector.load %arg16[%c7_419, %c0_420] : memref<16x32xf32, #tpu.memory_space<vmem>>, vector<1x32xf32>
    %c11_421 = arith.constant 11 : index
    %c0_422 = arith.constant 0 : index
    %606 = vector.load %arg10[%c11_421, %c0_422] : memref<16x32xf32, #tpu.memory_space<vmem>>, vector<1x32xf32>
    tpu.vector_store %arg10[%c11_421, %c0_422], %605 {strides = array<i32>} : memref<16x32xf32, #tpu.memory_space<vmem>>, vector<1x32xf32>,
    %c9_423 = arith.constant 9 : index
    %c0_424 = arith.constant 0 : index
    %607 = vector.load %arg16[%c9_423, %c0_424] : memref<16x32xf32, #tpu.memory_space<vmem>>, vector<1x32xf32>
    %c12_425 = arith.constant 12 : index
    %c0_426 = arith.constant 0 : index
    %608 = vector.load %arg10[%c12_425, %c0_426] : memref<16x32xf32, #tpu.memory_space<vmem>>, vector<1x32xf32>
    tpu.vector_store %arg10[%c12_425, %c0_426], %607 {strides = array<i32>} : memref<16x32xf32, #tpu.memory_space<vmem>>, vector<1x32xf32>,
    %c11_427 = arith.constant 11 : index
    %c0_428 = arith.constant 0 : index
    %609 = vector.load %arg16[%c11_427, %c0_428] : memref<16x32xf32, #tpu.memory_space<vmem>>, vector<1x32xf32>
    %c13_429 = arith.constant 13 : index
    %c0_430 = arith.constant 0 : index
    %610 = vector.load %arg10[%c13_429, %c0_430] : memref<16x32xf32, #tpu.memory_space<vmem>>, vector<1x32xf32>
    tpu.vector_store %arg10[%c13_429, %c0_430], %609 {strides = array<i32>} : memref<16x32xf32, #tpu.memory_space<vmem>>, vector<1x32xf32>,
    %c13_431 = arith.constant 13 : index
    %c0_432 = arith.constant 0 : index
    %611 = vector.load %arg16[%c13_431, %c0_432] : memref<16x32xf32, #tpu.memory_space<vmem>>, vector<1x32xf32>
    %c14_433 = arith.constant 14 : index
    %c0_434 = arith.constant 0 : index
    %612 = vector.load %arg10[%c14_433, %c0_434] : memref<16x32xf32, #tpu.memory_space<vmem>>, vector<1x32xf32>
    tpu.vector_store %arg10[%c14_433, %c0_434], %611 {strides = array<i32>} : memref<16x32xf32, #tpu.memory_space<vmem>>, vector<1x32xf32>,
    %c15_435 = arith.constant 15 : index
    %c0_436 = arith.constant 0 : index
    %613 = vector.load %arg16[%c15_435, %c0_436] : memref<16x32xf32, #tpu.memory_space<vmem>>, vector<1x32xf32>
    %c15_437 = arith.constant 15 : index
    %c0_438 = arith.constant 0 : index
    %614 = vector.load %arg10[%c15_437, %c0_438] : memref<16x32xf32, #tpu.memory_space<vmem>>, vector<1x32xf32>
    tpu.vector_store %arg10[%c15_437, %c0_438], %613 {strides = array<i32>} : memref<16x32xf32, #tpu.memory_space<vmem>>, vector<1x32xf32>,
    return
  }
  func.func @transform_0(%arg0: i32) -> (i32, i32) {
    %c0_i32 = arith.constant 0 : i32
    %c0_i32_0 = arith.constant 0 : i32
    %c0_i32_1 = arith.constant 0 : i32
    return %c0_i32, %c0_i32_0 : i32, i32
  }
  func.func @transform_1(%arg0: i32) -> (i32, i32, i32) {
    %c0_i32 = arith.constant 0 : i32
    %c0_i32_0 = arith.constant 0 : i32
    %c0_i32_1 = arith.constant 0 : i32
    %c0_i32_2 = arith.constant 0 : i32
    return %c0_i32, %c0_i32_0, %c0_i32_1 : i32, i32, i32
  }
  func.func @transform_2(%arg0: i32) -> (i32, i32, i32) {
    %c0_i32 = arith.constant 0 : i32
    %c0_i32_0 = arith.constant 0 : i32
    %c0_i32_1 = arith.constant 0 : i32
    %c0_i32_2 = arith.constant 0 : i32
    return %c0_i32, %c0_i32_0, %c0_i32_1 : i32, i32, i32
  }
  func.func @transform_3(%arg0: i32) -> (i32, i32) {
    %c0_i32 = arith.constant 0 : i32
    %c0_i32_0 = arith.constant 0 : i32
    %c0_i32_1 = arith.constant 0 : i32
    return %c0_i32, %c0_i32_0 : i32, i32
  }
  func.func @transform_4(%arg0: i32) -> (i32, i32) {
    %c0_i32 = arith.constant 0 : i32
    %c0_i32_0 = arith.constant 0 : i32
    %c0_i32_1 = arith.constant 0 : i32
    return %c0_i32, %c0_i32_0 : i32, i32
  }
  func.func @transform_5(%arg0: i32) -> (i32, i32) {
    %c0_i32 = arith.constant 0 : i32
    %c0_i32_0 = arith.constant 0 : i32
    %c0_i32_1 = arith.constant 0 : i32
    return %c0_i32, %c0_i32_0 : i32, i32
  }
  func.func @transform_6(%arg0: i32) -> (i32, i32) {
    %c0_i32 = arith.constant 0 : i32
    %c0_i32_0 = arith.constant 0 : i32
    %c0_i32_1 = arith.constant 0 : i32
    return %c0_i32, %c0_i32_0 : i32, i32
  }
  func.func @transform_7(%arg0: i32) -> (i32, i32) {
    %c0_i32 = arith.constant 0 : i32
    %c0_i32_0 = arith.constant 0 : i32
    %c0_i32_1 = arith.constant 0 : i32
    return %c0_i32, %c0_i32_0 : i32, i32
  }
  func.func @transform_8(%arg0: i32) -> (i32, i32) {
    %c0_i32 = arith.constant 0 : i32
    %c0_i32_0 = arith.constant 0 : i32
    %c0_i32_1 = arith.constant 0 : i32
    return %c0_i32, %c0_i32_0 : i32, i32
  }
  func.func @transform_9(%arg0: i32) -> (i32, i32) {
    %c0_i32 = arith.constant 0 : i32
    %c0_i32_0 = arith.constant 0 : i32
    %c0_i32_1 = arith.constant 0 : i32
    return %c0_i32, %c0_i32_0 : i32, i32
  }
  func.func @transform_10(%arg0: i32) -> (i32, i32, i32) {
    %c0_i32 = arith.constant 0 : i32
    %c0_i32_0 = arith.constant 0 : i32
    %c0_i32_1 = arith.constant 0 : i32
    %c0_i32_2 = arith.constant 0 : i32
    return %c0_i32, %c0_i32_0, %c0_i32_1 : i32, i32, i32
  }
  func.func @transform_11(%arg0: i32) -> (i32, i32, i32) {
    %c0_i32 = arith.constant 0 : i32
    %c0_i32_0 = arith.constant 0 : i32
    %c0_i32_1 = arith.constant 0 : i32
    %c0_i32_2 = arith.constant 0 : i32
    return %c0_i32, %c0_i32_0, %c0_i32_1 : i32, i32, i32
  }
}

</mosaic_0001>

<llo_original>
// kernel: forward.1
$region0: #{forward.1}
  #allocation0 [shape = 'u32[]', space=smem, size = 0x4, offset = 0x4, fixed_abs, tag = 'smem constant byte address 0x4 - core index']
  #allocation1 [shape = 'u32[144,128]{1,0:T(1,128)}', space=vmem, size = 0x12000, scoped, tag = 'internal scratch']
  #allocation2 [shape = 'f32[16,32]{1,0:T(8,128)}', space=vmem, size = 0x2000, scoped, tag = 'scratch operand']
  #allocation3 [shape = 'f32[16,128]{1,0:T(8,128)}', space=vmem, size = 0x2000, scoped, tag = 'scratch operand']
  #allocation4 [shape = 'f32[8,2,128]{2,1,0:T(2,128)}', space=vmem, size = 0x2000, scoped, tag = 'scratch operand']
  #allocation5 [shape = 'f32[16,32]{1,0:T(8,128)}', space=vmem, size = 0x2000, scoped, tag = 'scratch operand']
  %s0 = inlined_call_operand.hbm [shape: f32[16,32], index: 0, kind: input, shape index: {}]
  %s1 = inlined_call_operand.vmem [shape: f32[4,2,16], index: 1, kind: input, shape index: {}]
  %s2 = inlined_call_operand.vmem [shape: f32[4,2,16], index: 2, kind: input, shape index: {}]
  %s3 = inlined_call_operand.hbm [shape: f32[32,128], index: 3, kind: input, shape index: {}]
  %s4 = inlined_call_operand.hbm [shape: f32[32,128], index: 4, kind: input, shape index: {}]
  %s5 = inlined_call_operand.hbm [shape: f32[1,128], index: 5, kind: input, shape index: {}]
  %s6 = inlined_call_operand.hbm [shape: f32[32,128], index: 6, kind: input, shape index: {}]
  %s7 = inlined_call_operand.hbm [shape: f32[32,128], index: 7, kind: input, shape index: {}]
  %s8 = inlined_call_operand.hbm [shape: f32[1,128], index: 8, kind: input, shape index: {}]
  %s9 = inlined_call_operand.hbm [shape: f32[16,32], index: 9, kind: output, shape index: {0}]
  %s10 = inlined_call_operand.hbm [shape: f32[4,2,16], index: 10, kind: output, shape index: {1}]
  %s11 = inlined_call_operand.hbm [shape: f32[4,2,16], index: 11, kind: output, shape index: {2}]
  %12 = xla_tuple %s9, %s10, %s11
  %s13 = sld [smem:[#allocation0]]
  $region90: #{forward.1} parent=0
    _
  %s15 = ssub.s32 1, %s13
  %s16 = scalar_select 0, %s15, %s13
  $region1: #{forward.1} parent=0
    #allocation6 [shape = 'u8[8192]{0}', space=vmem, size = 0x2000, scoped, tag = 'input window, operand 0, single buffered']
    #allocation7 [shape = 's32[1]{0}', space=sflag, size = 0x4, scoped, tag = 'scoped memory for forward.1']
    #allocation8 [shape = 's32[1]{0}', space=sflag, size = 0x4, scoped, tag = 'scoped memory for forward.1']
    #allocation9 [shape = 'u8[16384]{0}', space=vmem, size = 0x4000, scoped, tag = 'input window, operand 3, single buffered']
    #allocation10 [shape = 's32[1]{0}', space=sflag, size = 0x4, scoped, tag = 'scoped memory for forward.1']
    #allocation11 [shape = 'u8[16384]{0}', space=vmem, size = 0x4000, scoped, tag = 'input window, operand 4, single buffered']
    #allocation12 [shape = 'u8[512]{0}', space=vmem, size = 0x400, scoped, tag = 'input window, operand 5, single buffered']
    #allocation13 [shape = 's32[1]{0}', space=sflag, size = 0x4, scoped, tag = 'scoped memory for forward.1']
    #allocation14 [shape = 'u8[16384]{0}', space=vmem, size = 0x4000, scoped, tag = 'input window, operand 6, single buffered']
    #allocation15 [shape = 'u8[16384]{0}', space=vmem, size = 0x4000, scoped, tag = 'input window, operand 7, single buffered']
    #allocation16 [shape = 's32[1]{0}', space=sflag, size = 0x4, scoped, tag = 'scoped memory for forward.1']
    #allocation17 [shape = 'u8[512]{0}', space=vmem, size = 0x400, scoped, tag = 'input window, operand 8, single buffered']
    #allocation18 [shape = 'u8[8192]{0}', space=vmem, size = 0x2000, scoped, tag = 'output window, operand 0, single buffered']
    #allocation19 [shape = 'u8[4096]{0}', space=vmem, size = 0x1000, scoped, tag = 'output window, operand 1, single buffered']
    #allocation20 [shape = 's32[1]{0}', space=sflag, size = 0x4, scoped, tag = 'scoped memory for forward.1']
    #allocation21 [shape = 'u8[4096]{0}', space=vmem, size = 0x1000, scoped, tag = 'output window, operand 2, single buffered']
    %17 = vsyncpa [#allocation7], 0
    %18 = vsyncpa [#allocation10], 0
    %19 = vsyncpa [#allocation13], 0
    %20 = vsyncpa [#allocation16], 0
    %21 = vsyncpa [#allocation8], 0
    %22 = vsyncpa [#allocation20], 0
    // Predicated region
    $region2: #{forward.1} parent=1 // pred_check
      _
    $region3: #{forward.1} parent=1 // pred_check_branch
      %24 = sbr.rel (0) target = $region5
    $region4: #{forward.1} parent=1 // pred_region
      %s26 = ssub.s32 256, 256
      %27 = vsyncadd [#allocation7], %s26
      %s28 = sshll.u32 [#allocation6], 4
      %s29 = int_to_ptr.vmem [resolvable:$true] %s28
      %34 = dma.hbm_to_vmem [thread:$0]  %s0, 256, %s29, [#allocation7], 128, 128, 8
    $region5: #{forward.1} parent=1 // pred_fallthru
      _
    // Predicated region
    $region6: #{forward.1} parent=1 // pred_check
      _
    $region7: #{forward.1} parent=1 // pred_check_branch
      %36 = sbr.rel (0) target = $region9
    $region8: #{forward.1} parent=1 // pred_region
      _
    $region9: #{forward.1} parent=1 // pred_fallthru
      _
    // Predicated region
    $region10: #{forward.1} parent=1 // pred_check
      _
    $region11: #{forward.1} parent=1 // pred_check_branch
      %38 = sbr.rel (0) target = $region13
    $region12: #{forward.1} parent=1 // pred_region
      _
    $region13: #{forward.1} parent=1 // pred_fallthru
      _
    // Predicated region
    $region14: #{forward.1} parent=1 // pred_check
      _
    $region15: #{forward.1} parent=1 // pred_check_branch
      %40 = sbr.rel (0) target = $region17
    $region16: #{forward.1} parent=1 // pred_region
      %s42 = ssub.s32 512, 512
      %43 = vsyncadd [#allocation10], %s42
      %s44 = sshll.u32 [#allocation9], 4
      %s45 = int_to_ptr.vmem [resolvable:$true] %s44
      %50 = dma.hbm_to_vmem [thread:$0]  %s3, 512, %s45, [#allocation10], 128, 128, 8
    $region17: #{forward.1} parent=1 // pred_fallthru
      _
    // Predicated region
    $region18: #{forward.1} parent=1 // pred_check
      _
    $region19: #{forward.1} parent=1 // pred_check_branch
      %52 = sbr.rel (0) target = $region21
    $region20: #{forward.1} parent=1 // pred_region
      %s54 = ssub.s32 512, 512
      %55 = vsyncadd [#allocation10], %s54
      %s56 = sshll.u32 [#allocation11], 4
      %s57 = int_to_ptr.vmem [resolvable:$true] %s56
      %62 = dma.hbm_to_vmem [thread:$0]  %s4, 512, %s57, [#allocation10], 128, 128, 8
    $region21: #{forward.1} parent=1 // pred_fallthru
      _
    // Predicated region
    $region22: #{forward.1} parent=1 // pred_check
      _
    $region23: #{forward.1} parent=1 // pred_check_branch
      %64 = sbr.rel (0) target = $region25
    $region24: #{forward.1} parent=1 // pred_region
      %s66 = ssub.s32 16, 16
      %67 = vsyncadd [#allocation13], %s66
      %s69 = sshll.u32 [#allocation12], 4
      %s70 = int_to_ptr.vmem [resolvable:$true] %s69
      %72 = dma.hbm_to_vmem [thread:$0]  %s5, 16, %s70, [#allocation13]
    $region25: #{forward.1} parent=1 // pred_fallthru
      _
    // Predicated region
    $region26: #{forward.1} parent=1 // pred_check
      _
    $region27: #{forward.1} parent=1 // pred_check_branch
      %74 = sbr.rel (0) target = $region29
    $region28: #{forward.1} parent=1 // pred_region
      %s76 = ssub.s32 512, 512
      %77 = vsyncadd [#allocation13], %s76
      %s78 = sshll.u32 [#allocation14], 4
      %s79 = int_to_ptr.vmem [resolvable:$true] %s78
      %84 = dma.hbm_to_vmem [thread:$0]  %s6, 512, %s79, [#allocation13], 128, 128, 8
    $region29: #{forward.1} parent=1 // pred_fallthru
      _
    // Predicated region
    $region30: #{forward.1} parent=1 // pred_check
      _
    $region31: #{forward.1} parent=1 // pred_check_branch
      %86 = sbr.rel (0) target = $region33
    $region32: #{forward.1} parent=1 // pred_region
      %s88 = ssub.s32 512, 512
      %89 = vsyncadd [#allocation16], %s88
      %s90 = sshll.u32 [#allocation15], 4
      %s91 = int_to_ptr.vmem [resolvable:$true] %s90
      %96 = dma.hbm_to_vmem [thread:$0]  %s7, 512, %s91, [#allocation16], 128, 128, 8
    $region33: #{forward.1} parent=1 // pred_fallthru
      _
    // Predicated region
    $region34: #{forward.1} parent=1 // pred_check
      _
    $region35: #{forward.1} parent=1 // pred_check_branch
      %98 = sbr.rel (0) target = $region37
    $region36: #{forward.1} parent=1 // pred_region
      %s100 = ssub.s32 16, 16
      %101 = vsyncadd [#allocation16], %s100
      %s103 = sshll.u32 [#allocation17], 4
      %s104 = int_to_ptr.vmem [resolvable:$true] %s103
      %106 = dma.hbm_to_vmem [thread:$0]  %s8, 16, %s104, [#allocation16]
    $region37: #{forward.1} parent=1 // pred_fallthru
      _
    // Predicated region
    $region38: #{forward.1} parent=1 // pred_check
      _
    $region39: #{forward.1} parent=1 // pred_check_branch
      %108 = sbr.rel (0) target = $region41
    $region40: #{forward.1} parent=1 // pred_region
      %109 = dma.done [#allocation7], 256
    $region41: #{forward.1} parent=1 // pred_fallthru
      _
    // Predicated region
    $region42: #{forward.1} parent=1 // pred_check
      _
    $region43: #{forward.1} parent=1 // pred_check_branch
      %111 = sbr.rel (0) target = $region45
    $region44: #{forward.1} parent=1 // pred_region
      %112 = dma.done [#allocation10], 512
    $region45: #{forward.1} parent=1 // pred_fallthru
      _
    // Predicated region
    $region46: #{forward.1} parent=1 // pred_check
      _
    $region47: #{forward.1} parent=1 // pred_check_branch
      %114 = sbr.rel (0) target = $region49
    $region48: #{forward.1} parent=1 // pred_region
      %115 = dma.done [#allocation10], 512
    $region49: #{forward.1} parent=1 // pred_fallthru
      _
    // Predicated region
    $region50: #{forward.1} parent=1 // pred_check
      _
    $region51: #{forward.1} parent=1 // pred_check_branch
      %117 = sbr.rel (0) target = $region53
    $region52: #{forward.1} parent=1 // pred_region
      %118 = dma.done [#allocation13], 16
    $region53: #{forward.1} parent=1 // pred_fallthru
      _
    // Predicated region
    $region54: #{forward.1} parent=1 // pred_check
      _
    $region55: #{forward.1} parent=1 // pred_check_branch
      %120 = sbr.rel (0) target = $region57
    $region56: #{forward.1} parent=1 // pred_region
      %121 = dma.done [#allocation13], 512
    $region57: #{forward.1} parent=1 // pred_fallthru
      _
    // Predicated region
    $region58: #{forward.1} parent=1 // pred_check
      _
    $region59: #{forward.1} parent=1 // pred_check_branch
      %123 = sbr.rel (0) target = $region61
    $region60: #{forward.1} parent=1 // pred_region
      %124 = dma.done [#allocation16], 512
    $region61: #{forward.1} parent=1 // pred_fallthru
      _
    // Predicated region
    $region62: #{forward.1} parent=1 // pred_check
      _
    $region63: #{forward.1} parent=1 // pred_check_branch
      %126 = sbr.rel (0) target = $region65
    $region64: #{forward.1} parent=1 // pred_region
      %127 = dma.done [#allocation16], 16
    $region65: #{forward.1} parent=1 // pred_fallthru
      _
    %v128 = vld [vmem:[#allocation6] sm:$0x1]
    %vm129 = vcmask 253952
    %130 = vst.msk [vmem:[#allocation2] sm:$0x1] %vm129, %v128
    %v131 = vld [vmem:[#allocation6 + $0x1] sm:$0x1]
    %132 = vst.msk [vmem:[#allocation2 + $0x2] sm:$0x1] %vm129, %v131
    %v133 = vld [vmem:[#allocation6 + $0x2] sm:$0x1]
    %134 = vst.msk [vmem:[#allocation2 + $0x4] sm:$0x1] %vm129, %v133
    %v135 = vld [vmem:[#allocation6 + $0x3] sm:$0x1]
    %136 = vst.msk [vmem:[#allocation2 + $0x6] sm:$0x1] %vm129, %v135
    %v137 = vld [vmem:[#allocation6 + $0x4] sm:$0x1]
    %138 = vst.msk [vmem:[#allocation2 + $0x8] sm:$0x1] %vm129, %v137
    %v139 = vld [vmem:[#allocation6 + $0x5] sm:$0x1]
    %140 = vst.msk [vmem:[#allocation2 + $0xa] sm:$0x1] %vm129, %v139
    %v141 = vld [vmem:[#allocation6 + $0x6] sm:$0x1]
    %142 = vst.msk [vmem:[#allocation2 + $0xc] sm:$0x1] %vm129, %v141
    %v143 = vld [vmem:[#allocation6 + $0x7] sm:$0x1]
    %144 = vst.msk [vmem:[#allocation2 + $0xe] sm:$0x1] %vm129, %v143
    %v145 = vld [vmem:[#allocation6 + $0x8] sm:$0x1]
    %146 = vst.msk [vmem:[#allocation2 + $0x1] sm:$0x1] %vm129, %v145
    %v147 = vld [vmem:[#allocation6 + $0x9] sm:$0x1]
    %148 = vst.msk [vmem:[#allocation2 + $0x3] sm:$0x1] %vm129, %v147
    %v149 = vld [vmem:[#allocation6 + $0xa] sm:$0x1]
    %150 = vst.msk [vmem:[#allocation2 + $0x5] sm:$0x1] %vm129, %v149
    %v151 = vld [vmem:[#allocation6 + $0xb] sm:$0x1]
    %152 = vst.msk [vmem:[#allocation2 + $0x7] sm:$0x1] %vm129, %v151
    %v153 = vld [vmem:[#allocation6 + $0xc] sm:$0x1]
    %154 = vst.msk [vmem:[#allocation2 + $0x9] sm:$0x1] %vm129, %v153
    %v155 = vld [vmem:[#allocation6 + $0xd] sm:$0x1]
    %156 = vst.msk [vmem:[#allocation2 + $0xb] sm:$0x1] %vm129, %v155
    %v157 = vld [vmem:[#allocation6 + $0xe] sm:$0x1]
    %158 = vst.msk [vmem:[#allocation2 + $0xd] sm:$0x1] %vm129, %v157
    %v159 = vld [vmem:[#allocation6 + $0xf] sm:$0x1]
    %160 = vst.msk [vmem:[#allocation2 + $0xf] sm:$0x1] %vm129, %v159
    %v161 = vlaneseq
    %v162 = vand.u32 %v161, 127
    %vm163 = vcmp.lt.s32.totalorder %v162, 0
    %v164 = vsub.s32 0, %v162
    %v165 = vsel %vm163, %v164, %v162
    %v166 = vshrl.u32 %v165, 5
    %v167 = vand.u32 %v165, 31
    %v168 = vsub.s32 0, %v167
    %v169 = vsel %vm163, %v168, %v167
    %vm170 = vcmp.ne.s32.totalorder %v169, 0
    %vm171 = vcmp.lt.s32.totalorder %v169, 0
    %vm172 = vmand %vm171, %vm170
    %v173 = vadd.s32 %v169, 32
    %v174 = vsel %vm172, %v173, %v169
    %vm175 = vcmp.lt.s32.totalorder %v174, 16
    %v176 = vld [vmem:[#allocation2] sm:$0xff]
    %v177 = vld [vmem:[#allocation2 + $0x8] sm:$0xff]
    %v178 = vld [vmem:[#allocation9] sm:$0xff]
    %v179 = vld [vmem:[#allocation9 + $0x8] sm:$0xff]
    %v180 = vld [vmem:[#allocation9 + $0x10] sm:$0xff]
    %v181 = vld [vmem:[#allocation9 + $0x18] sm:$0xff]
    %v182 = vld [vmem:[#allocation12] sm:$0x1]
    %v184 = vlaneseq
    %v185 = vshrl.u32 %v184, 7
    %v186 = vsub.s32 0, %v185
    %v187 = vrot.slane %v182, %v186
    %vm189 = vcmask 261120
    %v191 = vsel %vm189, %v176, 0
    %v194 = vsel %vm189, %v177, 0
    %196 = vmatprep.subr.mxu0 0.0
    %197 = vmatpush1.msra.mxu0 0.0
    %198 = vmatprep.subr.mxu0 0.0
    %199 = vmatpush1.msra.mxu0 0.0
    %200 = vmatprep.subr.mxu0 0.0
    %201 = vmatpush1.msra.mxu0 0.0
    %202 = vmatprep.subr.mxu0 0.0
    %203 = vmatpush1.msra.mxu0 0.0
    %204 = vmatprep.subr.mxu0 0.0
    %205 = vmatpush1.msra.mxu0 0.0
    %206 = vmatprep.subr.mxu0 0.0
    %207 = vmatpush1.msra.mxu0 0.0
    %208 = vmatprep.subr.mxu0 0.0
    %209 = vmatpush1.msra.mxu0 0.0
    %210 = vmatprep.subr.mxu0 0.0
    %211 = vmatpush1.msra.mxu0 0.0
    %212 = vmatprep.subr.mxu0 0.0
    %213 = vmatpush1.msra.mxu0 0.0
    %214 = vmatprep.subr.mxu0 0.0
    %215 = vmatpush1.msra.mxu0 0.0
    %216 = vmatprep.subr.mxu0 0.0
    %217 = vmatpush1.msra.mxu0 0.0
    %218 = vmatprep.subr.mxu0 0.0
    %219 = vmatpush1.msra.mxu0 0.0
    %220 = vmatprep.subr.mxu0 0.0
    %221 = vmatpush1.msra.mxu0 %v181
    %222 = vmatprep.subr.mxu0 0.0
    %223 = vmatpush1.msra.mxu0 %v180
    %224 = vmatprep.subr.mxu0 0.0
    %225 = vmatpush1.msra.mxu0 %v179
    %226 = vmatprep.subr.mxu0 0.0
    %227 = vmatpush1.msra.mxu0 %v178
    %228 = vmatprep.subr.mxu0 0.0
    %229 = vmatpush2.msra.mxu0 0.0
    %230 = vmatprep.subr.mxu0 0.0
    %231 = vmatpush2.msra.mxu0 0.0
    %232 = vmatprep.subr.mxu0 0.0
    %233 = vmatpush2.msra.mxu0 0.0
    %234 = vmatprep.subr.mxu0 0.0
    %235 = vmatpush2.msra.mxu0 0.0
    %236 = vmatprep.subr.mxu0 0.0
    %237 = vmatpush2.msra.mxu0 0.0
    %238 = vmatprep.subr.mxu0 0.0
    %239 = vmatpush2.msra.mxu0 0.0
    %240 = vmatprep.subr.mxu0 0.0
    %241 = vmatpush2.msra.mxu0 0.0
    %242 = vmatprep.subr.mxu0 0.0
    %243 = vmatpush2.msra.mxu0 0.0
    %244 = vmatprep.subr.mxu0 0.0
    %245 = vmatpush2.msra.mxu0 0.0
    %246 = vmatprep.subr.mxu0 0.0
    %247 = vmatpush2.msra.mxu0 0.0
    %248 = vmatprep.subr.mxu0 0.0
    %249 = vmatpush2.msra.mxu0 0.0
    %250 = vmatprep.subr.mxu0 0.0
    %251 = vmatpush2.msra.mxu0 0.0
    %252 = vmatprep.subr.mxu0 0.0
    %253 = vmatpush2.msra.mxu0 0.0
    %254 = vmatprep.subr.mxu0 0.0
    %255 = vmatpush2.msra.mxu0 0.0
    %256 = vmatprep.subr.mxu0 0.0
    %257 = vmatpush2.msra.mxu0 0.0
    %258 = vmatprep.subr.mxu0 0.0
    %259 = vmatpush2.msra.mxu0 0.0
    %260 = vmatprep.mubr.f32.mxu0 0.0
    %261 = vmatmul.mubr.f32.gmra.mxu0 %v191
    %v262 = vpop.f32.mrf.mxu0
    %v263 = vadd.f32 %v187, %v262
    %v264 = vpop.f32.mrf.mxu0
    %265 = vmatprep.mubr.f32.mxu0 0.0
    %266 = vmatmul.mubr.f32.gmra.mxu0 %v194
    %v267 = vpop.f32.mrf.mxu0
    %v268 = vadd.f32 %v187, %v267
    %v269 = vpop.f32.mrf.mxu0
    %270 = vdwg.mxu0
    %271 = vst [vmem:[#allocation3] sm:$0xff] %v263
    %272 = vst [vmem:[#allocation3 + $0x8] sm:$0xff] %v268
    %v273 = vld [vmem:[#allocation3] sm:$0x3]
    %v274 = vld [vmem:[#allocation3 + $0xe] sm:$0x3]
    %v275 = vsel %vm175, %v273, %v274
    %276 = vst [vmem:[#allocation4] sm:$0x3] %v275
    %v277 = vld [vmem:[#allocation3 + $0x2] sm:$0x3]
    %v278 = vld [vmem:[#allocation3 + $0xc] sm:$0x3]
    %v279 = vsel %vm175, %v277, %v278
    %s280 = scalar_lea.vmem [#allocation4], 2
    %281 = vst [vmem:[%s280] sm:$0x3] %v279
    %v282 = vld [vmem:[#allocation3 + $0x4] sm:$0x3]
    %v283 = vld [vmem:[#allocation3 + $0xa] sm:$0x3]
    %v284 = vsel %vm175, %v282, %v283
    %s285 = scalar_lea.vmem [#allocation4], 4
    %286 = vst [vmem:[%s285] sm:$0x3] %v284
    %v287 = vld [vmem:[#allocation3 + $0x6] sm:$0x3]
    %v288 = vld [vmem:[#allocation3 + $0x8] sm:$0x3]
    %v289 = vsel %vm175, %v287, %v288
    %s290 = scalar_lea.vmem [#allocation4], 6
    %291 = vst [vmem:[%s290] sm:$0x3] %v289
    %v292 = vld [vmem:[#allocation3 + $0x8] sm:$0x3]
    %v293 = vld [vmem:[#allocation3 + $0x6] sm:$0x3]
    %v294 = vsel %vm175, %v292, %v293
    %s295 = scalar_lea.vmem [#allocation4], 8
    %296 = vst [vmem:[%s295] sm:$0x3] %v294
    %v297 = vld [vmem:[#allocation3 + $0xa] sm:$0x3]
    %v298 = vld [vmem:[#allocation3 + $0x4] sm:$0x3]
    %v299 = vsel %vm175, %v297, %v298
    %s300 = scalar_lea.vmem [#allocation4], 10
    %301 = vst [vmem:[%s300] sm:$0x3] %v299
    %v302 = vld [vmem:[#allocation3 + $0xc] sm:$0x3]
    %v303 = vld [vmem:[#allocation3 + $0x2] sm:$0x3]
    %v304 = vsel %vm175, %v302, %v303
    %s305 = scalar_lea.vmem [#allocation4], 12
    %306 = vst [vmem:[%s305] sm:$0x3] %v304
    %v307 = vld [vmem:[#allocation3 + $0xe] sm:$0x3]
    %v308 = vld [vmem:[#allocation3] sm:$0x3]
    %v309 = vsel %vm175, %v307, %v308
    %s310 = scalar_lea.vmem [#allocation4], 14
    %311 = vst [vmem:[%s310] sm:$0x3] %v309
    %v312 = vld [vmem:[#allocation11] sm:$0xff]
    %v313 = vld [vmem:[#allocation11 + $0x8] sm:$0xff]
    %v314 = vld [vmem:[#allocation11 + $0x10] sm:$0xff]
    %v315 = vld [vmem:[#allocation11 + $0x18] sm:$0xff]
    %v316 = vld [vmem:[%s1] sm:$0x3]
    %s317 = scalar_lea.vmem %s1, 2
    %v318 = vld [vmem:[%s317] sm:$0x3]
    %320 = vrot.lane.b32.xlu0 %v318, 16
    %v321 = vpop.permute.xlu0 %320
    %vm323 = vcmask 130048
    %v324 = vsel %vm323, %v316, %v321
    %v325 = vld [vmem:[%s2] sm:$0x3]
    %s326 = scalar_lea.vmem %s2, 2
    %v327 = vld [vmem:[%s326] sm:$0x3]
    %329 = vrot.lane.b32.xlu0 %v327, 16
    %v330 = vpop.permute.xlu0 %329
    %v332 = vsel %vm323, %v325, %v330
    %v333 = vld [vmem:[#allocation4] sm:$0x3]
    %v335 = vsel %vm189, %v324, 0
    %337 = vmatprep.subr.mxu0 0.0
    %338 = vmatpush1.msra.mxu0 0.0
    %339 = vmatprep.subr.mxu0 0.0
    %340 = vmatpush1.msra.mxu0 0.0
    %341 = vmatprep.subr.mxu0 0.0
    %342 = vmatpush1.msra.mxu0 0.0
    %343 = vmatprep.subr.mxu0 0.0
    %344 = vmatpush1.msra.mxu0 0.0
    %345 = vmatprep.subr.mxu0 0.0
    %346 = vmatpush1.msra.mxu0 0.0
    %347 = vmatprep.subr.mxu0 0.0
    %348 = vmatpush1.msra.mxu0 0.0
    %349 = vmatprep.subr.mxu0 0.0
    %350 = vmatpush1.msra.mxu0 0.0
    %351 = vmatprep.subr.mxu0 0.0
    %352 = vmatpush1.msra.mxu0 0.0
    %353 = vmatprep.subr.mxu0 0.0
    %354 = vmatpush1.msra.mxu0 0.0
    %355 = vmatprep.subr.mxu0 0.0
    %356 = vmatpush1.msra.mxu0 0.0
    %357 = vmatprep.subr.mxu0 0.0
    %358 = vmatpush1.msra.mxu0 0.0
    %359 = vmatprep.subr.mxu0 0.0
    %360 = vmatpush1.msra.mxu0 0.0
    %361 = vmatprep.subr.mxu0 0.0
    %362 = vmatpush1.msra.mxu0 %v315
    %363 = vmatprep.subr.mxu0 0.0
    %364 = vmatpush1.msra.mxu0 %v314
    %365 = vmatprep.subr.mxu0 0.0
    %366 = vmatpush1.msra.mxu0 %v313
    %367 = vmatprep.subr.mxu0 0.0
    %368 = vmatpush1.msra.mxu0 %v312
    %369 = vmatprep.subr.mxu0 0.0
    %370 = vmatpush2.msra.mxu0 0.0
    %371 = vmatprep.subr.mxu0 0.0
    %372 = vmatpush2.msra.mxu0 0.0
    %373 = vmatprep.subr.mxu0 0.0
    %374 = vmatpush2.msra.mxu0 0.0
    %375 = vmatprep.subr.mxu0 0.0
    %376 = vmatpush2.msra.mxu0 0.0
    %377 = vmatprep.subr.mxu0 0.0
    %378 = vmatpush2.msra.mxu0 0.0
    %379 = vmatprep.subr.mxu0 0.0
    %380 = vmatpush2.msra.mxu0 0.0
    %381 = vmatprep.subr.mxu0 0.0
    %382 = vmatpush2.msra.mxu0 0.0
    %383 = vmatprep.subr.mxu0 0.0
    %384 = vmatpush2.msra.mxu0 0.0
    %385 = vmatprep.subr.mxu0 0.0
    %386 = vmatpush2.msra.mxu0 0.0
    %387 = vmatprep.subr.mxu0 0.0
    %388 = vmatpush2.msra.mxu0 0.0
    %389 = vmatprep.subr.mxu0 0.0
    %390 = vmatpush2.msra.mxu0 0.0
    %391 = vmatprep.subr.mxu0 0.0
    %392 = vmatpush2.msra.mxu0 0.0
    %393 = vmatprep.subr.mxu0 0.0
    %394 = vmatpush2.msra.mxu0 0.0
    %395 = vmatprep.subr.mxu0 0.0
    %396 = vmatpush2.msra.mxu0 0.0
    %397 = vmatprep.subr.mxu0 0.0
    %398 = vmatpush2.msra.mxu0 0.0
    %399 = vmatprep.subr.mxu0 0.0
    %400 = vmatpush2.msra.mxu0 0.0
    %401 = vmatprep.mubr.f32.mxu0 0.0
    %402 = vmatmul.mubr.f32.gmra.mxu0 %v335
    %v403 = vpop.f32.mrf.mxu0
    %v404 = vadd.f32 0.0, %v403
    %v405 = vpop.f32.mrf.mxu0
    %406 = vdwg.mxu0
    %v407 = vadd.f32 %v333, %v404
    %v408 = vxor.u32 %v407, 2147483648
    %v409 = vmul.f32 %v408, 1.442695
    %v410 = vpow.pop %v409
    %v411 = vadd.f32 %v410, 1.0
    %v412 = vrcp.pop %v411
    %v413 = vmul.f32 1.0, %v412
    %v414 = vtanh.pop %v407
    %416 = vrot.lane.b32.xlu0 %v332, 32
    %v417 = vpop.permute.xlu0 %416
    %v419 = vmul.f32 %v413, %v417
    %421 = vrot.lane.b32.xlu0 %v414, 64
    %v422 = vpop.permute.xlu0 %421
    %v424 = vmul.f32 %v413, %v422
    %426 = vrot.lane.b32.xlu0 %v424, 32
    %v427 = vpop.permute.xlu0 %426
    %v429 = vadd.f32 %v419, %v427
    %v430 = vtanh.pop %v429
    %432 = vrot.lane.b32.xlu0 %v430, 64
    %v433 = vpop.permute.xlu0 %432
    %v435 = vmul.f32 %v413, %v433
    %437 = vrot.lane.b32.xlu0 %v435, 32
    %v438 = vpop.permute.xlu0 %437
    %vm440 = vcmask 123904
    %441 = vst.msk [vmem:[#allocation5] sm:$0x3] %vm440, %v438
    %vm442 = vcmask 255104
    %443 = vst.msk [vmem:[#allocation5 + $0xe] sm:$0x3] %vm442, %v438
    %v444 = vld [vmem:[%s280] sm:$0x3]
    %v445 = vsel %vm189, %v438, 0
    %447 = vmatprep.subr.mxu0 0.0
    %448 = vmatpush1.msra.mxu0 0.0
    %449 = vmatprep.subr.mxu0 0.0
    %450 = vmatpush1.msra.mxu0 0.0
    %451 = vmatprep.subr.mxu0 0.0
    %452 = vmatpush1.msra.mxu0 0.0
    %453 = vmatprep.subr.mxu0 0.0
    %454 = vmatpush1.msra.mxu0 0.0
    %455 = vmatprep.subr.mxu0 0.0
    %456 = vmatpush1.msra.mxu0 0.0
    %457 = vmatprep.subr.mxu0 0.0
    %458 = vmatpush1.msra.mxu0 0.0
    %459 = vmatprep.subr.mxu0 0.0
    %460 = vmatpush1.msra.mxu0 0.0
    %461 = vmatprep.subr.mxu0 0.0
    %462 = vmatpush1.msra.mxu0 0.0
    %463 = vmatprep.subr.mxu0 0.0
    %464 = vmatpush1.msra.mxu0 0.0
    %465 = vmatprep.subr.mxu0 0.0
    %466 = vmatpush1.msra.mxu0 0.0
    %467 = vmatprep.subr.mxu0 0.0
    %468 = vmatpush1.msra.mxu0 0.0
    %469 = vmatprep.subr.mxu0 0.0
    %470 = vmatpush1.msra.mxu0 0.0
    %471 = vmatprep.subr.mxu0 0.0
    %472 = vmatpush1.msra.mxu0 %v315
    %473 = vmatprep.subr.mxu0 0.0
    %474 = vmatpush1.msra.mxu0 %v314
    %475 = vmatprep.subr.mxu0 0.0
    %476 = vmatpush1.msra.mxu0 %v313
    %477 = vmatprep.subr.mxu0 0.0
    %478 = vmatpush1.msra.mxu0 %v312
    %479 = vmatprep.subr.mxu0 0.0
    %480 = vmatpush2.msra.mxu0 0.0
    %481 = vmatprep.subr.mxu0 0.0
    %482 = vmatpush2.msra.mxu0 0.0
    %483 = vmatprep.subr.mxu0 0.0
    %484 = vmatpush2.msra.mxu0 0.0
    %485 = vmatprep.subr.mxu0 0.0
    %486 = vmatpush2.msra.mxu0 0.0
    %487 = vmatprep.subr.mxu0 0.0
    %488 = vmatpush2.msra.mxu0 0.0
    %489 = vmatprep.subr.mxu0 0.0
    %490 = vmatpush2.msra.mxu0 0.0
    %491 = vmatprep.subr.mxu0 0.0
    %492 = vmatpush2.msra.mxu0 0.0
    %493 = vmatprep.subr.mxu0 0.0
    %494 = vmatpush2.msra.mxu0 0.0
    %495 = vmatprep.subr.mxu0 0.0
    %496 = vmatpush2.msra.mxu0 0.0
    %497 = vmatprep.subr.mxu0 0.0
    %498 = vmatpush2.msra.mxu0 0.0
    %499 = vmatprep.subr.mxu0 0.0
    %500 = vmatpush2.msra.mxu0 0.0
    %501 = vmatprep.subr.mxu0 0.0
    %502 = vmatpush2.msra.mxu0 0.0
    %503 = vmatprep.subr.mxu0 0.0
    %504 = vmatpush2.msra.mxu0 0.0
    %505 = vmatprep.subr.mxu0 0.0
    %506 = vmatpush2.msra.mxu0 0.0
    %507 = vmatprep.subr.mxu0 0.0
    %508 = vmatpush2.msra.mxu0 0.0
    %509 = vmatprep.subr.mxu0 0.0
    %510 = vmatpush2.msra.mxu0 0.0
    %511 = vmatprep.mubr.f32.mxu0 0.0
    %512 = vmatmul.mubr.f32.gmra.mxu0 %v445
    %v513 = vpop.f32.mrf.mxu0
    %v514 = vadd.f32 0.0, %v513
    %v515 = vpop.f32.mrf.mxu0
    %516 = vdwg.mxu0
    %v517 = vadd.f32 %v444, %v514
    %v518 = vxor.u32 %v517, 2147483648
    %v519 = vmul.f32 %v518, 1.442695
    %v520 = vpow.pop %v519
    %v521 = vadd.f32 %v520, 1.0
    %v522 = vrcp.pop %v521
    %v523 = vmul.f32 1.0, %v522
    %v524 = vtanh.pop %v517
    %v525 = vmul.f32 %v523, %v429
    %527 = vrot.lane.b32.xlu0 %v524, 64
    %v528 = vpop.permute.xlu0 %527
    %v530 = vmul.f32 %v523, %v528
    %532 = vrot.lane.b32.xlu0 %v530, 32
    %v533 = vpop.permute.xlu0 %532
    %v535 = vadd.f32 %v525, %v533
    %v536 = vtanh.pop %v535
    %538 = vrot.lane.b32.xlu0 %v536, 64
    %v539 = vpop.permute.xlu0 %538
    %v541 = vmul.f32 %v523, %v539
    %543 = vrot.lane.b32.xlu0 %v541, 32
    %v544 = vpop.permute.xlu0 %543
    %546 = vst.msk [vmem:[#allocation5 + $0x2] sm:$0x3] %vm440, %v544
    %547 = vst.msk [vmem:[#allocation5 + $0xc] sm:$0x3] %vm442, %v544
    %v548 = vld [vmem:[%s285] sm:$0x3]
    %v549 = vsel %vm189, %v544, 0
    %551 = vmatprep.subr.mxu0 0.0
    %552 = vmatpush1.msra.mxu0 0.0
    %553 = vmatprep.subr.mxu0 0.0
    %554 = vmatpush1.msra.mxu0 0.0
    %555 = vmatprep.subr.mxu0 0.0
    %556 = vmatpush1.msra.mxu0 0.0
    %557 = vmatprep.subr.mxu0 0.0
    %558 = vmatpush1.msra.mxu0 0.0
    %559 = vmatprep.subr.mxu0 0.0
    %560 = vmatpush1.msra.mxu0 0.0
    %561 = vmatprep.subr.mxu0 0.0
    %562 = vmatpush1.msra.mxu0 0.0
    %563 = vmatprep.subr.mxu0 0.0
    %564 = vmatpush1.msra.mxu0 0.0
    %565 = vmatprep.subr.mxu0 0.0
    %566 = vmatpush1.msra.mxu0 0.0
    %567 = vmatprep.subr.mxu0 0.0
    %568 = vmatpush1.msra.mxu0 0.0
    %569 = vmatprep.subr.mxu0 0.0
    %570 = vmatpush1.msra.mxu0 0.0
    %571 = vmatprep.subr.mxu0 0.0
    %572 = vmatpush1.msra.mxu0 0.0
    %573 = vmatprep.subr.mxu0 0.0
    %574 = vmatpush1.msra.mxu0 0.0
    %575 = vmatprep.subr.mxu0 0.0
    %576 = vmatpush1.msra.mxu0 %v315
    %577 = vmatprep.subr.mxu0 0.0
    %578 = vmatpush1.msra.mxu0 %v314
    %579 = vmatprep.subr.mxu0 0.0
    %580 = vmatpush1.msra.mxu0 %v313
    %581 = vmatprep.subr.mxu0 0.0
    %582 = vmatpush1.msra.mxu0 %v312
    %583 = vmatprep.subr.mxu0 0.0
    %584 = vmatpush2.msra.mxu0 0.0
    %585 = vmatprep.subr.mxu0 0.0
    %586 = vmatpush2.msra.mxu0 0.0
    %587 = vmatprep.subr.mxu0 0.0
    %588 = vmatpush2.msra.mxu0 0.0
    %589 = vmatprep.subr.mxu0 0.0
    %590 = vmatpush2.msra.mxu0 0.0
    %591 = vmatprep.subr.mxu0 0.0
    %592 = vmatpush2.msra.mxu0 0.0
    %593 = vmatprep.subr.mxu0 0.0
    %594 = vmatpush2.msra.mxu0 0.0
    %595 = vmatprep.subr.mxu0 0.0
    %596 = vmatpush2.msra.mxu0 0.0
    %597 = vmatprep.subr.mxu0 0.0
    %598 = vmatpush2.msra.mxu0 0.0
    %599 = vmatprep.subr.mxu0 0.0
    %600 = vmatpush2.msra.mxu0 0.0
    %601 = vmatprep.subr.mxu0 0.0
    %602 = vmatpush2.msra.mxu0 0.0
    %603 = vmatprep.subr.mxu0 0.0
    %604 = vmatpush2.msra.mxu0 0.0
    %605 = vmatprep.subr.mxu0 0.0
    %606 = vmatpush2.msra.mxu0 0.0
    %607 = vmatprep.subr.mxu0 0.0
    %608 = vmatpush2.msra.mxu0 0.0
    %609 = vmatprep.subr.mxu0 0.0
    %610 = vmatpush2.msra.mxu0 0.0
    %611 = vmatprep.subr.mxu0 0.0
    %612 = vmatpush2.msra.mxu0 0.0
    %613 = vmatprep.subr.mxu0 0.0
    %614 = vmatpush2.msra.mxu0 0.0
    %615 = vmatprep.mubr.f32.mxu0 0.0
    %616 = vmatmul.mubr.f32.gmra.mxu0 %v549
    %v617 = vpop.f32.mrf.mxu0
    %v618 = vadd.f32 0.0, %v617
    %v619 = vpop.f32.mrf.mxu0
    %620 = vdwg.mxu0
    %v621 = vadd.f32 %v548, %v618
    %v622 = vxor.u32 %v621, 2147483648
    %v623 = vmul.f32 %v622, 1.442695
    %v624 = vpow.pop %v623
    %v625 = vadd.f32 %v624, 1.0
    %v626 = vrcp.pop %v625
    %v627 = vmul.f32 1.0, %v626
    %v628 = vtanh.pop %v621
    %v629 = vmul.f32 %v627, %v535
    %631 = vrot.lane.b32.xlu0 %v628, 64
    %v632 = vpop.permute.xlu0 %631
    %v634 = vmul.f32 %v627, %v632
    %636 = vrot.lane.b32.xlu0 %v634, 32
    %v637 = vpop.permute.xlu0 %636
    %v639 = vadd.f32 %v629, %v637
    %v640 = vtanh.pop %v639
    %642 = vrot.lane.b32.xlu0 %v640, 64
    %v643 = vpop.permute.xlu0 %642
    %v645 = vmul.f32 %v627, %v643
    %647 = vrot.lane.b32.xlu0 %v645, 32
    %v648 = vpop.permute.xlu0 %647
    %650 = vst.msk [vmem:[#allocation5 + $0x4] sm:$0x3] %vm440, %v648
    %651 = vst.msk [vmem:[#allocation5 + $0xa] sm:$0x3] %vm442, %v648
    %v652 = vld [vmem:[%s290] sm:$0x3]
    %v653 = vsel %vm189, %v648, 0
    %655 = vmatprep.subr.mxu0 0.0
    %656 = vmatpush1.msra.mxu0 0.0
    %657 = vmatprep.subr.mxu0 0.0
    %658 = vmatpush1.msra.mxu0 0.0
    %659 = vmatprep.subr.mxu0 0.0
    %660 = vmatpush1.msra.mxu0 0.0
    %661 = vmatprep.subr.mxu0 0.0
    %662 = vmatpush1.msra.mxu0 0.0
    %663 = vmatprep.subr.mxu0 0.0
    %664 = vmatpush1.msra.mxu0 0.0
    %665 = vmatprep.subr.mxu0 0.0
    %666 = vmatpush1.msra.mxu0 0.0
    %667 = vmatprep.subr.mxu0 0.0
    %668 = vmatpush1.msra.mxu0 0.0
    %669 = vmatprep.subr.mxu0 0.0
    %670 = vmatpush1.msra.mxu0 0.0
    %671 = vmatprep.subr.mxu0 0.0
    %672 = vmatpush1.msra.mxu0 0.0
    %673 = vmatprep.subr.mxu0 0.0
    %674 = vmatpush1.msra.mxu0 0.0
    %675 = vmatprep.subr.mxu0 0.0
    %676 = vmatpush1.msra.mxu0 0.0
    %677 = vmatprep.subr.mxu0 0.0
    %678 = vmatpush1.msra.mxu0 0.0
    %679 = vmatprep.subr.mxu0 0.0
    %680 = vmatpush1.msra.mxu0 %v315
    %681 = vmatprep.subr.mxu0 0.0
    %682 = vmatpush1.msra.mxu0 %v314
    %683 = vmatprep.subr.mxu0 0.0
    %684 = vmatpush1.msra.mxu0 %v313
    %685 = vmatprep.subr.mxu0 0.0
    %686 = vmatpush1.msra.mxu0 %v312
    %687 = vmatprep.subr.mxu0 0.0
    %688 = vmatpush2.msra.mxu0 0.0
    %689 = vmatprep.subr.mxu0 0.0
    %690 = vmatpush2.msra.mxu0 0.0
    %691 = vmatprep.subr.mxu0 0.0
    %692 = vmatpush2.msra.mxu0 0.0
    %693 = vmatprep.subr.mxu0 0.0
    %694 = vmatpush2.msra.mxu0 0.0
    %695 = vmatprep.subr.mxu0 0.0
    %696 = vmatpush2.msra.mxu0 0.0
    %697 = vmatprep.subr.mxu0 0.0
    %698 = vmatpush2.msra.mxu0 0.0
    %699 = vmatprep.subr.mxu0 0.0
    %700 = vmatpush2.msra.mxu0 0.0
    %701 = vmatprep.subr.mxu0 0.0
    %702 = vmatpush2.msra.mxu0 0.0
    %703 = vmatprep.subr.mxu0 0.0
    %704 = vmatpush2.msra.mxu0 0.0
    %705 = vmatprep.subr.mxu0 0.0
    %706 = vmatpush2.msra.mxu0 0.0
    %707 = vmatprep.subr.mxu0 0.0
    %708 = vmatpush2.msra.mxu0 0.0
    %709 = vmatprep.subr.mxu0 0.0
    %710 = vmatpush2.msra.mxu0 0.0
    %711 = vmatprep.subr.mxu0 0.0
    %712 = vmatpush2.msra.mxu0 0.0
    %713 = vmatprep.subr.mxu0 0.0
    %714 = vmatpush2.msra.mxu0 0.0
    %715 = vmatprep.subr.mxu0 0.0
    %716 = vmatpush2.msra.mxu0 0.0
    %717 = vmatprep.subr.mxu0 0.0
    %718 = vmatpush2.msra.mxu0 0.0
    %719 = vmatprep.mubr.f32.mxu0 0.0
    %720 = vmatmul.mubr.f32.gmra.mxu0 %v653
    %v721 = vpop.f32.mrf.mxu0
    %v722 = vadd.f32 0.0, %v721
    %v723 = vpop.f32.mrf.mxu0
    %724 = vdwg.mxu0
    %v725 = vadd.f32 %v652, %v722
    %v726 = vxor.u32 %v725, 2147483648
    %v727 = vmul.f32 %v726, 1.442695
    %v728 = vpow.pop %v727
    %v729 = vadd.f32 %v728, 1.0
    %v730 = vrcp.pop %v729
    %v731 = vmul.f32 1.0, %v730
    %v732 = vtanh.pop %v725
    %v733 = vmul.f32 %v731, %v639
    %735 = vrot.lane.b32.xlu0 %v732, 64
    %v736 = vpop.permute.xlu0 %735
    %v738 = vmul.f32 %v731, %v736
    %740 = vrot.lane.b32.xlu0 %v738, 32
    %v741 = vpop.permute.xlu0 %740
    %v743 = vadd.f32 %v733, %v741
    %v744 = vtanh.pop %v743
    %746 = vrot.lane.b32.xlu0 %v744, 64
    %v747 = vpop.permute.xlu0 %746
    %v749 = vmul.f32 %v731, %v747
    %751 = vrot.lane.b32.xlu0 %v749, 32
    %v752 = vpop.permute.xlu0 %751
    %754 = vst.msk [vmem:[#allocation5 + $0x6] sm:$0x3] %vm440, %v752
    %755 = vst.msk [vmem:[#allocation5 + $0x8] sm:$0x3] %vm442, %v752
    %v756 = vld [vmem:[%s295] sm:$0x3]
    %v757 = vsel %vm189, %v752, 0
    %759 = vmatprep.subr.mxu0 0.0
    %760 = vmatpush1.msra.mxu0 0.0
    %761 = vmatprep.subr.mxu0 0.0
    %762 = vmatpush1.msra.mxu0 0.0
    %763 = vmatprep.subr.mxu0 0.0
    %764 = vmatpush1.msra.mxu0 0.0
    %765 = vmatprep.subr.mxu0 0.0
    %766 = vmatpush1.msra.mxu0 0.0
    %767 = vmatprep.subr.mxu0 0.0
    %768 = vmatpush1.msra.mxu0 0.0
    %769 = vmatprep.subr.mxu0 0.0
    %770 = vmatpush1.msra.mxu0 0.0
    %771 = vmatprep.subr.mxu0 0.0
    %772 = vmatpush1.msra.mxu0 0.0
    %773 = vmatprep.subr.mxu0 0.0
    %774 = vmatpush1.msra.mxu0 0.0
    %775 = vmatprep.subr.mxu0 0.0
    %776 = vmatpush1.msra.mxu0 0.0
    %777 = vmatprep.subr.mxu0 0.0
    %778 = vmatpush1.msra.mxu0 0.0
    %779 = vmatprep.subr.mxu0 0.0
    %780 = vmatpush1.msra.mxu0 0.0
    %781 = vmatprep.subr.mxu0 0.0
    %782 = vmatpush1.msra.mxu0 0.0
    %783 = vmatprep.subr.mxu0 0.0
    %784 = vmatpush1.msra.mxu0 %v315
    %785 = vmatprep.subr.mxu0 0.0
    %786 = vmatpush1.msra.mxu0 %v314
    %787 = vmatprep.subr.mxu0 0.0
    %788 = vmatpush1.msra.mxu0 %v313
    %789 = vmatprep.subr.mxu0 0.0
    %790 = vmatpush1.msra.mxu0 %v312
    %791 = vmatprep.subr.mxu0 0.0
    %792 = vmatpush2.msra.mxu0 0.0
    %793 = vmatprep.subr.mxu0 0.0
    %794 = vmatpush2.msra.mxu0 0.0
    %795 = vmatprep.subr.mxu0 0.0
    %796 = vmatpush2.msra.mxu0 0.0
    %797 = vmatprep.subr.mxu0 0.0
    %798 = vmatpush2.msra.mxu0 0.0
    %799 = vmatprep.subr.mxu0 0.0
    %800 = vmatpush2.msra.mxu0 0.0
    %801 = vmatprep.subr.mxu0 0.0
    %802 = vmatpush2.msra.mxu0 0.0
    %803 = vmatprep.subr.mxu0 0.0
    %804 = vmatpush2.msra.mxu0 0.0
    %805 = vmatprep.subr.mxu0 0.0
    %806 = vmatpush2.msra.mxu0 0.0
    %807 = vmatprep.subr.mxu0 0.0
    %808 = vmatpush2.msra.mxu0 0.0
    %809 = vmatprep.subr.mxu0 0.0
    %810 = vmatpush2.msra.mxu0 0.0
    %811 = vmatprep.subr.mxu0 0.0
    %812 = vmatpush2.msra.mxu0 0.0
    %813 = vmatprep.subr.mxu0 0.0
    %814 = vmatpush2.msra.mxu0 0.0
    %815 = vmatprep.subr.mxu0 0.0
    %816 = vmatpush2.msra.mxu0 0.0
    %817 = vmatprep.subr.mxu0 0.0
    %818 = vmatpush2.msra.mxu0 0.0
    %819 = vmatprep.subr.mxu0 0.0
    %820 = vmatpush2.msra.mxu0 0.0
    %821 = vmatprep.subr.mxu0 0.0
    %822 = vmatpush2.msra.mxu0 0.0
    %823 = vmatprep.mubr.f32.mxu0 0.0
    %824 = vmatmul.mubr.f32.gmra.mxu0 %v757
    %v825 = vpop.f32.mrf.mxu0
    %v826 = vadd.f32 0.0, %v825
    %v827 = vpop.f32.mrf.mxu0
    %828 = vdwg.mxu0
    %v829 = vadd.f32 %v756, %v826
    %v830 = vxor.u32 %v829, 2147483648
    %v831 = vmul.f32 %v830, 1.442695
    %v832 = vpow.pop %v831
    %v833 = vadd.f32 %v832, 1.0
    %v834 = vrcp.pop %v833
    %v835 = vmul.f32 1.0, %v834
    %v836 = vtanh.pop %v829
    %v837 = vmul.f32 %v835, %v743
    %839 = vrot.lane.b32.xlu0 %v836, 64
    %v840 = vpop.permute.xlu0 %839
    %v842 = vmul.f32 %v835, %v840
    %844 = vrot.lane.b32.xlu0 %v842, 32
    %v845 = vpop.permute.xlu0 %844
    %v847 = vadd.f32 %v837, %v845
    %v848 = vtanh.pop %v847
    %850 = vrot.lane.b32.xlu0 %v848, 64
    %v851 = vpop.permute.xlu0 %850
    %v853 = vmul.f32 %v835, %v851
    %855 = vrot.lane.b32.xlu0 %v853, 32
    %v856 = vpop.permute.xlu0 %855
    %858 = vst.msk [vmem:[#allocation5 + $0x8] sm:$0x3] %vm440, %v856
    %859 = vst.msk [vmem:[#allocation5 + $0x6] sm:$0x3] %vm442, %v856
    %v860 = vld [vmem:[%s300] sm:$0x3]
    %v861 = vsel %vm189, %v856, 0
    %863 = vmatprep.subr.mxu0 0.0
    %864 = vmatpush1.msra.mxu0 0.0
    %865 = vmatprep.subr.mxu0 0.0
    %866 = vmatpush1.msra.mxu0 0.0
    %867 = vmatprep.subr.mxu0 0.0
    %868 = vmatpush1.msra.mxu0 0.0
    %869 = vmatprep.subr.mxu0 0.0
    %870 = vmatpush1.msra.mxu0 0.0
    %871 = vmatprep.subr.mxu0 0.0
    %872 = vmatpush1.msra.mxu0 0.0
    %873 = vmatprep.subr.mxu0 0.0
    %874 = vmatpush1.msra.mxu0 0.0
    %875 = vmatprep.subr.mxu0 0.0
    %876 = vmatpush1.msra.mxu0 0.0
    %877 = vmatprep.subr.mxu0 0.0
    %878 = vmatpush1.msra.mxu0 0.0
    %879 = vmatprep.subr.mxu0 0.0
    %880 = vmatpush1.msra.mxu0 0.0
    %881 = vmatprep.subr.mxu0 0.0
    %882 = vmatpush1.msra.mxu0 0.0
    %883 = vmatprep.subr.mxu0 0.0
    %884 = vmatpush1.msra.mxu0 0.0
    %885 = vmatprep.subr.mxu0 0.0
    %886 = vmatpush1.msra.mxu0 0.0
    %887 = vmatprep.subr.mxu0 0.0
    %888 = vmatpush1.msra.mxu0 %v315
    %889 = vmatprep.subr.mxu0 0.0
    %890 = vmatpush1.msra.mxu0 %v314
    %891 = vmatprep.subr.mxu0 0.0
    %892 = vmatpush1.msra.mxu0 %v313
    %893 = vmatprep.subr.mxu0 0.0
    %894 = vmatpush1.msra.mxu0 %v312
    %895 = vmatprep.subr.mxu0 0.0
    %896 = vmatpush2.msra.mxu0 0.0
    %897 = vmatprep.subr.mxu0 0.0
    %898 = vmatpush2.msra.mxu0 0.0
    %899 = vmatprep.subr.mxu0 0.0
    %900 = vmatpush2.msra.mxu0 0.0
    %901 = vmatprep.subr.mxu0 0.0
    %902 = vmatpush2.msra.mxu0 0.0
    %903 = vmatprep.subr.mxu0 0.0
    %904 = vmatpush2.msra.mxu0 0.0
    %905 = vmatprep.subr.mxu0 0.0
    %906 = vmatpush2.msra.mxu0 0.0
    %907 = vmatprep.subr.mxu0 0.0
    %908 = vmatpush2.msra.mxu0 0.0
    %909 = vmatprep.subr.mxu0 0.0
    %910 = vmatpush2.msra.mxu0 0.0
    %911 = vmatprep.subr.mxu0 0.0
    %912 = vmatpush2.msra.mxu0 0.0
    %913 = vmatprep.subr.mxu0 0.0
    %914 = vmatpush2.msra.mxu0 0.0
    %915 = vmatprep.subr.mxu0 0.0
    %916 = vmatpush2.msra.mxu0 0.0
    %917 = vmatprep.subr.mxu0 0.0
    %918 = vmatpush2.msra.mxu0 0.0
    %919 = vmatprep.subr.mxu0 0.0
    %920 = vmatpush2.msra.mxu0 0.0
    %921 = vmatprep.subr.mxu0 0.0
    %922 = vmatpush2.msra.mxu0 0.0
    %923 = vmatprep.subr.mxu0 0.0
    %924 = vmatpush2.msra.mxu0 0.0
    %925 = vmatprep.subr.mxu0 0.0
    %926 = vmatpush2.msra.mxu0 0.0
    %927 = vmatprep.mubr.f32.mxu0 0.0
    %928 = vmatmul.mubr.f32.gmra.mxu0 %v861
    %v929 = vpop.f32.mrf.mxu0
    %v930 = vadd.f32 0.0, %v929
    %v931 = vpop.f32.mrf.mxu0
    %932 = vdwg.mxu0
    %v933 = vadd.f32 %v860, %v930
    %v934 = vxor.u32 %v933, 2147483648
    %v935 = vmul.f32 %v934, 1.442695
    %v936 = vpow.pop %v935
    %v937 = vadd.f32 %v936, 1.0
    %v938 = vrcp.pop %v937
    %v939 = vmul.f32 1.0, %v938
    %v940 = vtanh.pop %v933
    %v941 = vmul.f32 %v939, %v847
    %943 = vrot.lane.b32.xlu0 %v940, 64
    %v944 = vpop.permute.xlu0 %943
    %v946 = vmul.f32 %v939, %v944
    %948 = vrot.lane.b32.xlu0 %v946, 32
    %v949 = vpop.permute.xlu0 %948
    %v951 = vadd.f32 %v941, %v949
    %v952 = vtanh.pop %v951
    %954 = vrot.lane.b32.xlu0 %v952, 64
    %v955 = vpop.permute.xlu0 %954
    %v957 = vmul.f32 %v939, %v955
    %959 = vrot.lane.b32.xlu0 %v957, 32
    %v960 = vpop.permute.xlu0 %959
    %962 = vst.msk [vmem:[#allocation5 + $0xa] sm:$0x3] %vm440, %v960
    %963 = vst.msk [vmem:[#allocation5 + $0x4] sm:$0x3] %vm442, %v960
    %v964 = vld [vmem:[%s305] sm:$0x3]
    %v965 = vsel %vm189, %v960, 0
    %967 = vmatprep.subr.mxu0 0.0
    %968 = vmatpush1.msra.mxu0 0.0
    %969 = vmatprep.subr.mxu0 0.0
    %970 = vmatpush1.msra.mxu0 0.0
    %971 = vmatprep.subr.mxu0 0.0
    %972 = vmatpush1.msra.mxu0 0.0
    %973 = vmatprep.subr.mxu0 0.0
    %974 = vmatpush1.msra.mxu0 0.0
    %975 = vmatprep.subr.mxu0 0.0
    %976 = vmatpush1.msra.mxu0 0.0
    %977 = vmatprep.subr.mxu0 0.0
    %978 = vmatpush1.msra.mxu0 0.0
    %979 = vmatprep.subr.mxu0 0.0
    %980 = vmatpush1.msra.mxu0 0.0
    %981 = vmatprep.subr.mxu0 0.0
    %982 = vmatpush1.msra.mxu0 0.0
    %983 = vmatprep.subr.mxu0 0.0
    %984 = vmatpush1.msra.mxu0 0.0
    %985 = vmatprep.subr.mxu0 0.0
    %986 = vmatpush1.msra.mxu0 0.0
    %987 = vmatprep.subr.mxu0 0.0
    %988 = vmatpush1.msra.mxu0 0.0
    %989 = vmatprep.subr.mxu0 0.0
    %990 = vmatpush1.msra.mxu0 0.0
    %991 = vmatprep.subr.mxu0 0.0
    %992 = vmatpush1.msra.mxu0 %v315
    %993 = vmatprep.subr.mxu0 0.0
    %994 = vmatpush1.msra.mxu0 %v314
    %995 = vmatprep.subr.mxu0 0.0
    %996 = vmatpush1.msra.mxu0 %v313
    %997 = vmatprep.subr.mxu0 0.0
    %998 = vmatpush1.msra.mxu0 %v312
    %999 = vmatprep.subr.mxu0 0.0
    %1000 = vmatpush2.msra.mxu0 0.0
    %1001 = vmatprep.subr.mxu0 0.0
    %1002 = vmatpush2.msra.mxu0 0.0
    %1003 = vmatprep.subr.mxu0 0.0
    %1004 = vmatpush2.msra.mxu0 0.0
    %1005 = vmatprep.subr.mxu0 0.0
    %1006 = vmatpush2.msra.mxu0 0.0
    %1007 = vmatprep.subr.mxu0 0.0
    %1008 = vmatpush2.msra.mxu0 0.0
    %1009 = vmatprep.subr.mxu0 0.0
    %1010 = vmatpush2.msra.mxu0 0.0
    %1011 = vmatprep.subr.mxu0 0.0
    %1012 = vmatpush2.msra.mxu0 0.0
    %1013 = vmatprep.subr.mxu0 0.0
    %1014 = vmatpush2.msra.mxu0 0.0
    %1015 = vmatprep.subr.mxu0 0.0
    %1016 = vmatpush2.msra.mxu0 0.0
    %1017 = vmatprep.subr.mxu0 0.0
    %1018 = vmatpush2.msra.mxu0 0.0
    %1019 = vmatprep.subr.mxu0 0.0
    %1020 = vmatpush2.msra.mxu0 0.0
    %1021 = vmatprep.subr.mxu0 0.0
    %1022 = vmatpush2.msra.mxu0 0.0
    %1023 = vmatprep.subr.mxu0 0.0
    %1024 = vmatpush2.msra.mxu0 0.0
    %1025 = vmatprep.subr.mxu0 0.0
    %1026 = vmatpush2.msra.mxu0 0.0
    %1027 = vmatprep.subr.mxu0 0.0
    %1028 = vmatpush2.msra.mxu0 0.0
    %1029 = vmatprep.subr.mxu0 0.0
    %1030 = vmatpush2.msra.mxu0 0.0
    %1031 = vmatprep.mubr.f32.mxu0 0.0
    %1032 = vmatmul.mubr.f32.gmra.mxu0 %v965
    %v1033 = vpop.f32.mrf.mxu0
    %v1034 = vadd.f32 0.0, %v1033
    %v1035 = vpop.f32.mrf.mxu0
    %1036 = vdwg.mxu0
    %v1037 = vadd.f32 %v964, %v1034
    %v1038 = vxor.u32 %v1037, 2147483648
    %v1039 = vmul.f32 %v1038, 1.442695
    %v1040 = vpow.pop %v1039
    %v1041 = vadd.f32 %v1040, 1.0
    %v1042 = vrcp.pop %v1041
    %v1043 = vmul.f32 1.0, %v1042
    %v1044 = vtanh.pop %v1037
    %v1045 = vmul.f32 %v1043, %v951
    %1047 = vrot.lane.b32.xlu0 %v1044, 64
    %v1048 = vpop.permute.xlu0 %1047
    %v1050 = vmul.f32 %v1043, %v1048
    %1052 = vrot.lane.b32.xlu0 %v1050, 32
    %v1053 = vpop.permute.xlu0 %1052
    %v1055 = vadd.f32 %v1045, %v1053
    %v1056 = vtanh.pop %v1055
    %1058 = vrot.lane.b32.xlu0 %v1056, 64
    %v1059 = vpop.permute.xlu0 %1058
    %v1061 = vmul.f32 %v1043, %v1059
    %1063 = vrot.lane.b32.xlu0 %v1061, 32
    %v1064 = vpop.permute.xlu0 %1063
    %1066 = vst.msk [vmem:[#allocation5 + $0xc] sm:$0x3] %vm440, %v1064
    %1067 = vst.msk [vmem:[#allocation5 + $0x2] sm:$0x3] %vm442, %v1064
    %v1068 = vld [vmem:[%s310] sm:$0x3]
    %v1069 = vsel %vm189, %v1064, 0
    %1071 = vmatprep.subr.mxu0 0.0
    %1072 = vmatpush1.msra.mxu0 0.0
    %1073 = vmatprep.subr.mxu0 0.0
    %1074 = vmatpush1.msra.mxu0 0.0
    %1075 = vmatprep.subr.mxu0 0.0
    %1076 = vmatpush1.msra.mxu0 0.0
    %1077 = vmatprep.subr.mxu0 0.0
    %1078 = vmatpush1.msra.mxu0 0.0
    %1079 = vmatprep.subr.mxu0 0.0
    %1080 = vmatpush1.msra.mxu0 0.0
    %1081 = vmatprep.subr.mxu0 0.0
    %1082 = vmatpush1.msra.mxu0 0.0
    %1083 = vmatprep.subr.mxu0 0.0
    %1084 = vmatpush1.msra.mxu0 0.0
    %1085 = vmatprep.subr.mxu0 0.0
    %1086 = vmatpush1.msra.mxu0 0.0
    %1087 = vmatprep.subr.mxu0 0.0
    %1088 = vmatpush1.msra.mxu0 0.0
    %1089 = vmatprep.subr.mxu0 0.0
    %1090 = vmatpush1.msra.mxu0 0.0
    %1091 = vmatprep.subr.mxu0 0.0
    %1092 = vmatpush1.msra.mxu0 0.0
    %1093 = vmatprep.subr.mxu0 0.0
    %1094 = vmatpush1.msra.mxu0 0.0
    %1095 = vmatprep.subr.mxu0 0.0
    %1096 = vmatpush1.msra.mxu0 %v315
    %1097 = vmatprep.subr.mxu0 0.0
    %1098 = vmatpush1.msra.mxu0 %v314
    %1099 = vmatprep.subr.mxu0 0.0
    %1100 = vmatpush1.msra.mxu0 %v313
    %1101 = vmatprep.subr.mxu0 0.0
    %1102 = vmatpush1.msra.mxu0 %v312
    %1103 = vmatprep.subr.mxu0 0.0
    %1104 = vmatpush2.msra.mxu0 0.0
    %1105 = vmatprep.subr.mxu0 0.0
    %1106 = vmatpush2.msra.mxu0 0.0
    %1107 = vmatprep.subr.mxu0 0.0
    %1108 = vmatpush2.msra.mxu0 0.0
    %1109 = vmatprep.subr.mxu0 0.0
    %1110 = vmatpush2.msra.mxu0 0.0
    %1111 = vmatprep.subr.mxu0 0.0
    %1112 = vmatpush2.msra.mxu0 0.0
    %1113 = vmatprep.subr.mxu0 0.0
    %1114 = vmatpush2.msra.mxu0 0.0
    %1115 = vmatprep.subr.mxu0 0.0
    %1116 = vmatpush2.msra.mxu0 0.0
    %1117 = vmatprep.subr.mxu0 0.0
    %1118 = vmatpush2.msra.mxu0 0.0
    %1119 = vmatprep.subr.mxu0 0.0
    %1120 = vmatpush2.msra.mxu0 0.0
    %1121 = vmatprep.subr.mxu0 0.0
    %1122 = vmatpush2.msra.mxu0 0.0
    %1123 = vmatprep.subr.mxu0 0.0
    %1124 = vmatpush2.msra.mxu0 0.0
    %1125 = vmatprep.subr.mxu0 0.0
    %1126 = vmatpush2.msra.mxu0 0.0
    %1127 = vmatprep.subr.mxu0 0.0
    %1128 = vmatpush2.msra.mxu0 0.0
    %1129 = vmatprep.subr.mxu0 0.0
    %1130 = vmatpush2.msra.mxu0 0.0
    %1131 = vmatprep.subr.mxu0 0.0
    %1132 = vmatpush2.msra.mxu0 0.0
    %1133 = vmatprep.subr.mxu0 0.0
    %1134 = vmatpush2.msra.mxu0 0.0
    %1135 = vmatprep.mubr.f32.mxu0 0.0
    %1136 = vmatmul.mubr.f32.gmra.mxu0 %v1069
    %v1137 = vpop.f32.mrf.mxu0
    %v1138 = vadd.f32 0.0, %v1137
    %v1139 = vpop.f32.mrf.mxu0
    %1140 = vdwg.mxu0
    %v1141 = vadd.f32 %v1068, %v1138
    %v1142 = vxor.u32 %v1141, 2147483648
    %v1143 = vmul.f32 %v1142, 1.442695
    %v1144 = vpow.pop %v1143
    %v1145 = vadd.f32 %v1144, 1.0
    %v1146 = vrcp.pop %v1145
    %v1147 = vmul.f32 1.0, %v1146
    %v1148 = vtanh.pop %v1141
    %v1149 = vmul.f32 %v1147, %v1055
    %1151 = vrot.lane.b32.xlu0 %v1148, 64
    %v1152 = vpop.permute.xlu0 %1151
    %v1154 = vmul.f32 %v1147, %v1152
    %1156 = vrot.lane.b32.xlu0 %v1154, 32
    %v1157 = vpop.permute.xlu0 %1156
    %v1159 = vadd.f32 %v1149, %v1157
    %v1160 = vtanh.pop %v1159
    %1162 = vrot.lane.b32.xlu0 %v1160, 64
    %v1163 = vpop.permute.xlu0 %1162
    %v1165 = vmul.f32 %v1147, %v1163
    %1167 = vrot.lane.b32.xlu0 %v1165, 32
    %v1168 = vpop.permute.xlu0 %1167
    %1170 = vst.msk [vmem:[#allocation5 + $0xe] sm:$0x3] %vm440, %v1168
    %1171 = vst.msk [vmem:[#allocation5] sm:$0x3] %vm442, %v1168
    %1172 = vst.msk [vmem:[#allocation19] sm:$0x3] %vm440, %v1168
    %1174 = vrot.lane.b32.xlu0 %v1159, 96
    %v1175 = vpop.permute.xlu0 %1174
    %1177 = vst.msk [vmem:[#allocation21] sm:$0x3] %vm440, %v1175
    %1178 = vrot.lane.b32.xlu0 %v1165, 16
    %v1179 = vpop.permute.xlu0 %1178
    %s1181 = scalar_lea.vmem [#allocation19], 2
    %1182 = vst.msk [vmem:[%s1181] sm:$0x3] %vm440, %v1179
    %1183 = vrot.lane.b32.xlu0 %v1159, 80
    %v1184 = vpop.permute.xlu0 %1183
    %s1186 = scalar_lea.vmem [#allocation21], 2
    %1187 = vst.msk [vmem:[%s1186] sm:$0x3] %vm440, %v1184
    %v1188 = vld [vmem:[#allocation5] sm:$0xff]
    %v1189 = vld [vmem:[#allocation5 + $0x8] sm:$0xff]
    %v1190 = vld [vmem:[#allocation14] sm:$0xff]
    %v1191 = vld [vmem:[#allocation14 + $0x8] sm:$0xff]
    %v1192 = vld [vmem:[#allocation14 + $0x10] sm:$0xff]
    %v1193 = vld [vmem:[#allocation14 + $0x18] sm:$0xff]
    %v1194 = vld [vmem:[#allocation17] sm:$0x1]
    %v1196 = vlaneseq
    %v1197 = vshrl.u32 %v1196, 7
    %v1198 = vsub.s32 0, %v1197
    %v1199 = vrot.slane %v1194, %v1198
    %v1202 = vsel %vm189, %v1188, 0
    %v1205 = vsel %vm189, %v1189, 0
    %1207 = vmatprep.subr.mxu0 0.0
    %1208 = vmatpush1.msra.mxu0 0.0
    %1209 = vmatprep.subr.mxu0 0.0
    %1210 = vmatpush1.msra.mxu0 0.0
    %1211 = vmatprep.subr.mxu0 0.0
    %1212 = vmatpush1.msra.mxu0 0.0
    %1213 = vmatprep.subr.mxu0 0.0
    %1214 = vmatpush1.msra.mxu0 0.0
    %1215 = vmatprep.subr.mxu0 0.0
    %1216 = vmatpush1.msra.mxu0 0.0
    %1217 = vmatprep.subr.mxu0 0.0
    %1218 = vmatpush1.msra.mxu0 0.0
    %1219 = vmatprep.subr.mxu0 0.0
    %1220 = vmatpush1.msra.mxu0 0.0
    %1221 = vmatprep.subr.mxu0 0.0
    %1222 = vmatpush1.msra.mxu0 0.0
    %1223 = vmatprep.subr.mxu0 0.0
    %1224 = vmatpush1.msra.mxu0 0.0
    %1225 = vmatprep.subr.mxu0 0.0
    %1226 = vmatpush1.msra.mxu0 0.0
    %1227 = vmatprep.subr.mxu0 0.0
    %1228 = vmatpush1.msra.mxu0 0.0
    %1229 = vmatprep.subr.mxu0 0.0
    %1230 = vmatpush1.msra.mxu0 0.0
    %1231 = vmatprep.subr.mxu0 0.0
    %1232 = vmatpush1.msra.mxu0 %v1193
    %1233 = vmatprep.subr.mxu0 0.0
    %1234 = vmatpush1.msra.mxu0 %v1192
    %1235 = vmatprep.subr.mxu0 0.0
    %1236 = vmatpush1.msra.mxu0 %v1191
    %1237 = vmatprep.subr.mxu0 0.0
    %1238 = vmatpush1.msra.mxu0 %v1190
    %1239 = vmatprep.subr.mxu0 0.0
    %1240 = vmatpush2.msra.mxu0 0.0
    %1241 = vmatprep.subr.mxu0 0.0
    %1242 = vmatpush2.msra.mxu0 0.0
    %1243 = vmatprep.subr.mxu0 0.0
    %1244 = vmatpush2.msra.mxu0 0.0
    %1245 = vmatprep.subr.mxu0 0.0
    %1246 = vmatpush2.msra.mxu0 0.0
    %1247 = vmatprep.subr.mxu0 0.0
    %1248 = vmatpush2.msra.mxu0 0.0
    %1249 = vmatprep.subr.mxu0 0.0
    %1250 = vmatpush2.msra.mxu0 0.0
    %1251 = vmatprep.subr.mxu0 0.0
    %1252 = vmatpush2.msra.mxu0 0.0
    %1253 = vmatprep.subr.mxu0 0.0
    %1254 = vmatpush2.msra.mxu0 0.0
    %1255 = vmatprep.subr.mxu0 0.0
    %1256 = vmatpush2.msra.mxu0 0.0
    %1257 = vmatprep.subr.mxu0 0.0
    %1258 = vmatpush2.msra.mxu0 0.0
    %1259 = vmatprep.subr.mxu0 0.0
    %1260 = vmatpush2.msra.mxu0 0.0
    %1261 = vmatprep.subr.mxu0 0.0
    %1262 = vmatpush2.msra.mxu0 0.0
    %1263 = vmatprep.subr.mxu0 0.0
    %1264 = vmatpush2.msra.mxu0 0.0
    %1265 = vmatprep.subr.mxu0 0.0
    %1266 = vmatpush2.msra.mxu0 0.0
    %1267 = vmatprep.subr.mxu0 0.0
    %1268 = vmatpush2.msra.mxu0 0.0
    %1269 = vmatprep.subr.mxu0 0.0
    %1270 = vmatpush2.msra.mxu0 0.0
    %1271 = vmatprep.mubr.f32.mxu0 0.0
    %1272 = vmatmul.mubr.f32.gmra.mxu0 %v1202
    %v1273 = vpop.f32.mrf.mxu0
    %v1274 = vadd.f32 %v1199, %v1273
    %v1275 = vpop.f32.mrf.mxu0
    %1276 = vmatprep.mubr.f32.mxu0 0.0
    %1277 = vmatmul.mubr.f32.gmra.mxu0 %v1205
    %v1278 = vpop.f32.mrf.mxu0
    %v1279 = vadd.f32 %v1199, %v1278
    %v1280 = vpop.f32.mrf.mxu0
    %1281 = vdwg.mxu0
    %1282 = vst [vmem:[#allocation3] sm:$0xff] %v1274
    %1283 = vst [vmem:[#allocation3 + $0x8] sm:$0xff] %v1279
    %v1284 = vld [vmem:[#allocation3] sm:$0x3]
    %v1285 = vld [vmem:[#allocation3 + $0xe] sm:$0x3]
    %v1286 = vsel %vm175, %v1284, %v1285
    %1287 = vst [vmem:[#allocation4] sm:$0x3] %v1286
    %v1288 = vld [vmem:[#allocation3 + $0x2] sm:$0x3]
    %v1289 = vld [vmem:[#allocation3 + $0xc] sm:$0x3]
    %v1290 = vsel %vm175, %v1288, %v1289
    %1291 = vst [vmem:[%s280] sm:$0x3] %v1290
    %v1292 = vld [vmem:[#allocation3 + $0x4] sm:$0x3]
    %v1293 = vld [vmem:[#allocation3 + $0xa] sm:$0x3]
    %v1294 = vsel %vm175, %v1292, %v1293
    %1295 = vst [vmem:[%s285] sm:$0x3] %v1294
    %v1296 = vld [vmem:[#allocation3 + $0x6] sm:$0x3]
    %v1297 = vld [vmem:[#allocation3 + $0x8] sm:$0x3]
    %v1298 = vsel %vm175, %v1296, %v1297
    %1299 = vst [vmem:[%s290] sm:$0x3] %v1298
    %v1300 = vld [vmem:[#allocation3 + $0x8] sm:$0x3]
    %v1301 = vld [vmem:[#allocation3 + $0x6] sm:$0x3]
    %v1302 = vsel %vm175, %v1300, %v1301
    %1303 = vst [vmem:[%s295] sm:$0x3] %v1302
    %v1304 = vld [vmem:[#allocation3 + $0xa] sm:$0x3]
    %v1305 = vld [vmem:[#allocation3 + $0x4] sm:$0x3]
    %v1306 = vsel %vm175, %v1304, %v1305
    %1307 = vst [vmem:[%s300] sm:$0x3] %v1306
    %v1308 = vld [vmem:[#allocation3 + $0xc] sm:$0x3]
    %v1309 = vld [vmem:[#allocation3 + $0x2] sm:$0x3]
    %v1310 = vsel %vm175, %v1308, %v1309
    %1311 = vst [vmem:[%s305] sm:$0x3] %v1310
    %v1312 = vld [vmem:[#allocation3 + $0xe] sm:$0x3]
    %v1313 = vld [vmem:[#allocation3] sm:$0x3]
    %v1314 = vsel %vm175, %v1312, %v1313
    %1315 = vst [vmem:[%s310] sm:$0x3] %v1314
    %v1316 = vld [vmem:[#allocation15] sm:$0xff]
    %v1317 = vld [vmem:[#allocation15 + $0x8] sm:$0xff]
    %v1318 = vld [vmem:[#allocation15 + $0x10] sm:$0xff]
    %v1319 = vld [vmem:[#allocation15 + $0x18] sm:$0xff]
    %s1320 = scalar_lea.vmem %s1, 4
    %v1321 = vld [vmem:[%s1320] sm:$0x3]
    %s1322 = scalar_lea.vmem %s1, 6
    %v1323 = vld [vmem:[%s1322] sm:$0x3]
    %1325 = vrot.lane.b32.xlu0 %v1323, 16
    %v1326 = vpop.permute.xlu0 %1325
    %v1328 = vsel %vm323, %v1321, %v1326
    %s1329 = scalar_lea.vmem %s2, 4
    %v1330 = vld [vmem:[%s1329] sm:$0x3]
    %s1331 = scalar_lea.vmem %s2, 6
    %v1332 = vld [vmem:[%s1331] sm:$0x3]
    %1334 = vrot.lane.b32.xlu0 %v1332, 16
    %v1335 = vpop.permute.xlu0 %1334
    %v1337 = vsel %vm323, %v1330, %v1335
    %v1338 = vld [vmem:[#allocation4] sm:$0x3]
    %v1340 = vsel %vm189, %v1328, 0
    %1342 = vmatprep.subr.mxu0 0.0
    %1343 = vmatpush1.msra.mxu0 0.0
    %1344 = vmatprep.subr.mxu0 0.0
    %1345 = vmatpush1.msra.mxu0 0.0
    %1346 = vmatprep.subr.mxu0 0.0
    %1347 = vmatpush1.msra.mxu0 0.0
    %1348 = vmatprep.subr.mxu0 0.0
    %1349 = vmatpush1.msra.mxu0 0.0
    %1350 = vmatprep.subr.mxu0 0.0
    %1351 = vmatpush1.msra.mxu0 0.0
    %1352 = vmatprep.subr.mxu0 0.0
    %1353 = vmatpush1.msra.mxu0 0.0
    %1354 = vmatprep.subr.mxu0 0.0
    %1355 = vmatpush1.msra.mxu0 0.0
    %1356 = vmatprep.subr.mxu0 0.0
    %1357 = vmatpush1.msra.mxu0 0.0
    %1358 = vmatprep.subr.mxu0 0.0
    %1359 = vmatpush1.msra.mxu0 0.0
    %1360 = vmatprep.subr.mxu0 0.0
    %1361 = vmatpush1.msra.mxu0 0.0
    %1362 = vmatprep.subr.mxu0 0.0
    %1363 = vmatpush1.msra.mxu0 0.0
    %1364 = vmatprep.subr.mxu0 0.0
    %1365 = vmatpush1.msra.mxu0 0.0
    %1366 = vmatprep.subr.mxu0 0.0
    %1367 = vmatpush1.msra.mxu0 %v1319
    %1368 = vmatprep.subr.mxu0 0.0
    %1369 = vmatpush1.msra.mxu0 %v1318
    %1370 = vmatprep.subr.mxu0 0.0
    %1371 = vmatpush1.msra.mxu0 %v1317
    %1372 = vmatprep.subr.mxu0 0.0
    %1373 = vmatpush1.msra.mxu0 %v1316
    %1374 = vmatprep.subr.mxu0 0.0
    %1375 = vmatpush2.msra.mxu0 0.0
    %1376 = vmatprep.subr.mxu0 0.0
    %1377 = vmatpush2.msra.mxu0 0.0
    %1378 = vmatprep.subr.mxu0 0.0
    %1379 = vmatpush2.msra.mxu0 0.0
    %1380 = vmatprep.subr.mxu0 0.0
    %1381 = vmatpush2.msra.mxu0 0.0
    %1382 = vmatprep.subr.mxu0 0.0
    %1383 = vmatpush2.msra.mxu0 0.0
    %1384 = vmatprep.subr.mxu0 0.0
    %1385 = vmatpush2.msra.mxu0 0.0
    %1386 = vmatprep.subr.mxu0 0.0
    %1387 = vmatpush2.msra.mxu0 0.0
    %1388 = vmatprep.subr.mxu0 0.0
    %1389 = vmatpush2.msra.mxu0 0.0
    %1390 = vmatprep.subr.mxu0 0.0
    %1391 = vmatpush2.msra.mxu0 0.0
    %1392 = vmatprep.subr.mxu0 0.0
    %1393 = vmatpush2.msra.mxu0 0.0
    %1394 = vmatprep.subr.mxu0 0.0
    %1395 = vmatpush2.msra.mxu0 0.0
    %1396 = vmatprep.subr.mxu0 0.0
    %1397 = vmatpush2.msra.mxu0 0.0
    %1398 = vmatprep.subr.mxu0 0.0
    %1399 = vmatpush2.msra.mxu0 0.0
    %1400 = vmatprep.subr.mxu0 0.0
    %1401 = vmatpush2.msra.mxu0 0.0
    %1402 = vmatprep.subr.mxu0 0.0
    %1403 = vmatpush2.msra.mxu0 0.0
    %1404 = vmatprep.subr.mxu0 0.0
    %1405 = vmatpush2.msra.mxu0 0.0
    %1406 = vmatprep.mubr.f32.mxu0 0.0
    %1407 = vmatmul.mubr.f32.gmra.mxu0 %v1340
    %v1408 = vpop.f32.mrf.mxu0
    %v1409 = vadd.f32 0.0, %v1408
    %v1410 = vpop.f32.mrf.mxu0
    %1411 = vdwg.mxu0
    %v1412 = vadd.f32 %v1338, %v1409
    %v1413 = vxor.u32 %v1412, 2147483648
    %v1414 = vmul.f32 %v1413, 1.442695
    %v1415 = vpow.pop %v1414
    %v1416 = vadd.f32 %v1415, 1.0
    %v1417 = vrcp.pop %v1416
    %v1418 = vmul.f32 1.0, %v1417
    %v1419 = vtanh.pop %v1412
    %1421 = vrot.lane.b32.xlu0 %v1337, 32
    %v1422 = vpop.permute.xlu0 %1421
    %v1424 = vmul.f32 %v1418, %v1422
    %1426 = vrot.lane.b32.xlu0 %v1419, 64
    %v1427 = vpop.permute.xlu0 %1426
    %v1429 = vmul.f32 %v1418, %v1427
    %1431 = vrot.lane.b32.xlu0 %v1429, 32
    %v1432 = vpop.permute.xlu0 %1431
    %v1434 = vadd.f32 %v1424, %v1432
    %v1435 = vtanh.pop %v1434
    %1437 = vrot.lane.b32.xlu0 %v1435, 64
    %v1438 = vpop.permute.xlu0 %1437
    %v1440 = vmul.f32 %v1418, %v1438
    %1442 = vrot.lane.b32.xlu0 %v1440, 32
    %v1443 = vpop.permute.xlu0 %1442
    %1445 = vst.msk [vmem:[#allocation5] sm:$0x3] %vm440, %v1443
    %1446 = vst.msk [vmem:[#allocation5 + $0xe] sm:$0x3] %vm442, %v1443
    %v1447 = vld [vmem:[%s280] sm:$0x3]
    %v1448 = vsel %vm189, %v1443, 0
    %1450 = vmatprep.subr.mxu0 0.0
    %1451 = vmatpush1.msra.mxu0 0.0
    %1452 = vmatprep.subr.mxu0 0.0
    %1453 = vmatpush1.msra.mxu0 0.0
    %1454 = vmatprep.subr.mxu0 0.0
    %1455 = vmatpush1.msra.mxu0 0.0
    %1456 = vmatprep.subr.mxu0 0.0
    %1457 = vmatpush1.msra.mxu0 0.0
    %1458 = vmatprep.subr.mxu0 0.0
    %1459 = vmatpush1.msra.mxu0 0.0
    %1460 = vmatprep.subr.mxu0 0.0
    %1461 = vmatpush1.msra.mxu0 0.0
    %1462 = vmatprep.subr.mxu0 0.0
    %1463 = vmatpush1.msra.mxu0 0.0
    %1464 = vmatprep.subr.mxu0 0.0
    %1465 = vmatpush1.msra.mxu0 0.0
    %1466 = vmatprep.subr.mxu0 0.0
    %1467 = vmatpush1.msra.mxu0 0.0
    %1468 = vmatprep.subr.mxu0 0.0
    %1469 = vmatpush1.msra.mxu0 0.0
    %1470 = vmatprep.subr.mxu0 0.0
    %1471 = vmatpush1.msra.mxu0 0.0
    %1472 = vmatprep.subr.mxu0 0.0
    %1473 = vmatpush1.msra.mxu0 0.0
    %1474 = vmatprep.subr.mxu0 0.0
    %1475 = vmatpush1.msra.mxu0 %v1319
    %1476 = vmatprep.subr.mxu0 0.0
    %1477 = vmatpush1.msra.mxu0 %v1318
    %1478 = vmatprep.subr.mxu0 0.0
    %1479 = vmatpush1.msra.mxu0 %v1317
    %1480 = vmatprep.subr.mxu0 0.0
    %1481 = vmatpush1.msra.mxu0 %v1316
    %1482 = vmatprep.subr.mxu0 0.0
    %1483 = vmatpush2.msra.mxu0 0.0
    %1484 = vmatprep.subr.mxu0 0.0
    %1485 = vmatpush2.msra.mxu0 0.0
    %1486 = vmatprep.subr.mxu0 0.0
    %1487 = vmatpush2.msra.mxu0 0.0
    %1488 = vmatprep.subr.mxu0 0.0
    %1489 = vmatpush2.msra.mxu0 0.0
    %1490 = vmatprep.subr.mxu0 0.0
    %1491 = vmatpush2.msra.mxu0 0.0
    %1492 = vmatprep.subr.mxu0 0.0
    %1493 = vmatpush2.msra.mxu0 0.0
    %1494 = vmatprep.subr.mxu0 0.0
    %1495 = vmatpush2.msra.mxu0 0.0
    %1496 = vmatprep.subr.mxu0 0.0
    %1497 = vmatpush2.msra.mxu0 0.0
    %1498 = vmatprep.subr.mxu0 0.0
    %1499 = vmatpush2.msra.mxu0 0.0
    %1500 = vmatprep.subr.mxu0 0.0
    %1501 = vmatpush2.msra.mxu0 0.0
    %1502 = vmatprep.subr.mxu0 0.0
    %1503 = vmatpush2.msra.mxu0 0.0
    %1504 = vmatprep.subr.mxu0 0.0
    %1505 = vmatpush2.msra.mxu0 0.0
    %1506 = vmatprep.subr.mxu0 0.0
    %1507 = vmatpush2.msra.mxu0 0.0
    %1508 = vmatprep.subr.mxu0 0.0
    %1509 = vmatpush2.msra.mxu0 0.0
    %1510 = vmatprep.subr.mxu0 0.0
    %1511 = vmatpush2.msra.mxu0 0.0
    %1512 = vmatprep.subr.mxu0 0.0
    %1513 = vmatpush2.msra.mxu0 0.0
    %1514 = vmatprep.mubr.f32.mxu0 0.0
    %1515 = vmatmul.mubr.f32.gmra.mxu0 %v1448
    %v1516 = vpop.f32.mrf.mxu0
    %v1517 = vadd.f32 0.0, %v1516
    %v1518 = vpop.f32.mrf.mxu0
    %1519 = vdwg.mxu0
    %v1520 = vadd.f32 %v1447, %v1517
    %v1521 = vxor.u32 %v1520, 2147483648
    %v1522 = vmul.f32 %v1521, 1.442695
    %v1523 = vpow.pop %v1522
    %v1524 = vadd.f32 %v1523, 1.0
    %v1525 = vrcp.pop %v1524
    %v1526 = vmul.f32 1.0, %v1525
    %v1527 = vtanh.pop %v1520
    %v1528 = vmul.f32 %v1526, %v1434
    %1530 = vrot.lane.b32.xlu0 %v1527, 64
    %v1531 = vpop.permute.xlu0 %1530
    %v1533 = vmul.f32 %v1526, %v1531
    %1535 = vrot.lane.b32.xlu0 %v1533, 32
    %v1536 = vpop.permute.xlu0 %1535
    %v1538 = vadd.f32 %v1528, %v1536
    %v1539 = vtanh.pop %v1538
    %1541 = vrot.lane.b32.xlu0 %v1539, 64
    %v1542 = vpop.permute.xlu0 %1541
    %v1544 = vmul.f32 %v1526, %v1542
    %1546 = vrot.lane.b32.xlu0 %v1544, 32
    %v1547 = vpop.permute.xlu0 %1546
    %1549 = vst.msk [vmem:[#allocation5 + $0x2] sm:$0x3] %vm440, %v1547
    %1550 = vst.msk [vmem:[#allocation5 + $0xc] sm:$0x3] %vm442, %v1547
    %v1551 = vld [vmem:[%s285] sm:$0x3]
    %v1552 = vsel %vm189, %v1547, 0
    %1554 = vmatprep.subr.mxu0 0.0
    %1555 = vmatpush1.msra.mxu0 0.0
    %1556 = vmatprep.subr.mxu0 0.0
    %1557 = vmatpush1.msra.mxu0 0.0
    %1558 = vmatprep.subr.mxu0 0.0
    %1559 = vmatpush1.msra.mxu0 0.0
    %1560 = vmatprep.subr.mxu0 0.0
    %1561 = vmatpush1.msra.mxu0 0.0
    %1562 = vmatprep.subr.mxu0 0.0
    %1563 = vmatpush1.msra.mxu0 0.0
    %1564 = vmatprep.subr.mxu0 0.0
    %1565 = vmatpush1.msra.mxu0 0.0
    %1566 = vmatprep.subr.mxu0 0.0
    %1567 = vmatpush1.msra.mxu0 0.0
    %1568 = vmatprep.subr.mxu0 0.0
    %1569 = vmatpush1.msra.mxu0 0.0
    %1570 = vmatprep.subr.mxu0 0.0
    %1571 = vmatpush1.msra.mxu0 0.0
    %1572 = vmatprep.subr.mxu0 0.0
    %1573 = vmatpush1.msra.mxu0 0.0
    %1574 = vmatprep.subr.mxu0 0.0
    %1575 = vmatpush1.msra.mxu0 0.0
    %1576 = vmatprep.subr.mxu0 0.0
    %1577 = vmatpush1.msra.mxu0 0.0
    %1578 = vmatprep.subr.mxu0 0.0
    %1579 = vmatpush1.msra.mxu0 %v1319
    %1580 = vmatprep.subr.mxu0 0.0
    %1581 = vmatpush1.msra.mxu0 %v1318
    %1582 = vmatprep.subr.mxu0 0.0
    %1583 = vmatpush1.msra.mxu0 %v1317
    %1584 = vmatprep.subr.mxu0 0.0
    %1585 = vmatpush1.msra.mxu0 %v1316
    %1586 = vmatprep.subr.mxu0 0.0
    %1587 = vmatpush2.msra.mxu0 0.0
    %1588 = vmatprep.subr.mxu0 0.0
    %1589 = vmatpush2.msra.mxu0 0.0
    %1590 = vmatprep.subr.mxu0 0.0
    %1591 = vmatpush2.msra.mxu0 0.0
    %1592 = vmatprep.subr.mxu0 0.0
    %1593 = vmatpush2.msra.mxu0 0.0
    %1594 = vmatprep.subr.mxu0 0.0
    %1595 = vmatpush2.msra.mxu0 0.0
    %1596 = vmatprep.subr.mxu0 0.0
    %1597 = vmatpush2.msra.mxu0 0.0
    %1598 = vmatprep.subr.mxu0 0.0
    %1599 = vmatpush2.msra.mxu0 0.0
    %1600 = vmatprep.subr.mxu0 0.0
    %1601 = vmatpush2.msra.mxu0 0.0
    %1602 = vmatprep.subr.mxu0 0.0
    %1603 = vmatpush2.msra.mxu0 0.0
    %1604 = vmatprep.subr.mxu0 0.0
    %1605 = vmatpush2.msra.mxu0 0.0
    %1606 = vmatprep.subr.mxu0 0.0
    %1607 = vmatpush2.msra.mxu0 0.0
    %1608 = vmatprep.subr.mxu0 0.0
    %1609 = vmatpush2.msra.mxu0 0.0
    %1610 = vmatprep.subr.mxu0 0.0
    %1611 = vmatpush2.msra.mxu0 0.0
    %1612 = vmatprep.subr.mxu0 0.0
    %1613 = vmatpush2.msra.mxu0 0.0
    %1614 = vmatprep.subr.mxu0 0.0
    %1615 = vmatpush2.msra.mxu0 0.0
    %1616 = vmatprep.subr.mxu0 0.0
    %1617 = vmatpush2.msra.mxu0 0.0
    %1618 = vmatprep.mubr.f32.mxu0 0.0
    %1619 = vmatmul.mubr.f32.gmra.mxu0 %v1552
    %v1620 = vpop.f32.mrf.mxu0
    %v1621 = vadd.f32 0.0, %v1620
    %v1622 = vpop.f32.mrf.mxu0
    %1623 = vdwg.mxu0
    %v1624 = vadd.f32 %v1551, %v1621
    %v1625 = vxor.u32 %v1624, 2147483648
    %v1626 = vmul.f32 %v1625, 1.442695
    %v1627 = vpow.pop %v1626
    %v1628 = vadd.f32 %v1627, 1.0
    %v1629 = vrcp.pop %v1628
    %v1630 = vmul.f32 1.0, %v1629
    %v1631 = vtanh.pop %v1624
    %v1632 = vmul.f32 %v1630, %v1538
    %1634 = vrot.lane.b32.xlu0 %v1631, 64
    %v1635 = vpop.permute.xlu0 %1634
    %v1637 = vmul.f32 %v1630, %v1635
    %1639 = vrot.lane.b32.xlu0 %v1637, 32
    %v1640 = vpop.permute.xlu0 %1639
    %v1642 = vadd.f32 %v1632, %v1640
    %v1643 = vtanh.pop %v1642
    %1645 = vrot.lane.b32.xlu0 %v1643, 64
    %v1646 = vpop.permute.xlu0 %1645
    %v1648 = vmul.f32 %v1630, %v1646
    %1650 = vrot.lane.b32.xlu0 %v1648, 32
    %v1651 = vpop.permute.xlu0 %1650
    %1653 = vst.msk [vmem:[#allocation5 + $0x4] sm:$0x3] %vm440, %v1651
    %1654 = vst.msk [vmem:[#allocation5 + $0xa] sm:$0x3] %vm442, %v1651
    %v1655 = vld [vmem:[%s290] sm:$0x3]
    %v1656 = vsel %vm189, %v1651, 0
    %1658 = vmatprep.subr.mxu0 0.0
    %1659 = vmatpush1.msra.mxu0 0.0
    %1660 = vmatprep.subr.mxu0 0.0
    %1661 = vmatpush1.msra.mxu0 0.0
    %1662 = vmatprep.subr.mxu0 0.0
    %1663 = vmatpush1.msra.mxu0 0.0
    %1664 = vmatprep.subr.mxu0 0.0
    %1665 = vmatpush1.msra.mxu0 0.0
    %1666 = vmatprep.subr.mxu0 0.0
    %1667 = vmatpush1.msra.mxu0 0.0
    %1668 = vmatprep.subr.mxu0 0.0
    %1669 = vmatpush1.msra.mxu0 0.0
    %1670 = vmatprep.subr.mxu0 0.0
    %1671 = vmatpush1.msra.mxu0 0.0
    %1672 = vmatprep.subr.mxu0 0.0
    %1673 = vmatpush1.msra.mxu0 0.0
    %1674 = vmatprep.subr.mxu0 0.0
    %1675 = vmatpush1.msra.mxu0 0.0
    %1676 = vmatprep.subr.mxu0 0.0
    %1677 = vmatpush1.msra.mxu0 0.0
    %1678 = vmatprep.subr.mxu0 0.0
    %1679 = vmatpush1.msra.mxu0 0.0
    %1680 = vmatprep.subr.mxu0 0.0
    %1681 = vmatpush1.msra.mxu0 0.0
    %1682 = vmatprep.subr.mxu0 0.0
    %1683 = vmatpush1.msra.mxu0 %v1319
    %1684 = vmatprep.subr.mxu0 0.0
    %1685 = vmatpush1.msra.mxu0 %v1318
    %1686 = vmatprep.subr.mxu0 0.0
    %1687 = vmatpush1.msra.mxu0 %v1317
    %1688 = vmatprep.subr.mxu0 0.0
    %1689 = vmatpush1.msra.mxu0 %v1316
    %1690 = vmatprep.subr.mxu0 0.0
    %1691 = vmatpush2.msra.mxu0 0.0
    %1692 = vmatprep.subr.mxu0 0.0
    %1693 = vmatpush2.msra.mxu0 0.0
    %1694 = vmatprep.subr.mxu0 0.0
    %1695 = vmatpush2.msra.mxu0 0.0
    %1696 = vmatprep.subr.mxu0 0.0
    %1697 = vmatpush2.msra.mxu0 0.0
    %1698 = vmatprep.subr.mxu0 0.0
    %1699 = vmatpush2.msra.mxu0 0.0
    %1700 = vmatprep.subr.mxu0 0.0
    %1701 = vmatpush2.msra.mxu0 0.0
    %1702 = vmatprep.subr.mxu0 0.0
    %1703 = vmatpush2.msra.mxu0 0.0
    %1704 = vmatprep.subr.mxu0 0.0
    %1705 = vmatpush2.msra.mxu0 0.0
    %1706 = vmatprep.subr.mxu0 0.0
    %1707 = vmatpush2.msra.mxu0 0.0
    %1708 = vmatprep.subr.mxu0 0.0
    %1709 = vmatpush2.msra.mxu0 0.0
    %1710 = vmatprep.subr.mxu0 0.0
    %1711 = vmatpush2.msra.mxu0 0.0
    %1712 = vmatprep.subr.mxu0 0.0
    %1713 = vmatpush2.msra.mxu0 0.0
    %1714 = vmatprep.subr.mxu0 0.0
    %1715 = vmatpush2.msra.mxu0 0.0
    %1716 = vmatprep.subr.mxu0 0.0
    %1717 = vmatpush2.msra.mxu0 0.0
    %1718 = vmatprep.subr.mxu0 0.0
    %1719 = vmatpush2.msra.mxu0 0.0
    %1720 = vmatprep.subr.mxu0 0.0
    %1721 = vmatpush2.msra.mxu0 0.0
    %1722 = vmatprep.mubr.f32.mxu0 0.0
    %1723 = vmatmul.mubr.f32.gmra.mxu0 %v1656
    %v1724 = vpop.f32.mrf.mxu0
    %v1725 = vadd.f32 0.0, %v1724
    %v1726 = vpop.f32.mrf.mxu0
    %1727 = vdwg.mxu0
    %v1728 = vadd.f32 %v1655, %v1725
    %v1729 = vxor.u32 %v1728, 2147483648
    %v1730 = vmul.f32 %v1729, 1.442695
    %v1731 = vpow.pop %v1730
    %v1732 = vadd.f32 %v1731, 1.0
    %v1733 = vrcp.pop %v1732
    %v1734 = vmul.f32 1.0, %v1733
    %v1735 = vtanh.pop %v1728
    %v1736 = vmul.f32 %v1734, %v1642
    %1738 = vrot.lane.b32.xlu0 %v1735, 64
    %v1739 = vpop.permute.xlu0 %1738
    %v1741 = vmul.f32 %v1734, %v1739
    %1743 = vrot.lane.b32.xlu0 %v1741, 32
    %v1744 = vpop.permute.xlu0 %1743
    %v1746 = vadd.f32 %v1736, %v1744
    %v1747 = vtanh.pop %v1746
    %1749 = vrot.lane.b32.xlu0 %v1747, 64
    %v1750 = vpop.permute.xlu0 %1749
    %v1752 = vmul.f32 %v1734, %v1750
    %1754 = vrot.lane.b32.xlu0 %v1752, 32
    %v1755 = vpop.permute.xlu0 %1754
    %1757 = vst.msk [vmem:[#allocation5 + $0x6] sm:$0x3] %vm440, %v1755
    %1758 = vst.msk [vmem:[#allocation5 + $0x8] sm:$0x3] %vm442, %v1755
    %v1759 = vld [vmem:[%s295] sm:$0x3]
    %v1760 = vsel %vm189, %v1755, 0
    %1762 = vmatprep.subr.mxu0 0.0
    %1763 = vmatpush1.msra.mxu0 0.0
    %1764 = vmatprep.subr.mxu0 0.0
    %1765 = vmatpush1.msra.mxu0 0.0
    %1766 = vmatprep.subr.mxu0 0.0
    %1767 = vmatpush1.msra.mxu0 0.0
    %1768 = vmatprep.subr.mxu0 0.0
    %1769 = vmatpush1.msra.mxu0 0.0
    %1770 = vmatprep.subr.mxu0 0.0
    %1771 = vmatpush1.msra.mxu0 0.0
    %1772 = vmatprep.subr.mxu0 0.0
    %1773 = vmatpush1.msra.mxu0 0.0
    %1774 = vmatprep.subr.mxu0 0.0
    %1775 = vmatpush1.msra.mxu0 0.0
    %1776 = vmatprep.subr.mxu0 0.0
    %1777 = vmatpush1.msra.mxu0 0.0
    %1778 = vmatprep.subr.mxu0 0.0
    %1779 = vmatpush1.msra.mxu0 0.0
    %1780 = vmatprep.subr.mxu0 0.0
    %1781 = vmatpush1.msra.mxu0 0.0
    %1782 = vmatprep.subr.mxu0 0.0
    %1783 = vmatpush1.msra.mxu0 0.0
    %1784 = vmatprep.subr.mxu0 0.0
    %1785 = vmatpush1.msra.mxu0 0.0
    %1786 = vmatprep.subr.mxu0 0.0
    %1787 = vmatpush1.msra.mxu0 %v1319
    %1788 = vmatprep.subr.mxu0 0.0
    %1789 = vmatpush1.msra.mxu0 %v1318
    %1790 = vmatprep.subr.mxu0 0.0
    %1791 = vmatpush1.msra.mxu0 %v1317
    %1792 = vmatprep.subr.mxu0 0.0
    %1793 = vmatpush1.msra.mxu0 %v1316
    %1794 = vmatprep.subr.mxu0 0.0
    %1795 = vmatpush2.msra.mxu0 0.0
    %1796 = vmatprep.subr.mxu0 0.0
    %1797 = vmatpush2.msra.mxu0 0.0
    %1798 = vmatprep.subr.mxu0 0.0
    %1799 = vmatpush2.msra.mxu0 0.0
    %1800 = vmatprep.subr.mxu0 0.0
    %1801 = vmatpush2.msra.mxu0 0.0
    %1802 = vmatprep.subr.mxu0 0.0
    %1803 = vmatpush2.msra.mxu0 0.0
    %1804 = vmatprep.subr.mxu0 0.0
    %1805 = vmatpush2.msra.mxu0 0.0
    %1806 = vmatprep.subr.mxu0 0.0
    %1807 = vmatpush2.msra.mxu0 0.0
    %1808 = vmatprep.subr.mxu0 0.0
    %1809 = vmatpush2.msra.mxu0 0.0
    %1810 = vmatprep.subr.mxu0 0.0
    %1811 = vmatpush2.msra.mxu0 0.0
    %1812 = vmatprep.subr.mxu0 0.0
    %1813 = vmatpush2.msra.mxu0 0.0
    %1814 = vmatprep.subr.mxu0 0.0
    %1815 = vmatpush2.msra.mxu0 0.0
    %1816 = vmatprep.subr.mxu0 0.0
    %1817 = vmatpush2.msra.mxu0 0.0
    %1818 = vmatprep.subr.mxu0 0.0
    %1819 = vmatpush2.msra.mxu0 0.0
    %1820 = vmatprep.subr.mxu0 0.0
    %1821 = vmatpush2.msra.mxu0 0.0
    %1822 = vmatprep.subr.mxu0 0.0
    %1823 = vmatpush2.msra.mxu0 0.0
    %1824 = vmatprep.subr.mxu0 0.0
    %1825 = vmatpush2.msra.mxu0 0.0
    %1826 = vmatprep.mubr.f32.mxu0 0.0
    %1827 = vmatmul.mubr.f32.gmra.mxu0 %v1760
    %v1828 = vpop.f32.mrf.mxu0
    %v1829 = vadd.f32 0.0, %v1828
    %v1830 = vpop.f32.mrf.mxu0
    %1831 = vdwg.mxu0
    %v1832 = vadd.f32 %v1759, %v1829
    %v1833 = vxor.u32 %v1832, 2147483648
    %v1834 = vmul.f32 %v1833, 1.442695
    %v1835 = vpow.pop %v1834
    %v1836 = vadd.f32 %v1835, 1.0
    %v1837 = vrcp.pop %v1836
    %v1838 = vmul.f32 1.0, %v1837
    %v1839 = vtanh.pop %v1832
    %v1840 = vmul.f32 %v1838, %v1746
    %1842 = vrot.lane.b32.xlu0 %v1839, 64
    %v1843 = vpop.permute.xlu0 %1842
    %v1845 = vmul.f32 %v1838, %v1843
    %1847 = vrot.lane.b32.xlu0 %v1845, 32
    %v1848 = vpop.permute.xlu0 %1847
    %v1850 = vadd.f32 %v1840, %v1848
    %v1851 = vtanh.pop %v1850
    %1853 = vrot.lane.b32.xlu0 %v1851, 64
    %v1854 = vpop.permute.xlu0 %1853
    %v1856 = vmul.f32 %v1838, %v1854
    %1858 = vrot.lane.b32.xlu0 %v1856, 32
    %v1859 = vpop.permute.xlu0 %1858
    %1861 = vst.msk [vmem:[#allocation5 + $0x8] sm:$0x3] %vm440, %v1859
    %1862 = vst.msk [vmem:[#allocation5 + $0x6] sm:$0x3] %vm442, %v1859
    %v1863 = vld [vmem:[%s300] sm:$0x3]
    %v1864 = vsel %vm189, %v1859, 0
    %1866 = vmatprep.subr.mxu0 0.0
    %1867 = vmatpush1.msra.mxu0 0.0
    %1868 = vmatprep.subr.mxu0 0.0
    %1869 = vmatpush1.msra.mxu0 0.0
    %1870 = vmatprep.subr.mxu0 0.0
    %1871 = vmatpush1.msra.mxu0 0.0
    %1872 = vmatprep.subr.mxu0 0.0
    %1873 = vmatpush1.msra.mxu0 0.0
    %1874 = vmatprep.subr.mxu0 0.0
    %1875 = vmatpush1.msra.mxu0 0.0
    %1876 = vmatprep.subr.mxu0 0.0
    %1877 = vmatpush1.msra.mxu0 0.0
    %1878 = vmatprep.subr.mxu0 0.0
    %1879 = vmatpush1.msra.mxu0 0.0
    %1880 = vmatprep.subr.mxu0 0.0
    %1881 = vmatpush1.msra.mxu0 0.0
    %1882 = vmatprep.subr.mxu0 0.0
    %1883 = vmatpush1.msra.mxu0 0.0
    %1884 = vmatprep.subr.mxu0 0.0
    %1885 = vmatpush1.msra.mxu0 0.0
    %1886 = vmatprep.subr.mxu0 0.0
    %1887 = vmatpush1.msra.mxu0 0.0
    %1888 = vmatprep.subr.mxu0 0.0
    %1889 = vmatpush1.msra.mxu0 0.0
    %1890 = vmatprep.subr.mxu0 0.0
    %1891 = vmatpush1.msra.mxu0 %v1319
    %1892 = vmatprep.subr.mxu0 0.0
    %1893 = vmatpush1.msra.mxu0 %v1318
    %1894 = vmatprep.subr.mxu0 0.0
    %1895 = vmatpush1.msra.mxu0 %v1317
    %1896 = vmatprep.subr.mxu0 0.0
    %1897 = vmatpush1.msra.mxu0 %v1316
    %1898 = vmatprep.subr.mxu0 0.0
    %1899 = vmatpush2.msra.mxu0 0.0
    %1900 = vmatprep.subr.mxu0 0.0
    %1901 = vmatpush2.msra.mxu0 0.0
    %1902 = vmatprep.subr.mxu0 0.0
    %1903 = vmatpush2.msra.mxu0 0.0
    %1904 = vmatprep.subr.mxu0 0.0
    %1905 = vmatpush2.msra.mxu0 0.0
    %1906 = vmatprep.subr.mxu0 0.0
    %1907 = vmatpush2.msra.mxu0 0.0
    %1908 = vmatprep.subr.mxu0 0.0
    %1909 = vmatpush2.msra.mxu0 0.0
    %1910 = vmatprep.subr.mxu0 0.0
    %1911 = vmatpush2.msra.mxu0 0.0
    %1912 = vmatprep.subr.mxu0 0.0
    %1913 = vmatpush2.msra.mxu0 0.0
    %1914 = vmatprep.subr.mxu0 0.0
    %1915 = vmatpush2.msra.mxu0 0.0
    %1916 = vmatprep.subr.mxu0 0.0
    %1917 = vmatpush2.msra.mxu0 0.0
    %1918 = vmatprep.subr.mxu0 0.0
    %1919 = vmatpush2.msra.mxu0 0.0
    %1920 = vmatprep.subr.mxu0 0.0
    %1921 = vmatpush2.msra.mxu0 0.0
    %1922 = vmatprep.subr.mxu0 0.0
    %1923 = vmatpush2.msra.mxu0 0.0
    %1924 = vmatprep.subr.mxu0 0.0
    %1925 = vmatpush2.msra.mxu0 0.0
    %1926 = vmatprep.subr.mxu0 0.0
    %1927 = vmatpush2.msra.mxu0 0.0
    %1928 = vmatprep.subr.mxu0 0.0
    %1929 = vmatpush2.msra.mxu0 0.0
    %1930 = vmatprep.mubr.f32.mxu0 0.0
    %1931 = vmatmul.mubr.f32.gmra.mxu0 %v1864
    %v1932 = vpop.f32.mrf.mxu0
    %v1933 = vadd.f32 0.0, %v1932
    %v1934 = vpop.f32.mrf.mxu0
    %1935 = vdwg.mxu0
    %v1936 = vadd.f32 %v1863, %v1933
    %v1937 = vxor.u32 %v1936, 2147483648
    %v1938 = vmul.f32 %v1937, 1.442695
    %v1939 = vpow.pop %v1938
    %v1940 = vadd.f32 %v1939, 1.0
    %v1941 = vrcp.pop %v1940
    %v1942 = vmul.f32 1.0, %v1941
    %v1943 = vtanh.pop %v1936
    %v1944 = vmul.f32 %v1942, %v1850
    %1946 = vrot.lane.b32.xlu0 %v1943, 64
    %v1947 = vpop.permute.xlu0 %1946
    %v1949 = vmul.f32 %v1942, %v1947
    %1951 = vrot.lane.b32.xlu0 %v1949, 32
    %v1952 = vpop.permute.xlu0 %1951
    %v1954 = vadd.f32 %v1944, %v1952
    %v1955 = vtanh.pop %v1954
    %1957 = vrot.lane.b32.xlu0 %v1955, 64
    %v1958 = vpop.permute.xlu0 %1957
    %v1960 = vmul.f32 %v1942, %v1958
    %1962 = vrot.lane.b32.xlu0 %v1960, 32
    %v1963 = vpop.permute.xlu0 %1962
    %1965 = vst.msk [vmem:[#allocation5 + $0xa] sm:$0x3] %vm440, %v1963
    %1966 = vst.msk [vmem:[#allocation5 + $0x4] sm:$0x3] %vm442, %v1963
    %v1967 = vld [vmem:[%s305] sm:$0x3]
    %v1968 = vsel %vm189, %v1963, 0
    %1970 = vmatprep.subr.mxu0 0.0
    %1971 = vmatpush1.msra.mxu0 0.0
    %1972 = vmatprep.subr.mxu0 0.0
    %1973 = vmatpush1.msra.mxu0 0.0
    %1974 = vmatprep.subr.mxu0 0.0
    %1975 = vmatpush1.msra.mxu0 0.0
    %1976 = vmatprep.subr.mxu0 0.0
    %1977 = vmatpush1.msra.mxu0 0.0
    %1978 = vmatprep.subr.mxu0 0.0
    %1979 = vmatpush1.msra.mxu0 0.0
    %1980 = vmatprep.subr.mxu0 0.0
    %1981 = vmatpush1.msra.mxu0 0.0
    %1982 = vmatprep.subr.mxu0 0.0
    %1983 = vmatpush1.msra.mxu0 0.0
    %1984 = vmatprep.subr.mxu0 0.0
    %1985 = vmatpush1.msra.mxu0 0.0
    %1986 = vmatprep.subr.mxu0 0.0
    %1987 = vmatpush1.msra.mxu0 0.0
    %1988 = vmatprep.subr.mxu0 0.0
    %1989 = vmatpush1.msra.mxu0 0.0
    %1990 = vmatprep.subr.mxu0 0.0
    %1991 = vmatpush1.msra.mxu0 0.0
    %1992 = vmatprep.subr.mxu0 0.0
    %1993 = vmatpush1.msra.mxu0 0.0
    %1994 = vmatprep.subr.mxu0 0.0
    %1995 = vmatpush1.msra.mxu0 %v1319
    %1996 = vmatprep.subr.mxu0 0.0
    %1997 = vmatpush1.msra.mxu0 %v1318
    %1998 = vmatprep.subr.mxu0 0.0
    %1999 = vmatpush1.msra.mxu0 %v1317
    %2000 = vmatprep.subr.mxu0 0.0
    %2001 = vmatpush1.msra.mxu0 %v1316
    %2002 = vmatprep.subr.mxu0 0.0
    %2003 = vmatpush2.msra.mxu0 0.0
    %2004 = vmatprep.subr.mxu0 0.0
    %2005 = vmatpush2.msra.mxu0 0.0
    %2006 = vmatprep.subr.mxu0 0.0
    %2007 = vmatpush2.msra.mxu0 0.0
    %2008 = vmatprep.subr.mxu0 0.0
    %2009 = vmatpush2.msra.mxu0 0.0
    %2010 = vmatprep.subr.mxu0 0.0
    %2011 = vmatpush2.msra.mxu0 0.0
    %2012 = vmatprep.subr.mxu0 0.0
    %2013 = vmatpush2.msra.mxu0 0.0
    %2014 = vmatprep.subr.mxu0 0.0
    %2015 = vmatpush2.msra.mxu0 0.0
    %2016 = vmatprep.subr.mxu0 0.0
    %2017 = vmatpush2.msra.mxu0 0.0
    %2018 = vmatprep.subr.mxu0 0.0
    %2019 = vmatpush2.msra.mxu0 0.0
    %2020 = vmatprep.subr.mxu0 0.0
    %2021 = vmatpush2.msra.mxu0 0.0
    %2022 = vmatprep.subr.mxu0 0.0
    %2023 = vmatpush2.msra.mxu0 0.0
    %2024 = vmatprep.subr.mxu0 0.0
    %2025 = vmatpush2.msra.mxu0 0.0
    %2026 = vmatprep.subr.mxu0 0.0
    %2027 = vmatpush2.msra.mxu0 0.0
    %2028 = vmatprep.subr.mxu0 0.0
    %2029 = vmatpush2.msra.mxu0 0.0
    %2030 = vmatprep.subr.mxu0 0.0
    %2031 = vmatpush2.msra.mxu0 0.0
    %2032 = vmatprep.subr.mxu0 0.0
    %2033 = vmatpush2.msra.mxu0 0.0
    %2034 = vmatprep.mubr.f32.mxu0 0.0
    %2035 = vmatmul.mubr.f32.gmra.mxu0 %v1968
    %v2036 = vpop.f32.mrf.mxu0
    %v2037 = vadd.f32 0.0, %v2036
    %v2038 = vpop.f32.mrf.mxu0
    %2039 = vdwg.mxu0
    %v2040 = vadd.f32 %v1967, %v2037
    %v2041 = vxor.u32 %v2040, 2147483648
    %v2042 = vmul.f32 %v2041, 1.442695
    %v2043 = vpow.pop %v2042
    %v2044 = vadd.f32 %v2043, 1.0
    %v2045 = vrcp.pop %v2044
    %v2046 = vmul.f32 1.0, %v2045
    %v2047 = vtanh.pop %v2040
    %v2048 = vmul.f32 %v2046, %v1954
    %2050 = vrot.lane.b32.xlu0 %v2047, 64
    %v2051 = vpop.permute.xlu0 %2050
    %v2053 = vmul.f32 %v2046, %v2051
    %2055 = vrot.lane.b32.xlu0 %v2053, 32
    %v2056 = vpop.permute.xlu0 %2055
    %v2058 = vadd.f32 %v2048, %v2056
    %v2059 = vtanh.pop %v2058
    %2061 = vrot.lane.b32.xlu0 %v2059, 64
    %v2062 = vpop.permute.xlu0 %2061
    %v2064 = vmul.f32 %v2046, %v2062
    %2066 = vrot.lane.b32.xlu0 %v2064, 32
    %v2067 = vpop.permute.xlu0 %2066
    %2069 = vst.msk [vmem:[#allocation5 + $0xc] sm:$0x3] %vm440, %v2067
    %2070 = vst.msk [vmem:[#allocation5 + $0x2] sm:$0x3] %vm442, %v2067
    %v2071 = vld [vmem:[%s310] sm:$0x3]
    %v2072 = vsel %vm189, %v2067, 0
    %2074 = vmatprep.subr.mxu0 0.0
    %2075 = vmatpush1.msra.mxu0 0.0
    %2076 = vmatprep.subr.mxu0 0.0
    %2077 = vmatpush1.msra.mxu0 0.0
    %2078 = vmatprep.subr.mxu0 0.0
    %2079 = vmatpush1.msra.mxu0 0.0
    %2080 = vmatprep.subr.mxu0 0.0
    %2081 = vmatpush1.msra.mxu0 0.0
    %2082 = vmatprep.subr.mxu0 0.0
    %2083 = vmatpush1.msra.mxu0 0.0
    %2084 = vmatprep.subr.mxu0 0.0
    %2085 = vmatpush1.msra.mxu0 0.0
    %2086 = vmatprep.subr.mxu0 0.0
    %2087 = vmatpush1.msra.mxu0 0.0
    %2088 = vmatprep.subr.mxu0 0.0
    %2089 = vmatpush1.msra.mxu0 0.0
    %2090 = vmatprep.subr.mxu0 0.0
    %2091 = vmatpush1.msra.mxu0 0.0
    %2092 = vmatprep.subr.mxu0 0.0
    %2093 = vmatpush1.msra.mxu0 0.0
    %2094 = vmatprep.subr.mxu0 0.0
    %2095 = vmatpush1.msra.mxu0 0.0
    %2096 = vmatprep.subr.mxu0 0.0
    %2097 = vmatpush1.msra.mxu0 0.0
    %2098 = vmatprep.subr.mxu0 0.0
    %2099 = vmatpush1.msra.mxu0 %v1319
    %2100 = vmatprep.subr.mxu0 0.0
    %2101 = vmatpush1.msra.mxu0 %v1318
    %2102 = vmatprep.subr.mxu0 0.0
    %2103 = vmatpush1.msra.mxu0 %v1317
    %2104 = vmatprep.subr.mxu0 0.0
    %2105 = vmatpush1.msra.mxu0 %v1316
    %2106 = vmatprep.subr.mxu0 0.0
    %2107 = vmatpush2.msra.mxu0 0.0
    %2108 = vmatprep.subr.mxu0 0.0
    %2109 = vmatpush2.msra.mxu0 0.0
    %2110 = vmatprep.subr.mxu0 0.0
    %2111 = vmatpush2.msra.mxu0 0.0
    %2112 = vmatprep.subr.mxu0 0.0
    %2113 = vmatpush2.msra.mxu0 0.0
    %2114 = vmatprep.subr.mxu0 0.0
    %2115 = vmatpush2.msra.mxu0 0.0
    %2116 = vmatprep.subr.mxu0 0.0
    %2117 = vmatpush2.msra.mxu0 0.0
    %2118 = vmatprep.subr.mxu0 0.0
    %2119 = vmatpush2.msra.mxu0 0.0
    %2120 = vmatprep.subr.mxu0 0.0
    %2121 = vmatpush2.msra.mxu0 0.0
    %2122 = vmatprep.subr.mxu0 0.0
    %2123 = vmatpush2.msra.mxu0 0.0
    %2124 = vmatprep.subr.mxu0 0.0
    %2125 = vmatpush2.msra.mxu0 0.0
    %2126 = vmatprep.subr.mxu0 0.0
    %2127 = vmatpush2.msra.mxu0 0.0
    %2128 = vmatprep.subr.mxu0 0.0
    %2129 = vmatpush2.msra.mxu0 0.0
    %2130 = vmatprep.subr.mxu0 0.0
    %2131 = vmatpush2.msra.mxu0 0.0
    %2132 = vmatprep.subr.mxu0 0.0
    %2133 = vmatpush2.msra.mxu0 0.0
    %2134 = vmatprep.subr.mxu0 0.0
    %2135 = vmatpush2.msra.mxu0 0.0
    %2136 = vmatprep.subr.mxu0 0.0
    %2137 = vmatpush2.msra.mxu0 0.0
    %2138 = vmatprep.mubr.f32.mxu0 0.0
    %2139 = vmatmul.mubr.f32.gmra.mxu0 %v2072
    %v2140 = vpop.f32.mrf.mxu0
    %v2141 = vadd.f32 0.0, %v2140
    %v2142 = vpop.f32.mrf.mxu0
    %2143 = vdwg.mxu0
    %v2144 = vadd.f32 %v2071, %v2141
    %v2145 = vxor.u32 %v2144, 2147483648
    %v2146 = vmul.f32 %v2145, 1.442695
    %v2147 = vpow.pop %v2146
    %v2148 = vadd.f32 %v2147, 1.0
    %v2149 = vrcp.pop %v2148
    %v2150 = vmul.f32 1.0, %v2149
    %v2151 = vtanh.pop %v2144
    %v2152 = vmul.f32 %v2150, %v2058
    %2154 = vrot.lane.b32.xlu0 %v2151, 64
    %v2155 = vpop.permute.xlu0 %2154
    %v2157 = vmul.f32 %v2150, %v2155
    %2159 = vrot.lane.b32.xlu0 %v2157, 32
    %v2160 = vpop.permute.xlu0 %2159
    %v2162 = vadd.f32 %v2152, %v2160
    %v2163 = vtanh.pop %v2162
    %2165 = vrot.lane.b32.xlu0 %v2163, 64
    %v2166 = vpop.permute.xlu0 %2165
    %v2168 = vmul.f32 %v2150, %v2166
    %2170 = vrot.lane.b32.xlu0 %v2168, 32
    %v2171 = vpop.permute.xlu0 %2170
    %2173 = vst.msk [vmem:[#allocation5 + $0xe] sm:$0x3] %vm440, %v2171
    %2174 = vst.msk [vmem:[#allocation5] sm:$0x3] %vm442, %v2171
    %s2175 = scalar_lea.vmem [#allocation19], 4
    %2176 = vst.msk [vmem:[%s2175] sm:$0x3] %vm440, %v2171
    %2178 = vrot.lane.b32.xlu0 %v2162, 96
    %v2179 = vpop.permute.xlu0 %2178
    %s2181 = scalar_lea.vmem [#allocation21], 4
    %2182 = vst.msk [vmem:[%s2181] sm:$0x3] %vm440, %v2179
    %2183 = vrot.lane.b32.xlu0 %v2168, 16
    %v2184 = vpop.permute.xlu0 %2183
    %s2186 = scalar_lea.vmem [#allocation19], 6
    %2187 = vst.msk [vmem:[%s2186] sm:$0x3] %vm440, %v2184
    %2188 = vrot.lane.b32.xlu0 %v2162, 80
    %v2189 = vpop.permute.xlu0 %2188
    %s2191 = scalar_lea.vmem [#allocation21], 6
    %2192 = vst.msk [vmem:[%s2191] sm:$0x3] %vm440, %v2189
    %v2193 = vld [vmem:[#allocation5] sm:$0x1]
    %2194 = vst.msk [vmem:[#allocation18] sm:$0x1] %vm129, %v2193
    %v2195 = vld [vmem:[#allocation5 + $0x2] sm:$0x1]
    %2196 = vst.msk [vmem:[#allocation18 + $0x1] sm:$0x1] %vm129, %v2195
    %v2197 = vld [vmem:[#allocation5 + $0x4] sm:$0x1]
    %2198 = vst.msk [vmem:[#allocation18 + $0x2] sm:$0x1] %vm129, %v2197
    %v2199 = vld [vmem:[#allocation5 + $0x6] sm:$0x1]
    %2200 = vst.msk [vmem:[#allocation18 + $0x3] sm:$0x1] %vm129, %v2199
    %v2201 = vld [vmem:[#allocation5 + $0x8] sm:$0x1]
    %2202 = vst.msk [vmem:[#allocation18 + $0x4] sm:$0x1] %vm129, %v2201
    %v2203 = vld [vmem:[#allocation5 + $0xa] sm:$0x1]
    %2204 = vst.msk [vmem:[#allocation18 + $0x5] sm:$0x1] %vm129, %v2203
    %v2205 = vld [vmem:[#allocation5 + $0xc] sm:$0x1]
    %2206 = vst.msk [vmem:[#allocation18 + $0x6] sm:$0x1] %vm129, %v2205
    %v2207 = vld [vmem:[#allocation5 + $0xe] sm:$0x1]
    %2208 = vst.msk [vmem:[#allocation18 + $0x7] sm:$0x1] %vm129, %v2207
    %v2209 = vld [vmem:[#allocation5 + $0x1] sm:$0x1]
    %2210 = vst.msk [vmem:[#allocation18 + $0x8] sm:$0x1] %vm129, %v2209
    %v2211 = vld [vmem:[#allocation5 + $0x3] sm:$0x1]
    %2212 = vst.msk [vmem:[#allocation18 + $0x9] sm:$0x1] %vm129, %v2211
    %v2213 = vld [vmem:[#allocation5 + $0x5] sm:$0x1]
    %2214 = vst.msk [vmem:[#allocation18 + $0xa] sm:$0x1] %vm129, %v2213
    %v2215 = vld [vmem:[#allocation5 + $0x7] sm:$0x1]
    %2216 = vst.msk [vmem:[#allocation18 + $0xb] sm:$0x1] %vm129, %v2215
    %v2217 = vld [vmem:[#allocation5 + $0x9] sm:$0x1]
    %2218 = vst.msk [vmem:[#allocation18 + $0xc] sm:$0x1] %vm129, %v2217
    %v2219 = vld [vmem:[#allocation5 + $0xb] sm:$0x1]
    %2220 = vst.msk [vmem:[#allocation18 + $0xd] sm:$0x1] %vm129, %v2219
    %v2221 = vld [vmem:[#allocation5 + $0xd] sm:$0x1]
    %2222 = vst.msk [vmem:[#allocation18 + $0xe] sm:$0x1] %vm129, %v2221
    %v2223 = vld [vmem:[#allocation5 + $0xf] sm:$0x1]
    %2224 = vst.msk [vmem:[#allocation18 + $0xf] sm:$0x1] %vm129, %v2223
    // Predicated region
    $region66: #{forward.1} parent=1 // pred_check
      _
    $region67: #{forward.1} parent=1 // pred_check_branch
      %2226 = sbr.rel (0) target = $region69
    $region68: #{forward.1} parent=1 // pred_region
      %s2228 = ssub.s32 256, 256
      %2229 = vsyncadd [#allocation8], %s2228
      %s2230 = sshll.u32 [#allocation18], 4
      %s2231 = int_to_ptr.vmem [resolvable:$true] %s2230
      %2236 = dma.vmem_to_hbm [thread:$0]  %s2231, 256, %s9, [#allocation8], 128, 128, 8
    $region69: #{forward.1} parent=1 // pred_fallthru
      _
    // Predicated region
    $region70: #{forward.1} parent=1 // pred_check
      _
    $region71: #{forward.1} parent=1 // pred_check_branch
      %2238 = sbr.rel (0) target = $region73
    $region72: #{forward.1} parent=1 // pred_region
      %s2240 = ssub.s32 128, 128
      %2241 = vsyncadd [#allocation20], %s2240
      %s2242 = sshll.u32 [#allocation19], 4
      %s2243 = int_to_ptr.vmem [resolvable:$true] %s2242
      %2248 = dma.vmem_to_hbm [thread:$0]  %s2243, 128, %s10, [#allocation20], 32, 32, 2
    $region73: #{forward.1} parent=1 // pred_fallthru
      _
    // Predicated region
    $region74: #{forward.1} parent=1 // pred_check
      _
    $region75: #{forward.1} parent=1 // pred_check_branch
      %2250 = sbr.rel (0) target = $region77
    $region76: #{forward.1} parent=1 // pred_region
      %s2252 = ssub.s32 128, 128
      %2253 = vsyncadd [#allocation20], %s2252
      %s2254 = sshll.u32 [#allocation21], 4
      %s2255 = int_to_ptr.vmem [resolvable:$true] %s2254
      %2260 = dma.vmem_to_hbm [thread:$0]  %s2255, 128, %s11, [#allocation20], 32, 32, 2
    $region77: #{forward.1} parent=1 // pred_fallthru
      _
    // Predicated region
    $region78: #{forward.1} parent=1 // pred_check
      _
    $region79: #{forward.1} parent=1 // pred_check_branch
      %2262 = sbr.rel (0) target = $region81
    $region80: #{forward.1} parent=1 // pred_region
      %2263 = dma.done [#allocation8], 256
    $region81: #{forward.1} parent=1 // pred_fallthru
      _
    // Predicated region
    $region82: #{forward.1} parent=1 // pred_check
      _
    $region83: #{forward.1} parent=1 // pred_check_branch
      %2265 = sbr.rel (0) target = $region85
    $region84: #{forward.1} parent=1 // pred_region
      %2266 = dma.done [#allocation20], 128
    $region85: #{forward.1} parent=1 // pred_fallthru
      _
    // Predicated region
    $region86: #{forward.1} parent=1 // pred_check
      _
    $region87: #{forward.1} parent=1 // pred_check_branch
      %2268 = sbr.rel (0) target = $region89
    $region88: #{forward.1} parent=1 // pred_region
      %2269 = dma.done [#allocation20], 128
    $region89: #{forward.1} parent=1 // pred_fallthru
      _
    %2270 = vsyncpa [#allocation7], 1
    %2271 = vsyncpa [#allocation10], 1
    %2272 = vsyncpa [#allocation13], 1
    %2273 = vsyncpa [#allocation16], 1
    %2274 = vsyncpa [#allocation8], 1
    %2275 = vsyncpa [#allocation20], 1

</llo_original>
